<compile_context>
chip_gen: v6e
topology: v6e:2x2x1
jax: 0.10.0
libtpu: 0.0.40
codegen_flags: <defaults>
</compile_context>

<pallas_src>
import functools

import jax
import jax.numpy as jnp
from jax.experimental import pallas as pl
from jax.experimental.pallas import tpu as pltpu

EPS = 1e-5
LANE = 128


def _round_up(v, m):
    return ((v + m - 1) // m) * m


def _act(y, act):
    if act == "leaky":
        return jnp.where(y > 0, y, 0.1 * y)
    if act == "relu":
        return jnp.maximum(y, 0.0)
    return y


# ----------------------------------------------------------------------------
# Tiled matmul (+bias +activation): 1x1 convs and the connected layer.
# Accumulates directly into the resident f32 output block (no scratch).
# ----------------------------------------------------------------------------
def _mm_bias_act_kernel(a_ref, w_ref, b_ref, o_ref, *, act):
    k = pl.program_id(2)

    @pl.when(k == 0)
    def _():
        o_ref[...] = jnp.zeros_like(o_ref)

    o_ref[...] += jnp.dot(a_ref[...].astype(jnp.bfloat16), w_ref[...],
                          preferred_element_type=jnp.float32)

    @pl.when(k == pl.num_programs(2) - 1)
    def _():
        o_ref[...] = _act(o_ref[...] + b_ref[...], act)


def _pick_rows(M):
    """Row tile + padded row count.  Prefers >=2 blocks (dual-TC v7x); never
    falls back to 8-row tiles."""
    if M > 512:
        return 256, _round_up(M, 256)
    if M >= 16 and M % 16 == 0:
        return M // 2, M
    return M, M


def matmul_bias_act(a, w, bias, act):
    """a:(M,K) f32, w:(K,Fp) bf16 with Fp%128==0 (BN scale pre-folded),
    bias:(Fp,) f32.  Returns (M, Fp) f32 (padded lanes stay exactly 0)."""
    M, K = a.shape
    K2, Fp = w.shape
    assert K == K2 and Fp % LANE == 0

    TM, Mp = _pick_rows(M)
    if Mp != M:
        a = jnp.pad(a, ((0, Mp - M), (0, 0)))

    if K <= 512:
        TK, Kp = K, K
    else:
        TK = 256
        Kp = _round_up(K, TK)
        a = jnp.pad(a, ((0, 0), (0, Kp - K)))
        w = jnp.pad(w, ((0, Kp - K), (0, 0)))

    TF = 256 if Fp % 256 == 0 else LANE
    grid = (Mp // TM, Fp // TF, Kp // TK)

    out = pl.pallas_call(
        functools.partial(_mm_bias_act_kernel, act=act),
        out_shape=jax.ShapeDtypeStruct((Mp, Fp), jnp.float32),
        grid=grid,
        in_specs=[
            pl.BlockSpec((TM, TK), lambda i, j, k: (i, k)),
            pl.BlockSpec((TK, TF), lambda i, j, k: (k, j)),
            pl.BlockSpec((1, TF), lambda i, j, k: (0, j)),
        ],
        out_specs=pl.BlockSpec((TM, TF), lambda i, j, k: (i, j)),
        compiler_params=pltpu.CompilerParams(
            dimension_semantics=("parallel", "parallel", "arbitrary")),
    )(a, w, bias.reshape(1, Fp))
    return out[:M] if Mp != M else out


# ----------------------------------------------------------------------------
# Direct kxk stride-1 "same" conv: one big MXU matmul per image.  The padded
# NHWC image is read once; the k*k shifted windows are sliced in VMEM and
# lane-concatenated into an (OH*OW, k*k*Cp) bf16 slab (Cp % 128 == 0 so all
# concat pieces are lane-tile aligned).
# ----------------------------------------------------------------------------
def _conv_kxk_kernel(x_ref, w_ref, b_ref, o_ref, *, k, OH, OW, act):
    # x_ref:(1,Hp,Wp,Cp) f32   w_ref:(k*k*Cp,Fp) bf16
    # b_ref:(1,Fp) f32         o_ref:(1,OH*OW,Fp) f32
    Hp = x_ref.shape[1]
    Cp = x_ref.shape[3]
    xb = x_ref[0].astype(jnp.bfloat16)                       # (Hp, Wp, Cp)
    # k column slabs (one sublane shift each), flattened to (Hp*OW, Cp)
    cols = [xb[:, j:j + OW, :].reshape(Hp * OW, Cp) for j in range(k)]
    # tap order t = i*k + j matches the weight row layout (k*k, Cp, Fp)
    lhs = jnp.concatenate(
        [cols[j][i * OW:(i + OH) * OW, :] for i in range(k) for j in range(k)],
        axis=-1)                                             # (OH*OW, k*k*Cp)
    acc = jnp.dot(lhs, w_ref[...], preferred_element_type=jnp.float32)
    o_ref[0] = _act(acc + b_ref[...], act)


def conv_kxk_same(xp, w, bias, k, OH, OW, act):
    # TODO(synk): at real Darknet resolutions add an OH/Fp grid axis (halo
    # blocks) + explicit vmem_limit_bytes so the block fits v7x's 64 MiB VMEM.
    N, Hp, Wp, Cp = xp.shape
    KK, Fp = w.shape
    return pl.pallas_call(
        functools.partial(_conv_kxk_kernel, k=k, OH=OH, OW=OW, act=act),
        out_shape=jax.ShapeDtypeStruct((N, OH * OW, Fp), jnp.float32),
        grid=(N,),
        in_specs=[
            pl.BlockSpec((1, Hp, Wp, Cp), lambda n: (n, 0, 0, 0)),
            pl.BlockSpec((KK, Fp), lambda n: (0, 0)),
            pl.BlockSpec((1, Fp), lambda n: (0, 0)),
        ],
        out_specs=pl.BlockSpec((1, OH * OW, Fp), lambda n: (n, 0, 0)),
        compiler_params=pltpu.CompilerParams(dimension_semantics=("parallel",)),
    )(xp, w, bias.reshape(1, Fp))


# ----------------------------------------------------------------------------
# Fused maxpool kernels (single read of x, single write of the output).
# ----------------------------------------------------------------------------
def _maxpool_s2_kernel(x_ref, o_ref):
    # x_ref: (1, 2*OH, OW, 2*C) -- W-pairs folded into the lane dim (free
    # reshape outside).  o_ref: (1, OH, OW, C)
    OH, OW, C = o_ref.shape[1], o_ref.shape[2], o_ref.shape[3]
    x = x_ref[0]
    m = jnp.max(x.reshape(OH, 2, OW, 2 * C), axis=1)          # H-pair max
    o_ref[0] = jnp.maximum(m[:, :, :C], m[:, :, C:])          # W-pair max


def _maxpool_s1_kernel(x_ref, o_ref):
    # x_ref: (1, H+1, W+1, C) edge-padded.  2x2 window, stride 1.
    H, W = o_ref.shape[1], o_ref.shape[2]
    x = x_ref[0]
    o_ref[0] = jnp.maximum(jnp.maximum(x[:H, :W], x[1:, :W]),
                           jnp.maximum(x[:H, 1:], x[1:, 1:]))


def maxpool_forward_nhwc(x, block):
    size, stride = block["size"], block["stride"]
    N, H, W, C = x.shape
    if stride > 1:
        # TODO(synk): only the size==stride==2 case (used by this config) is
        # implemented as a fused kernel.
        assert size == 2 and stride == 2 and H % 2 == 0 and W % 2 == 0
        OH, OW = H // 2, W // 2
        xr = x.reshape(N, H, OW, 2 * C)        # contiguous -> free reshape
        return pl.pallas_call(
            _maxpool_s2_kernel,
            out_shape=jax.ShapeDtypeStruct((N, OH, OW, C), jnp.float32),
            grid=(N,),
            in_specs=[pl.BlockSpec((1, H, OW, 2 * C), lambda n: (n, 0, 0, 0))],
            out_specs=pl.BlockSpec((1, OH, OW, C), lambda n: (n, 0, 0, 0)),
            compiler_params=pltpu.CompilerParams(
                dimension_semantics=("parallel",)),
        )(xr)
    # MaxPoolStride1: replicate-pad right/bottom, 2x2 window, stride 1
    xp = jnp.pad(x, ((0, 0), (0, 1), (0, 1), (0, 0)), mode="edge")
    return pl.pallas_call(
        _maxpool_s1_kernel,
        out_shape=jax.ShapeDtypeStruct((N, H, W, C), jnp.float32),
        grid=(N,),
        in_specs=[pl.BlockSpec((1, H + 1, W + 1, C), lambda n: (n, 0, 0, 0))],
        out_specs=pl.BlockSpec((1, H, W, C), lambda n: (n, 0, 0, 0)),
        compiler_params=pltpu.CompilerParams(dimension_semantics=("parallel",)),
    )(xp)


# ----------------------------------------------------------------------------
# Elementwise add(+act) for shortcut, and global average pooling.
# ----------------------------------------------------------------------------
def _add_act_kernel(a_ref, b_ref, o_ref, *, act):
    o_ref[...] = _act(a_ref[...] + b_ref[...], act)


def elementwise_add_act(x1, x2, act):
    shp = x1.shape
    C = shp[-1]
    rows = x1.size // C
    a = x1.reshape(rows, C)
    b = x2.reshape(rows, C)
    if rows >= 16 and rows % 16 == 0:
        rt = rows // 2
        while rt > 1024 and rt % 16 == 0:
            rt //= 2
    else:
        rt = rows
    spec = pl.BlockSpec((rt, C), lambda i: (i, 0))
    out = pl.pallas_call(
        functools.partial(_add_act_kernel, act=act),
        out_shape=jax.ShapeDtypeStruct((rows, C), jnp.float32),
        grid=(rows // rt,),
        in_specs=[spec, spec],
        out_specs=spec,
        compiler_params=pltpu.CompilerParams(dimension_semantics=("parallel",)),
    )(a, b)
    return out.reshape(shp)


def _gap_kernel(x_ref, o_ref):
    o_ref[0] = jnp.mean(x_ref[0], axis=0, keepdims=True)


def global_avg_pool_nhwc(x):
    N, H, W, C = x.shape
    x3 = x.reshape(N, H * W, C)                 # contiguous -> free reshape
    y = pl.pallas_call(
        _gap_kernel,
        out_shape=jax.ShapeDtypeStruct((N, 1, C), jnp.float32),
        grid=(N,),
        in_specs=[pl.BlockSpec((1, H * W, C), lambda n: (n, 0, 0))],
        out_specs=pl.BlockSpec((1, 1, C), lambda n: (n, 0, 0)),
        compiler_params=pltpu.CompilerParams(dimension_semantics=("parallel",)),
    )(x3)
    return y.reshape(N, C)


# ----------------------------------------------------------------------------
# Layer forwards (NHWC, channel-padded activations; data movement in plain JAX
# under the single jit).
# ----------------------------------------------------------------------------
def _im2col_nhwc(x, k, stride, pad):
    # TODO(synk): only used for stride>1 spatial convs (none in this config).
    N, H, W, C = x.shape
    xp = jnp.pad(x, ((0, 0), (pad, pad), (pad, pad), (0, 0)))
    OH = (H + 2 * pad - k) // stride + 1
    OW = (W + 2 * pad - k) // stride + 1
    cols = [xp[:, i:i + stride * (OH - 1) + 1:stride,
               j:j + stride * (OW - 1) + 1:stride, :]
            for i in range(k) for j in range(k)]
    patches = jnp.stack(cols, axis=3).reshape(N * OH * OW, k * k * C)
    return patches, OH, OW


def conv_forward_nhwc(x, prep, block):
    k, stride = block["size"], block["stride"]
    pad = (k - 1) // 2 if block["pad"] else 0
    N, H, W, C = x.shape
    act = block["activation"]
    Fp, cin_eff = prep["fp"], prep["cin_eff"]
    OH = (H + 2 * pad - k) // stride + 1
    OW = (W + 2 * pad - k) // stride + 1
    assert C <= cin_eff
    if C < cin_eff:  # only at the network entry / unusual graphs
        x = jnp.pad(x, ((0, 0), (0, 0), (0, 0), (0, cin_eff - C)))
    if k == 1:
        xs = x[:, ::stride, ::stride, :] if stride > 1 else x
        y = matmul_bias_act(xs.reshape(N * OH * OW, cin_eff), prep["w"],
                            prep["b"], act)
        return y.reshape(N, OH, OW, Fp)
    if stride == 1:
        xp = jnp.pad(x, ((0, 0), (pad, pad), (pad, pad), (0, 0)))
        y = conv_kxk_same(xp, prep["w"], prep["b"], k, OH, OW, act)
        return y.reshape(N, OH, OW, Fp)
    patches, OH, OW = _im2col_nhwc(x, k, stride, pad)
    y = matmul_bias_act(patches, prep["w"], prep["b"], act)
    return y.reshape(N, OH, OW, Fp)


def reorg_forward_nhwc(x, s):
    B, H, W, C = x.shape
    x = x.reshape(B, H // s, s, W // s, s, C).transpose(0, 1, 3, 2, 4, 5)
    return x.reshape(B, H // s, W // s, s * s * C)


def upsample_forward_nhwc(x, s):
    N, H, W, C = x.shape
    x = jnp.broadcast_to(x[:, :, None, :, None, :], (N, H, s, W, s, C))
    return x.reshape(N, H * s, W * s, C)


def connected_forward(x, prep, block):
    return matmul_bias_act(x, prep["w"], prep["b"], block["activation"])


# ----------------------------------------------------------------------------
# Parameter prep: BN fold, zero-pad input rows to the stored (padded) input
# channel count, zero-pad output channels to Fp, cast weights to bf16.
# ----------------------------------------------------------------------------
def _prep_conv(p, block, cin_valid, cin_eff):
    F_, k = block["filters"], block["size"]
    Fp = _round_up(F_, LANE)
    if block["batch_normalize"]:
        # TODO(synk): eval-mode BatchNorm folding only (no batch statistics).
        scale = p["gamma"] / jnp.sqrt(p["var"] + EPS)
        bias = p["beta"] - p["mean"] * scale
    else:
        scale = jnp.ones((F_,), jnp.float32)
        bias = p["b"]
    # (F, C, k, k) -> (k, k, C, F) -> (k*k, C, F); fold scale; pad C and F.
    w = jnp.transpose(p["w"], (2, 3, 1, 0)).reshape(k * k, cin_valid, F_)
    w = w * scale[None, None, :]
    w = jnp.pad(w, ((0, 0), (0, cin_eff - cin_valid), (0, Fp - F_)))
    w = w.reshape(k * k * cin_eff, Fp).astype(jnp.bfloat16)
    return {"w": w, "b": jnp.pad(bias, (0, Fp - F_)).astype(jnp.float32),
            "f": F_, "fp": Fp, "cin_eff": cin_eff}


def _prep_connected(p, block, cin_valid, cin_eff):
    F_ = block["output"]
    Fp = _round_up(F_, LANE)
    w = jnp.pad(p["w"].T, ((0, cin_eff - cin_valid), (0, Fp - F_)))
    return {"w": w.astype(jnp.bfloat16),
            "b": jnp.pad(p["b"], (0, Fp - F_)).astype(jnp.float32),
            "f": F_, "fp": Fp, "cin_eff": cin_eff}


# ----------------------------------------------------------------------------
# Darknet (config-driven, synthetic in-script cfg / params)
# ----------------------------------------------------------------------------
# TODO(synk): cfg-file parsing (parse_cfg) and .weights I/O have no Pallas
# equivalent; a synthetic in-script block list and deterministic params are
# used instead.
BLOCKS = [
    {"type": "net", "channels": 4, "width": 16, "height": 16},
    {"type": "convolutional", "batch_normalize": 1, "filters": 8, "size": 3,
     "stride": 1, "pad": 1, "activation": "leaky"},                       # 0
    {"type": "maxpool", "size": 2, "stride": 2},                           # 1
    {"type": "convolutional", "batch_normalize": 1, "filters": 16, "size": 3,
     "stride": 1, "pad": 1, "activation": "leaky"},                       # 2
    {"type": "convolutional", "batch_normalize": 0, "filters": 16, "size": 1,
     "stride": 1, "pad": 0, "activation": "linear"},                      # 3
    {"type": "shortcut", "from": -2, "activation": "leaky"},               # 4
    {"type": "maxpool", "size": 2, "stride": 1},                           # 5
    {"type": "reorg", "stride": 2},                                        # 6
    {"type": "convolutional", "batch_normalize": 1, "filters": 16, "size": 1,
     "stride": 1, "pad": 0, "activation": "leaky"},                       # 7
    {"type": "upsample", "stride": 2},                                     # 8
    {"type": "route", "layers": "-1,4"},                                   # 9
    {"type": "convolutional", "batch_normalize": 1, "filters": 8, "size": 3,
     "stride": 1, "pad": 1, "activation": "leaky"},                       # 10
    {"type": "avgpool"},                                                   # 11
    {"type": "connected", "output": 10, "activation": "leaky"},            # 12
]


class DarknetPallas:
    def __init__(self, blocks, key):
        self.blocks = blocks
        self.width = int(blocks[0]["width"])
        self.height = int(blocks[0]["height"])
        self.models = []
        self.out_filters = []   # valid channels per layer
        self.out_stored = []    # stored (lane-padded) channels per layer
        prev_filters = int(blocks[0]["channels"])
        prev_stored = prev_filters
        keys = iter(jax.random.split(key, 4 * len(blocks)))

        for block in blocks[1:]:
            t = block["type"]
            if t == "convolutional":
                f, k, stride = block["filters"], block["size"], block["stride"]
                direct = (k > 1 and stride == 1)
                cin_eff = _round_up(prev_stored, LANE) if direct else prev_stored
                kk = jax.random.split(next(keys), 5)
                p = {"w": 0.1 * jax.random.normal(kk[0], (f, prev_filters, k, k),
                                                  jnp.float32)}
                if block["batch_normalize"]:
                    p["gamma"] = 1.0 + 0.1 * jax.random.normal(kk[1], (f,), jnp.float32)
                    p["beta"] = 0.1 * jax.random.normal(kk[2], (f,), jnp.float32)
                    p["mean"] = 0.1 * jax.random.normal(kk[3], (f,), jnp.float32)
                    p["var"] = 0.5 + 0.5 * jax.random.uniform(kk[4], (f,), jnp.float32)
                else:
                    p["b"] = 0.1 * jax.random.normal(kk[1], (f,), jnp.float32)
                self.models.append(_prep_conv(p, block, prev_filters, cin_eff))
                prev_filters = f
                prev_stored = _round_up(f, LANE)
            elif t == "connected":
                f = block["output"]
                kk = jax.random.split(next(keys), 2)
                p = {"w": 0.1 * jax.random.normal(kk[0], (f, prev_filters), jnp.float32),
                     "b": 0.1 * jax.random.normal(kk[1], (f,), jnp.float32)}
                self.models.append(_prep_connected(p, block, prev_filters, prev_stored))
                prev_filters = f
                prev_stored = _round_up(f, LANE)
            elif t == "reorg":
                prev_filters = prev_filters * block["stride"] ** 2
                prev_stored = prev_filters
                self.models.append(None)
            elif t == "route":
                ind = len(self.models)
                layers = [int(i) if int(i) > 0 else int(i) + ind
                          for i in block["layers"].split(",")]
                if len(layers) == 1:
                    prev_filters = self.out_filters[layers[0]]
                    prev_stored = self.out_stored[layers[0]]
                else:
                    prev_filters = (self.out_filters[layers[0]]
                                    + self.out_filters[layers[1]])
                    prev_stored = _round_up(prev_filters, LANE)
                self.models.append(None)
            elif t == "shortcut":
                ind = len(self.models)
                frm = int(block["from"])
                frm = frm if frm > 0 else frm + ind
                prev_filters = self.out_filters[ind - 1]
                if self.out_stored[frm] == self.out_stored[ind - 1]:
                    prev_stored = self.out_stored[ind - 1]
                else:
                    prev_stored = prev_filters
                self.models.append(None)
            elif t in ("maxpool", "upsample", "avgpool"):
                self.models.append(None)
            else:
                raise ValueError("unknown type %s" % t)
            self.out_filters.append(prev_filters)
            self.out_stored.append(prev_stored)

        # Whole forward under one jit (no per-layer dispatch; params baked in).
        self._forward_jit = jax.jit(self._forward)

    def _forward(self, x_nchw):
        x = jnp.transpose(x_nchw, (0, 2, 3, 1))  # NCHW -> NHWC once at entry
        ind = -2
        outputs = {}
        for block in self.blocks:
            ind += 1
            t = block["type"]
            if t == "net":
                continue
            if t == "convolutional":
                x = conv_forward_nhwc(x, self.models[ind], block)
            elif t == "maxpool":
                x = maxpool_forward_nhwc(x, block)
            elif t == "reorg":
                fv = self.out_filters[ind - 1]
                xin = x[..., :fv] if x.shape[-1] != fv else x
                x = reorg_forward_nhwc(xin, block["stride"])
            elif t == "upsample":
                x = upsample_forward_nhwc(x, block["stride"])
            elif t == "avgpool":
                x = global_avg_pool_nhwc(x)
            elif t == "connected":
                x = connected_forward(x, self.models[ind], block)
            elif t == "route":
                layers = [int(i) if int(i) > 0 else int(i) + ind
                          for i in block["layers"].split(",")]
                if len(layers) == 1:
                    x = outputs[layers[0]]
                else:
                    f1 = self.out_filters[layers[0]]
                    f2 = self.out_filters[layers[1]]
                    x1 = outputs[layers[0]][..., :f1]
                    x2 = outputs[layers[1]][..., :f2]
                    f = f1 + f2
                    cp = _round_up(f, LANE)
                    parts = [x1, x2]
                    if cp > f:  # keep the concat output lane-padded for the consumer
                        parts.append(jnp.zeros(x1.shape[:-1] + (cp - f,), x1.dtype))
                    x = jnp.concatenate(parts, axis=-1)
            elif t == "shortcut":
                frm = int(block["from"])
                frm = frm if frm > 0 else frm + ind
                x1, x2 = outputs[frm], outputs[ind - 1]
                if x1.shape[-1] != x2.shape[-1]:
                    fv = self.out_filters[ind]
                    x1, x2 = x1[..., :fv], x2[..., :fv]
                x = elementwise_add_act(x1, x2, block["activation"])
            else:
                print("unknown type %s" % t)
            outputs[ind] = x
        # Slice the pad lanes off only for the returned tensors; intermediates
        # stay NHWC (convert outside the jit on demand, see outputs_to_nchw).
        ret = {i: (v[..., :self.out_filters[i]]
                   if v.shape[-1] != self.out_filters[i] else v)
               for i, v in outputs.items()}
        return ret[ind], ret

    def forward(self, x):
        return self._forward_jit(x)

    @staticmethod
    def outputs_to_nchw(outputs):
        # TODO(synk): PyTorch returns NCHW intermediates; transposes are kept
        # out of the jitted forward (pure interface overhead) and done lazily.
        return {i: (jnp.transpose(v, (0, 3, 1, 2)) if v.ndim == 4 else v)
                for i, v in outputs.items()}


if __name__ == "__main__":
    key = jax.random.PRNGKey(0)
    k_param, k_input = jax.random.split(key)
    net = DarknetPallas(BLOCKS, k_param)
    x = jax.random.normal(k_input, (2, 4, 16, 16), jnp.float32)
    out, outputs = net.forward(x)
    jax.block_until_ready(out)
    assert out.shape == (2, 10)
    assert bool(jnp.all(jnp.isfinite(out)))
    print("KERNEL_OK")
</pallas_src>

<mosaic_0001>
module attributes {stable_mosaic.version = 11 : i64} {
  func.func @_conv_kxk_kernel(%arg0: i32, %arg1: memref<1x18x18x128xf32, #tpu.memory_space<vmem>>, %arg2: memref<1152x128xbf16, #tpu.memory_space<vmem>>, %arg3: memref<1x128xf32, #tpu.memory_space<vmem>>, %arg4: memref<1x256x128xf32, #tpu.memory_space<vmem>>) attributes {dimension_semantics = [#tpu.dimension_semantics<parallel>], iteration_bounds = array<i64: 2>, scalar_prefetch = 0 : i64, scratch_operands = 0 : i64, tpu.core_type = #tpu.core_type<tc>, window_params = [{transform_indices = @transform_0, window_bounds = array<i64: 1, 18, 18, 128>}, {pipeline_mode = #tpu.pipeline_mode<synchronous>, transform_indices = @transform_1, window_bounds = array<i64: 1152, 128>}, {pipeline_mode = #tpu.pipeline_mode<synchronous>, transform_indices = @transform_2, window_bounds = array<i64: 1, 128>}, {transform_indices = @transform_3, window_bounds = array<i64: 1, 256, 128>}]} {
    %c0 = arith.constant 0 : index
    %c0_0 = arith.constant 0 : index
    %c0_1 = arith.constant 0 : index
    %c0_2 = arith.constant 0 : index
    %0 = vector.load %arg1[%c0, %c0_0, %c0_1, %c0_2] : memref<1x18x18x128xf32, #tpu.memory_space<vmem>>, vector<1x18x18x128xf32>
    %1 = vector.shape_cast %0 : vector<1x18x18x128xf32> to vector<18x18x128xf32>
    %2 = arith.truncf %1 : vector<18x18x128xf32> to vector<18x18x128xbf16>
    %3 = vector.extract_strided_slice %2 {offsets = [0, 0, 0], sizes = [18, 16, 128], strides = [1, 1, 1]} : vector<18x18x128xbf16> to vector<18x16x128xbf16>
    %4 = vector.shape_cast %3 : vector<18x16x128xbf16> to vector<288x128xbf16>
    %5 = vector.extract_strided_slice %2 {offsets = [0, 1, 0], sizes = [18, 16, 128], strides = [1, 1, 1]} : vector<18x18x128xbf16> to vector<18x16x128xbf16>
    %6 = vector.shape_cast %5 : vector<18x16x128xbf16> to vector<288x128xbf16>
    %7 = vector.extract_strided_slice %2 {offsets = [0, 2, 0], sizes = [18, 16, 128], strides = [1, 1, 1]} : vector<18x18x128xbf16> to vector<18x16x128xbf16>
    %8 = vector.shape_cast %7 : vector<18x16x128xbf16> to vector<288x128xbf16>
    %9 = vector.extract_strided_slice %4 {offsets = [0, 0], sizes = [256, 128], strides = [1, 1]} : vector<288x128xbf16> to vector<256x128xbf16>
    %10 = vector.extract_strided_slice %6 {offsets = [0, 0], sizes = [256, 128], strides = [1, 1]} : vector<288x128xbf16> to vector<256x128xbf16>
    %11 = vector.extract_strided_slice %8 {offsets = [0, 0], sizes = [256, 128], strides = [1, 1]} : vector<288x128xbf16> to vector<256x128xbf16>
    %12 = vector.extract_strided_slice %4 {offsets = [16, 0], sizes = [256, 128], strides = [1, 1]} : vector<288x128xbf16> to vector<256x128xbf16>
    %13 = vector.extract_strided_slice %6 {offsets = [16, 0], sizes = [256, 128], strides = [1, 1]} : vector<288x128xbf16> to vector<256x128xbf16>
    %14 = vector.extract_strided_slice %8 {offsets = [16, 0], sizes = [256, 128], strides = [1, 1]} : vector<288x128xbf16> to vector<256x128xbf16>
    %15 = vector.extract_strided_slice %4 {offsets = [32, 0], sizes = [256, 128], strides = [1, 1]} : vector<288x128xbf16> to vector<256x128xbf16>
    %16 = vector.extract_strided_slice %6 {offsets = [32, 0], sizes = [256, 128], strides = [1, 1]} : vector<288x128xbf16> to vector<256x128xbf16>
    %17 = vector.extract_strided_slice %8 {offsets = [32, 0], sizes = [256, 128], strides = [1, 1]} : vector<288x128xbf16> to vector<256x128xbf16>
    %18 = tpu.concatenate %9, %10, %11, %12, %13, %14, %15, %16, %17 in 1 : vector<256x128xbf16>, vector<256x128xbf16>, vector<256x128xbf16>, vector<256x128xbf16>, vector<256x128xbf16>, vector<256x128xbf16>, vector<256x128xbf16>, vector<256x128xbf16>, vector<256x128xbf16> -> vector<256x1152xbf16>
    %c0_3 = arith.constant 0 : index
    %c0_4 = arith.constant 0 : index
    %19 = vector.load %arg2[%c0_3, %c0_4] : memref<1152x128xbf16, #tpu.memory_space<vmem>>, vector<1152x128xbf16>
    %cst = arith.constant dense<0.000000e+00> : vector<256x128xf32>
    %20 = tpu.matmul %18, %19, %cst {dimension_numbers = #tpu.dot_dimension_numbers<[1], [0], [0], [1], [0, 0, 1, 1], [], []>} : vector<256x1152xbf16>, vector<1152x128xbf16>, vector<256x128xf32> -> vector<256x128xf32>
    %c0_5 = arith.constant 0 : index
    %c0_6 = arith.constant 0 : index
    %21 = vector.load %arg3[%c0_5, %c0_6] : memref<1x128xf32, #tpu.memory_space<vmem>>, vector<1x128xf32>
    %22 = vector.broadcast %21 : vector<1x128xf32> to vector<256x128xf32>
    %23 = arith.addf %20, %22 : vector<256x128xf32>
    %cst_7 = arith.constant 0.000000e+00 : f32
    %24 = vector.broadcast %cst_7 : f32 to vector<256x128xf32>
    %25 = arith.cmpf ogt, %23, %24 : vector<256x128xf32>
    %cst_8 = arith.constant 1.000000e-01 : f32
    %26 = vector.broadcast %cst_8 : f32 to vector<256x128xf32>
    %27 = arith.mulf %26, %23 : vector<256x128xf32>
    %28 = arith.select %25, %23, %27 : vector<256x128xi1>, vector<256x128xf32>
    %c0_9 = arith.constant 0 : index
    %c0_10 = arith.constant 0 : index
    %c0_11 = arith.constant 0 : index
    %29 = vector.load %arg4[%c0_9, %c0_10, %c0_11] : memref<1x256x128xf32, #tpu.memory_space<vmem>>, vector<1x256x128xf32>
    %30 = vector.shape_cast %29 : vector<1x256x128xf32> to vector<256x128xf32>
    %31 = vector.shape_cast %28 : vector<256x128xf32> to vector<1x256x128xf32>
    tpu.vector_store %arg4[%c0_9, %c0_10, %c0_11], %31 {strides = array<i32>} : memref<1x256x128xf32, #tpu.memory_space<vmem>>, vector<1x256x128xf32>,
    return
  }
  func.func @transform_0(%arg0: i32) -> (i32, i32, i32, i32) {
    %c0_i32 = arith.constant 0 : i32
    %c0_i32_0 = arith.constant 0 : i32
    %c0_i32_1 = arith.constant 0 : i32
    %c0_i32_2 = arith.constant 0 : i32
    return %arg0, %c0_i32, %c0_i32_0, %c0_i32_1 : i32, i32, i32, i32
  }
  func.func @transform_1(%arg0: i32) -> (i32, i32) {
    %c0_i32 = arith.constant 0 : i32
    %c0_i32_0 = arith.constant 0 : i32
    %c0_i32_1 = arith.constant 0 : i32
    return %c0_i32, %c0_i32_0 : i32, i32
  }
  func.func @transform_2(%arg0: i32) -> (i32, i32) {
    %c0_i32 = arith.constant 0 : i32
    %c0_i32_0 = arith.constant 0 : i32
    %c0_i32_1 = arith.constant 0 : i32
    return %c0_i32, %c0_i32_0 : i32, i32
  }
  func.func @transform_3(%arg0: i32) -> (i32, i32, i32) {
    %c0_i32 = arith.constant 0 : i32
    %c0_i32_0 = arith.constant 0 : i32
    %c0_i32_1 = arith.constant 0 : i32
    return %arg0, %c0_i32, %c0_i32_0 : i32, i32, i32
  }
}

module attributes {stable_mosaic.version = 11 : i64} {
  func.func @_maxpool_s2_kernel(%arg0: i32, %arg1: memref<1x16x8x256xf32, #tpu.memory_space<vmem>>, %arg2: memref<1x8x8x128xf32, #tpu.memory_space<vmem>>) attributes {dimension_semantics = [#tpu.dimension_semantics<parallel>], iteration_bounds = array<i64: 2>, scalar_prefetch = 0 : i64, scratch_operands = 0 : i64, tpu.core_type = #tpu.core_type<tc>, window_params = [{transform_indices = @transform_0, window_bounds = array<i64: 1, 16, 8, 256>}, {transform_indices = @transform_1, window_bounds = array<i64: 1, 8, 8, 128>}]} {
    %c0 = arith.constant 0 : index
    %c0_0 = arith.constant 0 : index
    %c0_1 = arith.constant 0 : index
    %c0_2 = arith.constant 0 : index
    %0 = vector.load %arg1[%c0, %c0_0, %c0_1, %c0_2] : memref<1x16x8x256xf32, #tpu.memory_space<vmem>>, vector<1x16x8x256xf32>
    %1 = vector.shape_cast %0 : vector<1x16x8x256xf32> to vector<16x8x256xf32>
    %2 = vector.shape_cast %1 : vector<16x8x256xf32> to vector<8x2x8x256xf32>
    %cst = arith.constant dense<0xFF800000> : vector<8x8x256xf32>
    %3 = vector.multi_reduction <maximumf>, %2, %cst [1] : vector<8x2x8x256xf32> to vector<8x8x256xf32>
    %4 = vector.extract_strided_slice %3 {offsets = [0, 0, 0], sizes = [8, 8, 128], strides = [1, 1, 1]} : vector<8x8x256xf32> to vector<8x8x128xf32>
    %5 = vector.extract_strided_slice %3 {offsets = [0, 0, 128], sizes = [8, 8, 128], strides = [1, 1, 1]} : vector<8x8x256xf32> to vector<8x8x128xf32>
    %6 = arith.maximumf %4, %5 : vector<8x8x128xf32>
    %c0_3 = arith.constant 0 : index
    %c0_4 = arith.constant 0 : index
    %c0_5 = arith.constant 0 : index
    %c0_6 = arith.constant 0 : index
    %7 = vector.load %arg2[%c0_3, %c0_4, %c0_5, %c0_6] : memref<1x8x8x128xf32, #tpu.memory_space<vmem>>, vector<1x8x8x128xf32>
    %8 = vector.shape_cast %7 : vector<1x8x8x128xf32> to vector<8x8x128xf32>
    %9 = vector.shape_cast %6 : vector<8x8x128xf32> to vector<1x8x8x128xf32>
    tpu.vector_store %arg2[%c0_3, %c0_4, %c0_5, %c0_6], %9 {strides = array<i32>} : memref<1x8x8x128xf32, #tpu.memory_space<vmem>>, vector<1x8x8x128xf32>,
    return
  }
  func.func @transform_0(%arg0: i32) -> (i32, i32, i32, i32) {
    %c0_i32 = arith.constant 0 : i32
    %c0_i32_0 = arith.constant 0 : i32
    %c0_i32_1 = arith.constant 0 : i32
    %c0_i32_2 = arith.constant 0 : i32
    return %arg0, %c0_i32, %c0_i32_0, %c0_i32_1 : i32, i32, i32, i32
  }
  func.func @transform_1(%arg0: i32) -> (i32, i32, i32, i32) {
    %c0_i32 = arith.constant 0 : i32
    %c0_i32_0 = arith.constant 0 : i32
    %c0_i32_1 = arith.constant 0 : i32
    %c0_i32_2 = arith.constant 0 : i32
    return %arg0, %c0_i32, %c0_i32_0, %c0_i32_1 : i32, i32, i32, i32
  }
}

module attributes {stable_mosaic.version = 11 : i64} {
  func.func @_mm_bias_act_kernel(%arg0: i32, %arg1: i32, %arg2: i32, %arg3: memref<64x128xf32, #tpu.memory_space<vmem>>, %arg4: memref<128x128xbf16, #tpu.memory_space<vmem>>, %arg5: memref<1x128xf32, #tpu.memory_space<vmem>>, %arg6: memref<64x128xf32, #tpu.memory_space<vmem>>) attributes {dimension_semantics = [#tpu.dimension_semantics<parallel>, #tpu.dimension_semantics<parallel>, #tpu.dimension_semantics<arbitrary>], iteration_bounds = array<i64: 2, 1, 1>, scalar_prefetch = 0 : i64, scratch_operands = 0 : i64, tpu.core_type = #tpu.core_type<tc>, window_params = [{transform_indices = @transform_0, window_bounds = array<i64: 64, 128>}, {transform_indices = @transform_1, window_bounds = array<i64: 128, 128>}, {transform_indices = @transform_2, window_bounds = array<i64: 1, 128>}, {transform_indices = @transform_3, window_bounds = array<i64: 64, 128>}]} {
    %c0_i32 = arith.constant 0 : i32
    %0 = arith.cmpi eq, %arg2, %c0_i32 : i32
    %1 = arith.extui %0 : i1 to i32
    %c0_i32_0 = arith.constant 0 : i32
    %2 = arith.cmpi ne, %1, %c0_i32_0 : i32
    scf.if %2 {
      %cst_10 = arith.constant 0.000000e+00 : f32
      %13 = vector.broadcast %cst_10 : f32 to vector<64x128xf32>
      %c0_11 = arith.constant 0 : index
      %c0_12 = arith.constant 0 : index
      %14 = vector.load %arg6[%c0_11, %c0_12] : memref<64x128xf32, #tpu.memory_space<vmem>>, vector<64x128xf32>
      tpu.vector_store %arg6[%c0_11, %c0_12], %13 {strides = array<i32>} : memref<64x128xf32, #tpu.memory_space<vmem>>, vector<64x128xf32>,
    } else {
    }
    %c0 = arith.constant 0 : index
    %c0_1 = arith.constant 0 : index
    %3 = vector.load %arg6[%c0, %c0_1] : memref<64x128xf32, #tpu.memory_space<vmem>>, vector<64x128xf32>
    %c0_2 = arith.constant 0 : index
    %c0_3 = arith.constant 0 : index
    %4 = vector.load %arg3[%c0_2, %c0_3] : memref<64x128xf32, #tpu.memory_space<vmem>>, vector<64x128xf32>
    %5 = arith.truncf %4 : vector<64x128xf32> to vector<64x128xbf16>
    %c0_4 = arith.constant 0 : index
    %c0_5 = arith.constant 0 : index
    %6 = vector.load %arg4[%c0_4, %c0_5] : memref<128x128xbf16, #tpu.memory_space<vmem>>, vector<128x128xbf16>
    %cst = arith.constant dense<0.000000e+00> : vector<64x128xf32>
    %7 = tpu.matmul %5, %6, %cst {dimension_numbers = #tpu.dot_dimension_numbers<[1], [0], [0], [1], [0, 0, 1, 1], [], []>} : vector<64x128xbf16>, vector<128x128xbf16>, vector<64x128xf32> -> vector<64x128xf32>
    %8 = arith.addf %3, %7 : vector<64x128xf32>
    %c0_6 = arith.constant 0 : index
    %c0_7 = arith.constant 0 : index
    %9 = vector.load %arg6[%c0_6, %c0_7] : memref<64x128xf32, #tpu.memory_space<vmem>>, vector<64x128xf32>
    tpu.vector_store %arg6[%c0_6, %c0_7], %8 {strides = array<i32>} : memref<64x128xf32, #tpu.memory_space<vmem>>, vector<64x128xf32>,
    %c0_i32_8 = arith.constant 0 : i32
    %10 = arith.cmpi eq, %arg2, %c0_i32_8 : i32
    %11 = arith.extui %10 : i1 to i32
    %c0_i32_9 = arith.constant 0 : i32
    %12 = arith.cmpi ne, %11, %c0_i32_9 : i32
    scf.if %12 {
      %c0_10 = arith.constant 0 : index
      %c0_11 = arith.constant 0 : index
      %13 = vector.load %arg6[%c0_10, %c0_11] : memref<64x128xf32, #tpu.memory_space<vmem>>, vector<64x128xf32>
      %c0_12 = arith.constant 0 : index
      %c0_13 = arith.constant 0 : index
      %14 = vector.load %arg5[%c0_12, %c0_13] : memref<1x128xf32, #tpu.memory_space<vmem>>, vector<1x128xf32>
      %15 = vector.broadcast %14 : vector<1x128xf32> to vector<64x128xf32>
      %16 = arith.addf %13, %15 : vector<64x128xf32>
      %c0_14 = arith.constant 0 : index
      %c0_15 = arith.constant 0 : index
      %17 = vector.load %arg6[%c0_14, %c0_15] : memref<64x128xf32, #tpu.memory_space<vmem>>, vector<64x128xf32>
      tpu.vector_store %arg6[%c0_14, %c0_15], %16 {strides = array<i32>} : memref<64x128xf32, #tpu.memory_space<vmem>>, vector<64x128xf32>,
    } else {
    }
    return
  }
  func.func @transform_0(%arg0: i32, %arg1: i32, %arg2: i32) -> (i32, i32) {
    %c0_i32 = arith.constant 0 : i32
    return %arg0, %arg2 : i32, i32
  }
  func.func @transform_1(%arg0: i32, %arg1: i32, %arg2: i32) -> (i32, i32) {
    %c0_i32 = arith.constant 0 : i32
    return %arg2, %arg1 : i32, i32
  }
  func.func @transform_2(%arg0: i32, %arg1: i32, %arg2: i32) -> (i32, i32) {
    %c0_i32 = arith.constant 0 : i32
    %c0_i32_0 = arith.constant 0 : i32
    return %c0_i32, %arg1 : i32, i32
  }
  func.func @transform_3(%arg0: i32, %arg1: i32, %arg2: i32) -> (i32, i32) {
    %c0_i32 = arith.constant 0 : i32
    return %arg0, %arg1 : i32, i32
  }
}

module attributes {stable_mosaic.version = 11 : i64} {
  func.func @_conv_kxk_kernel(%arg0: i32, %arg1: memref<1x10x10x128xf32, #tpu.memory_space<vmem>>, %arg2: memref<1152x128xbf16, #tpu.memory_space<vmem>>, %arg3: memref<1x128xf32, #tpu.memory_space<vmem>>, %arg4: memref<1x64x128xf32, #tpu.memory_space<vmem>>) attributes {dimension_semantics = [#tpu.dimension_semantics<parallel>], iteration_bounds = array<i64: 2>, scalar_prefetch = 0 : i64, scratch_operands = 0 : i64, tpu.core_type = #tpu.core_type<tc>, window_params = [{transform_indices = @transform_0, window_bounds = array<i64: 1, 10, 10, 128>}, {pipeline_mode = #tpu.pipeline_mode<synchronous>, transform_indices = @transform_1, window_bounds = array<i64: 1152, 128>}, {pipeline_mode = #tpu.pipeline_mode<synchronous>, transform_indices = @transform_2, window_bounds = array<i64: 1, 128>}, {transform_indices = @transform_3, window_bounds = array<i64: 1, 64, 128>}]} {
    %c0 = arith.constant 0 : index
    %c0_0 = arith.constant 0 : index
    %c0_1 = arith.constant 0 : index
    %c0_2 = arith.constant 0 : index
    %0 = vector.load %arg1[%c0, %c0_0, %c0_1, %c0_2] : memref<1x10x10x128xf32, #tpu.memory_space<vmem>>, vector<1x10x10x128xf32>
    %1 = vector.shape_cast %0 : vector<1x10x10x128xf32> to vector<10x10x128xf32>
    %2 = arith.truncf %1 : vector<10x10x128xf32> to vector<10x10x128xbf16>
    %3 = vector.extract_strided_slice %2 {offsets = [0, 0, 0], sizes = [10, 8, 128], strides = [1, 1, 1]} : vector<10x10x128xbf16> to vector<10x8x128xbf16>
    %4 = vector.shape_cast %3 : vector<10x8x128xbf16> to vector<80x128xbf16>
    %5 = vector.extract_strided_slice %2 {offsets = [0, 1, 0], sizes = [10, 8, 128], strides = [1, 1, 1]} : vector<10x10x128xbf16> to vector<10x8x128xbf16>
    %6 = vector.shape_cast %5 : vector<10x8x128xbf16> to vector<80x128xbf16>
    %7 = vector.extract_strided_slice %2 {offsets = [0, 2, 0], sizes = [10, 8, 128], strides = [1, 1, 1]} : vector<10x10x128xbf16> to vector<10x8x128xbf16>
    %8 = vector.shape_cast %7 : vector<10x8x128xbf16> to vector<80x128xbf16>
    %9 = vector.extract_strided_slice %4 {offsets = [0, 0], sizes = [64, 128], strides = [1, 1]} : vector<80x128xbf16> to vector<64x128xbf16>
    %10 = vector.extract_strided_slice %6 {offsets = [0, 0], sizes = [64, 128], strides = [1, 1]} : vector<80x128xbf16> to vector<64x128xbf16>
    %11 = vector.extract_strided_slice %8 {offsets = [0, 0], sizes = [64, 128], strides = [1, 1]} : vector<80x128xbf16> to vector<64x128xbf16>
    %12 = vector.extract_strided_slice %4 {offsets = [8, 0], sizes = [64, 128], strides = [1, 1]} : vector<80x128xbf16> to vector<64x128xbf16>
    %13 = vector.extract_strided_slice %6 {offsets = [8, 0], sizes = [64, 128], strides = [1, 1]} : vector<80x128xbf16> to vector<64x128xbf16>
    %14 = vector.extract_strided_slice %8 {offsets = [8, 0], sizes = [64, 128], strides = [1, 1]} : vector<80x128xbf16> to vector<64x128xbf16>
    %15 = vector.extract_strided_slice %4 {offsets = [16, 0], sizes = [64, 128], strides = [1, 1]} : vector<80x128xbf16> to vector<64x128xbf16>
    %16 = vector.extract_strided_slice %6 {offsets = [16, 0], sizes = [64, 128], strides = [1, 1]} : vector<80x128xbf16> to vector<64x128xbf16>
    %17 = vector.extract_strided_slice %8 {offsets = [16, 0], sizes = [64, 128], strides = [1, 1]} : vector<80x128xbf16> to vector<64x128xbf16>
    %18 = tpu.concatenate %9, %10, %11, %12, %13, %14, %15, %16, %17 in 1 : vector<64x128xbf16>, vector<64x128xbf16>, vector<64x128xbf16>, vector<64x128xbf16>, vector<64x128xbf16>, vector<64x128xbf16>, vector<64x128xbf16>, vector<64x128xbf16>, vector<64x128xbf16> -> vector<64x1152xbf16>
    %c0_3 = arith.constant 0 : index
    %c0_4 = arith.constant 0 : index
    %19 = vector.load %arg2[%c0_3, %c0_4] : memref<1152x128xbf16, #tpu.memory_space<vmem>>, vector<1152x128xbf16>
    %cst = arith.constant dense<0.000000e+00> : vector<64x128xf32>
    %20 = tpu.matmul %18, %19, %cst {dimension_numbers = #tpu.dot_dimension_numbers<[1], [0], [0], [1], [0, 0, 1, 1], [], []>} : vector<64x1152xbf16>, vector<1152x128xbf16>, vector<64x128xf32> -> vector<64x128xf32>
    %c0_5 = arith.constant 0 : index
    %c0_6 = arith.constant 0 : index
    %21 = vector.load %arg3[%c0_5, %c0_6] : memref<1x128xf32, #tpu.memory_space<vmem>>, vector<1x128xf32>
    %22 = vector.broadcast %21 : vector<1x128xf32> to vector<64x128xf32>
    %23 = arith.addf %20, %22 : vector<64x128xf32>
    %cst_7 = arith.constant 0.000000e+00 : f32
    %24 = vector.broadcast %cst_7 : f32 to vector<64x128xf32>
    %25 = arith.cmpf ogt, %23, %24 : vector<64x128xf32>
    %cst_8 = arith.constant 1.000000e-01 : f32
    %26 = vector.broadcast %cst_8 : f32 to vector<64x128xf32>
    %27 = arith.mulf %26, %23 : vector<64x128xf32>
    %28 = arith.select %25, %23, %27 : vector<64x128xi1>, vector<64x128xf32>
    %c0_9 = arith.constant 0 : index
    %c0_10 = arith.constant 0 : index
    %c0_11 = arith.constant 0 : index
    %29 = vector.load %arg4[%c0_9, %c0_10, %c0_11] : memref<1x64x128xf32, #tpu.memory_space<vmem>>, vector<1x64x128xf32>
    %30 = vector.shape_cast %29 : vector<1x64x128xf32> to vector<64x128xf32>
    %31 = vector.shape_cast %28 : vector<64x128xf32> to vector<1x64x128xf32>
    tpu.vector_store %arg4[%c0_9, %c0_10, %c0_11], %31 {strides = array<i32>} : memref<1x64x128xf32, #tpu.memory_space<vmem>>, vector<1x64x128xf32>,
    return
  }
  func.func @transform_0(%arg0: i32) -> (i32, i32, i32, i32) {
    %c0_i32 = arith.constant 0 : i32
    %c0_i32_0 = arith.constant 0 : i32
    %c0_i32_1 = arith.constant 0 : i32
    %c0_i32_2 = arith.constant 0 : i32
    return %arg0, %c0_i32, %c0_i32_0, %c0_i32_1 : i32, i32, i32, i32
  }
  func.func @transform_1(%arg0: i32) -> (i32, i32) {
    %c0_i32 = arith.constant 0 : i32
    %c0_i32_0 = arith.constant 0 : i32
    %c0_i32_1 = arith.constant 0 : i32
    return %c0_i32, %c0_i32_0 : i32, i32
  }
  func.func @transform_2(%arg0: i32) -> (i32, i32) {
    %c0_i32 = arith.constant 0 : i32
    %c0_i32_0 = arith.constant 0 : i32
    %c0_i32_1 = arith.constant 0 : i32
    return %c0_i32, %c0_i32_0 : i32, i32
  }
  func.func @transform_3(%arg0: i32) -> (i32, i32, i32) {
    %c0_i32 = arith.constant 0 : i32
    %c0_i32_0 = arith.constant 0 : i32
    %c0_i32_1 = arith.constant 0 : i32
    return %arg0, %c0_i32, %c0_i32_0 : i32, i32, i32
  }
}

module attributes {stable_mosaic.version = 11 : i64} {
  func.func @_add_act_kernel(%arg0: i32, %arg1: memref<64x128xf32, #tpu.memory_space<vmem>>, %arg2: memref<64x128xf32, #tpu.memory_space<vmem>>, %arg3: memref<64x128xf32, #tpu.memory_space<vmem>>) attributes {dimension_semantics = [#tpu.dimension_semantics<parallel>], iteration_bounds = array<i64: 2>, scalar_prefetch = 0 : i64, scratch_operands = 0 : i64, tpu.core_type = #tpu.core_type<tc>, window_params = [{transform_indices = @transform_0, window_bounds = array<i64: 64, 128>}, {transform_indices = @transform_1, window_bounds = array<i64: 64, 128>}, {transform_indices = @transform_2, window_bounds = array<i64: 64, 128>}]} {
    %c0 = arith.constant 0 : index
    %c0_0 = arith.constant 0 : index
    %0 = vector.load %arg1[%c0, %c0_0] : memref<64x128xf32, #tpu.memory_space<vmem>>, vector<64x128xf32>
    %c0_1 = arith.constant 0 : index
    %c0_2 = arith.constant 0 : index
    %1 = vector.load %arg2[%c0_1, %c0_2] : memref<64x128xf32, #tpu.memory_space<vmem>>, vector<64x128xf32>
    %2 = arith.addf %0, %1 : vector<64x128xf32>
    %cst = arith.constant 0.000000e+00 : f32
    %3 = vector.broadcast %cst : f32 to vector<64x128xf32>
    %4 = arith.cmpf ogt, %2, %3 : vector<64x128xf32>
    %cst_3 = arith.constant 1.000000e-01 : f32
    %5 = vector.broadcast %cst_3 : f32 to vector<64x128xf32>
    %6 = arith.mulf %5, %2 : vector<64x128xf32>
    %7 = arith.select %4, %2, %6 : vector<64x128xi1>, vector<64x128xf32>
    %c0_4 = arith.constant 0 : index
    %c0_5 = arith.constant 0 : index
    %8 = vector.load %arg3[%c0_4, %c0_5] : memref<64x128xf32, #tpu.memory_space<vmem>>, vector<64x128xf32>
    tpu.vector_store %arg3[%c0_4, %c0_5], %7 {strides = array<i32>} : memref<64x128xf32, #tpu.memory_space<vmem>>, vector<64x128xf32>,
    return
  }
  func.func @transform_0(%arg0: i32) -> (i32, i32) {
    %c0_i32 = arith.constant 0 : i32
    %c0_i32_0 = arith.constant 0 : i32
    return %arg0, %c0_i32 : i32, i32
  }
  func.func @transform_1(%arg0: i32) -> (i32, i32) {
    %c0_i32 = arith.constant 0 : i32
    %c0_i32_0 = arith.constant 0 : i32
    return %arg0, %c0_i32 : i32, i32
  }
  func.func @transform_2(%arg0: i32) -> (i32, i32) {
    %c0_i32 = arith.constant 0 : i32
    %c0_i32_0 = arith.constant 0 : i32
    return %arg0, %c0_i32 : i32, i32
  }
}

module attributes {stable_mosaic.version = 11 : i64} {
  func.func @_maxpool_s1_kernel(%arg0: i32, %arg1: memref<1x9x9x128xf32, #tpu.memory_space<vmem>>, %arg2: memref<1x8x8x128xf32, #tpu.memory_space<vmem>>) attributes {dimension_semantics = [#tpu.dimension_semantics<parallel>], iteration_bounds = array<i64: 2>, scalar_prefetch = 0 : i64, scratch_operands = 0 : i64, tpu.core_type = #tpu.core_type<tc>, window_params = [{transform_indices = @transform_0, window_bounds = array<i64: 1, 9, 9, 128>}, {transform_indices = @transform_1, window_bounds = array<i64: 1, 8, 8, 128>}]} {
    %c0 = arith.constant 0 : index
    %c0_0 = arith.constant 0 : index
    %c0_1 = arith.constant 0 : index
    %c0_2 = arith.constant 0 : index
    %0 = vector.load %arg1[%c0, %c0_0, %c0_1, %c0_2] : memref<1x9x9x128xf32, #tpu.memory_space<vmem>>, vector<1x9x9x128xf32>
    %1 = vector.shape_cast %0 : vector<1x9x9x128xf32> to vector<9x9x128xf32>
    %2 = vector.extract_strided_slice %1 {offsets = [0, 0, 0], sizes = [8, 8, 128], strides = [1, 1, 1]} : vector<9x9x128xf32> to vector<8x8x128xf32>
    %3 = vector.extract_strided_slice %1 {offsets = [1, 0, 0], sizes = [8, 8, 128], strides = [1, 1, 1]} : vector<9x9x128xf32> to vector<8x8x128xf32>
    %4 = arith.maximumf %2, %3 : vector<8x8x128xf32>
    %5 = vector.extract_strided_slice %1 {offsets = [0, 1, 0], sizes = [8, 8, 128], strides = [1, 1, 1]} : vector<9x9x128xf32> to vector<8x8x128xf32>
    %6 = vector.extract_strided_slice %1 {offsets = [1, 1, 0], sizes = [8, 8, 128], strides = [1, 1, 1]} : vector<9x9x128xf32> to vector<8x8x128xf32>
    %7 = arith.maximumf %5, %6 : vector<8x8x128xf32>
    %8 = arith.maximumf %4, %7 : vector<8x8x128xf32>
    %c0_3 = arith.constant 0 : index
    %c0_4 = arith.constant 0 : index
    %c0_5 = arith.constant 0 : index
    %c0_6 = arith.constant 0 : index
    %9 = vector.load %arg2[%c0_3, %c0_4, %c0_5, %c0_6] : memref<1x8x8x128xf32, #tpu.memory_space<vmem>>, vector<1x8x8x128xf32>
    %10 = vector.shape_cast %9 : vector<1x8x8x128xf32> to vector<8x8x128xf32>
    %11 = vector.shape_cast %8 : vector<8x8x128xf32> to vector<1x8x8x128xf32>
    tpu.vector_store %arg2[%c0_3, %c0_4, %c0_5, %c0_6], %11 {strides = array<i32>} : memref<1x8x8x128xf32, #tpu.memory_space<vmem>>, vector<1x8x8x128xf32>,
    return
  }
  func.func @transform_0(%arg0: i32) -> (i32, i32, i32, i32) {
    %c0_i32 = arith.constant 0 : i32
    %c0_i32_0 = arith.constant 0 : i32
    %c0_i32_1 = arith.constant 0 : i32
    %c0_i32_2 = arith.constant 0 : i32
    return %arg0, %c0_i32, %c0_i32_0, %c0_i32_1 : i32, i32, i32, i32
  }
  func.func @transform_1(%arg0: i32) -> (i32, i32, i32, i32) {
    %c0_i32 = arith.constant 0 : i32
    %c0_i32_0 = arith.constant 0 : i32
    %c0_i32_1 = arith.constant 0 : i32
    %c0_i32_2 = arith.constant 0 : i32
    return %arg0, %c0_i32, %c0_i32_0, %c0_i32_1 : i32, i32, i32, i32
  }
}

module attributes {stable_mosaic.version = 11 : i64} {
  func.func @_gap_kernel(%arg0: i32, %arg1: memref<1x64x128xf32, #tpu.memory_space<vmem>>, %arg2: memref<1x1x128xf32, #tpu.memory_space<vmem>>) attributes {dimension_semantics = [#tpu.dimension_semantics<parallel>], iteration_bounds = array<i64: 2>, scalar_prefetch = 0 : i64, scratch_operands = 0 : i64, tpu.core_type = #tpu.core_type<tc>, window_params = [{transform_indices = @transform_0, window_bounds = array<i64: 1, 64, 128>}, {transform_indices = @transform_1, window_bounds = array<i64: 1, 1, 128>}]} {
    %c0 = arith.constant 0 : index
    %c0_0 = arith.constant 0 : index
    %c0_1 = arith.constant 0 : index
    %0 = vector.load %arg1[%c0, %c0_0, %c0_1] : memref<1x64x128xf32, #tpu.memory_space<vmem>>, vector<1x64x128xf32>
    %1 = vector.shape_cast %0 : vector<1x64x128xf32> to vector<64x128xf32>
    %cst = arith.constant dense<0.000000e+00> : vector<128xf32>
    %2 = vector.multi_reduction <add>, %1, %cst [0] : vector<64x128xf32> to vector<128xf32>
    %3 = vector.shape_cast %2 : vector<128xf32> to vector<1x128xf32>
    %cst_2 = arith.constant 6.400000e+01 : f32
    %4 = vector.broadcast %cst_2 : f32 to vector<1x128xf32>
    %5 = arith.divf %3, %4 : vector<1x128xf32>
    %c0_3 = arith.constant 0 : index
    %c0_4 = arith.constant 0 : index
    %c0_5 = arith.constant 0 : index
    %6 = vector.load %arg2[%c0_3, %c0_4, %c0_5] : memref<1x1x128xf32, #tpu.memory_space<vmem>>, vector<1x1x128xf32>
    %7 = vector.shape_cast %6 : vector<1x1x128xf32> to vector<1x128xf32>
    %8 = vector.shape_cast %5 : vector<1x128xf32> to vector<1x1x128xf32>
    tpu.vector_store %arg2[%c0_3, %c0_4, %c0_5], %8 {strides = array<i32>} : memref<1x1x128xf32, #tpu.memory_space<vmem>>, vector<1x1x128xf32>,
    return
  }
  func.func @transform_0(%arg0: i32) -> (i32, i32, i32) {
    %c0_i32 = arith.constant 0 : i32
    %c0_i32_0 = arith.constant 0 : i32
    %c0_i32_1 = arith.constant 0 : i32
    return %arg0, %c0_i32, %c0_i32_0 : i32, i32, i32
  }
  func.func @transform_1(%arg0: i32) -> (i32, i32, i32) {
    %c0_i32 = arith.constant 0 : i32
    %c0_i32_0 = arith.constant 0 : i32
    %c0_i32_1 = arith.constant 0 : i32
    return %arg0, %c0_i32, %c0_i32_0 : i32, i32, i32
  }
}

module attributes {stable_mosaic.version = 11 : i64} {
  func.func @_mm_bias_act_kernel(%arg0: i32, %arg1: i32, %arg2: i32, %arg3: memref<16x64xf32, #tpu.memory_space<vmem>>, %arg4: memref<64x128xbf16, #tpu.memory_space<vmem>>, %arg5: memref<1x128xf32, #tpu.memory_space<vmem>>, %arg6: memref<16x128xf32, #tpu.memory_space<vmem>>) attributes {dimension_semantics = [#tpu.dimension_semantics<parallel>, #tpu.dimension_semantics<parallel>, #tpu.dimension_semantics<arbitrary>], iteration_bounds = array<i64: 2, 1, 1>, scalar_prefetch = 0 : i64, scratch_operands = 0 : i64, tpu.core_type = #tpu.core_type<tc>, window_params = [{transform_indices = @transform_0, window_bounds = array<i64: 16, 64>}, {transform_indices = @transform_1, window_bounds = array<i64: 64, 128>}, {transform_indices = @transform_2, window_bounds = array<i64: 1, 128>}, {transform_indices = @transform_3, window_bounds = array<i64: 16, 128>}]} {
    %c0_i32 = arith.constant 0 : i32
    %0 = arith.cmpi eq, %arg2, %c0_i32 : i32
    %1 = arith.extui %0 : i1 to i32
    %c0_i32_0 = arith.constant 0 : i32
    %2 = arith.cmpi ne, %1, %c0_i32_0 : i32
    scf.if %2 {
      %cst_10 = arith.constant 0.000000e+00 : f32
      %13 = vector.broadcast %cst_10 : f32 to vector<16x128xf32>
      %c0_11 = arith.constant 0 : index
      %c0_12 = arith.constant 0 : index
      %14 = vector.load %arg6[%c0_11, %c0_12] : memref<16x128xf32, #tpu.memory_space<vmem>>, vector<16x128xf32>
      tpu.vector_store %arg6[%c0_11, %c0_12], %13 {strides = array<i32>} : memref<16x128xf32, #tpu.memory_space<vmem>>, vector<16x128xf32>,
    } else {
    }
    %c0 = arith.constant 0 : index
    %c0_1 = arith.constant 0 : index
    %3 = vector.load %arg6[%c0, %c0_1] : memref<16x128xf32, #tpu.memory_space<vmem>>, vector<16x128xf32>
    %c0_2 = arith.constant 0 : index
    %c0_3 = arith.constant 0 : index
    %4 = vector.load %arg3[%c0_2, %c0_3] : memref<16x64xf32, #tpu.memory_space<vmem>>, vector<16x64xf32>
    %5 = arith.truncf %4 : vector<16x64xf32> to vector<16x64xbf16>
    %c0_4 = arith.constant 0 : index
    %c0_5 = arith.constant 0 : index
    %6 = vector.load %arg4[%c0_4, %c0_5] : memref<64x128xbf16, #tpu.memory_space<vmem>>, vector<64x128xbf16>
    %cst = arith.constant dense<0.000000e+00> : vector<16x128xf32>
    %7 = tpu.matmul %5, %6, %cst {dimension_numbers = #tpu.dot_dimension_numbers<[1], [0], [0], [1], [0, 0, 1, 1], [], []>} : vector<16x64xbf16>, vector<64x128xbf16>, vector<16x128xf32> -> vector<16x128xf32>
    %8 = arith.addf %3, %7 : vector<16x128xf32>
    %c0_6 = arith.constant 0 : index
    %c0_7 = arith.constant 0 : index
    %9 = vector.load %arg6[%c0_6, %c0_7] : memref<16x128xf32, #tpu.memory_space<vmem>>, vector<16x128xf32>
    tpu.vector_store %arg6[%c0_6, %c0_7], %8 {strides = array<i32>} : memref<16x128xf32, #tpu.memory_space<vmem>>, vector<16x128xf32>,
    %c0_i32_8 = arith.constant 0 : i32
    %10 = arith.cmpi eq, %arg2, %c0_i32_8 : i32
    %11 = arith.extui %10 : i1 to i32
    %c0_i32_9 = arith.constant 0 : i32
    %12 = arith.cmpi ne, %11, %c0_i32_9 : i32
    scf.if %12 {
      %c0_10 = arith.constant 0 : index
      %c0_11 = arith.constant 0 : index
      %13 = vector.load %arg6[%c0_10, %c0_11] : memref<16x128xf32, #tpu.memory_space<vmem>>, vector<16x128xf32>
      %c0_12 = arith.constant 0 : index
      %c0_13 = arith.constant 0 : index
      %14 = vector.load %arg5[%c0_12, %c0_13] : memref<1x128xf32, #tpu.memory_space<vmem>>, vector<1x128xf32>
      %15 = vector.broadcast %14 : vector<1x128xf32> to vector<16x128xf32>
      %16 = arith.addf %13, %15 : vector<16x128xf32>
      %cst_14 = arith.constant 0.000000e+00 : f32
      %17 = vector.broadcast %cst_14 : f32 to vector<16x128xf32>
      %18 = arith.cmpf ogt, %16, %17 : vector<16x128xf32>
      %cst_15 = arith.constant 1.000000e-01 : f32
      %19 = vector.broadcast %cst_15 : f32 to vector<16x128xf32>
      %20 = arith.mulf %19, %16 : vector<16x128xf32>
      %21 = arith.select %18, %16, %20 : vector<16x128xi1>, vector<16x128xf32>
      %c0_16 = arith.constant 0 : index
      %c0_17 = arith.constant 0 : index
      %22 = vector.load %arg6[%c0_16, %c0_17] : memref<16x128xf32, #tpu.memory_space<vmem>>, vector<16x128xf32>
      tpu.vector_store %arg6[%c0_16, %c0_17], %21 {strides = array<i32>} : memref<16x128xf32, #tpu.memory_space<vmem>>, vector<16x128xf32>,
    } else {
    }
    return
  }
  func.func @transform_0(%arg0: i32, %arg1: i32, %arg2: i32) -> (i32, i32) {
    %c0_i32 = arith.constant 0 : i32
    return %arg0, %arg2 : i32, i32
  }
  func.func @transform_1(%arg0: i32, %arg1: i32, %arg2: i32) -> (i32, i32) {
    %c0_i32 = arith.constant 0 : i32
    return %arg2, %arg1 : i32, i32
  }
  func.func @transform_2(%arg0: i32, %arg1: i32, %arg2: i32) -> (i32, i32) {
    %c0_i32 = arith.constant 0 : i32
    %c0_i32_0 = arith.constant 0 : i32
    return %c0_i32, %arg1 : i32, i32
  }
  func.func @transform_3(%arg0: i32, %arg1: i32, %arg2: i32) -> (i32, i32) {
    %c0_i32 = arith.constant 0 : i32
    return %arg0, %arg1 : i32, i32
  }
}

module attributes {stable_mosaic.version = 11 : i64} {
  func.func @_mm_bias_act_kernel(%arg0: i32, %arg1: i32, %arg2: i32, %arg3: memref<2x128xf32, #tpu.memory_space<vmem>>, %arg4: memref<128x128xbf16, #tpu.memory_space<vmem>>, %arg5: memref<1x128xf32, #tpu.memory_space<vmem>>, %arg6: memref<2x128xf32, #tpu.memory_space<vmem>>) attributes {dimension_semantics = [#tpu.dimension_semantics<parallel>, #tpu.dimension_semantics<parallel>, #tpu.dimension_semantics<arbitrary>], iteration_bounds = array<i64: 1, 1, 1>, scalar_prefetch = 0 : i64, scratch_operands = 0 : i64, tpu.core_type = #tpu.core_type<tc>, window_params = [{transform_indices = @transform_0, window_bounds = array<i64: 2, 128>}, {transform_indices = @transform_1, window_bounds = array<i64: 128, 128>}, {transform_indices = @transform_2, window_bounds = array<i64: 1, 128>}, {transform_indices = @transform_3, window_bounds = array<i64: 2, 128>}]} {
    %c0_i32 = arith.constant 0 : i32
    %0 = arith.cmpi eq, %arg2, %c0_i32 : i32
    %1 = arith.extui %0 : i1 to i32
    %c0_i32_0 = arith.constant 0 : i32
    %2 = arith.cmpi ne, %1, %c0_i32_0 : i32
    scf.if %2 {
      %cst_10 = arith.constant 0.000000e+00 : f32
      %13 = vector.broadcast %cst_10 : f32 to vector<2x128xf32>
      %c0_11 = arith.constant 0 : index
      %c0_12 = arith.constant 0 : index
      %14 = vector.load %arg6[%c0_11, %c0_12] : memref<2x128xf32, #tpu.memory_space<vmem>>, vector<2x128xf32>
      tpu.vector_store %arg6[%c0_11, %c0_12], %13 {strides = array<i32>} : memref<2x128xf32, #tpu.memory_space<vmem>>, vector<2x128xf32>,
    } else {
    }
    %c0 = arith.constant 0 : index
    %c0_1 = arith.constant 0 : index
    %3 = vector.load %arg6[%c0, %c0_1] : memref<2x128xf32, #tpu.memory_space<vmem>>, vector<2x128xf32>
    %c0_2 = arith.constant 0 : index
    %c0_3 = arith.constant 0 : index
    %4 = vector.load %arg3[%c0_2, %c0_3] : memref<2x128xf32, #tpu.memory_space<vmem>>, vector<2x128xf32>
    %5 = arith.truncf %4 : vector<2x128xf32> to vector<2x128xbf16>
    %c0_4 = arith.constant 0 : index
    %c0_5 = arith.constant 0 : index
    %6 = vector.load %arg4[%c0_4, %c0_5] : memref<128x128xbf16, #tpu.memory_space<vmem>>, vector<128x128xbf16>
    %cst = arith.constant dense<0.000000e+00> : vector<2x128xf32>
    %7 = tpu.matmul %5, %6, %cst {dimension_numbers = #tpu.dot_dimension_numbers<[1], [0], [0], [1], [0, 0, 1, 1], [], []>} : vector<2x128xbf16>, vector<128x128xbf16>, vector<2x128xf32> -> vector<2x128xf32>
    %8 = arith.addf %3, %7 : vector<2x128xf32>
    %c0_6 = arith.constant 0 : index
    %c0_7 = arith.constant 0 : index
    %9 = vector.load %arg6[%c0_6, %c0_7] : memref<2x128xf32, #tpu.memory_space<vmem>>, vector<2x128xf32>
    tpu.vector_store %arg6[%c0_6, %c0_7], %8 {strides = array<i32>} : memref<2x128xf32, #tpu.memory_space<vmem>>, vector<2x128xf32>,
    %c0_i32_8 = arith.constant 0 : i32
    %10 = arith.cmpi eq, %arg2, %c0_i32_8 : i32
    %11 = arith.extui %10 : i1 to i32
    %c0_i32_9 = arith.constant 0 : i32
    %12 = arith.cmpi ne, %11, %c0_i32_9 : i32
    scf.if %12 {
      %c0_10 = arith.constant 0 : index
      %c0_11 = arith.constant 0 : index
      %13 = vector.load %arg6[%c0_10, %c0_11] : memref<2x128xf32, #tpu.memory_space<vmem>>, vector<2x128xf32>
      %c0_12 = arith.constant 0 : index
      %c0_13 = arith.constant 0 : index
      %14 = vector.load %arg5[%c0_12, %c0_13] : memref<1x128xf32, #tpu.memory_space<vmem>>, vector<1x128xf32>
      %15 = vector.broadcast %14 : vector<1x128xf32> to vector<2x128xf32>
      %16 = arith.addf %13, %15 : vector<2x128xf32>
      %cst_14 = arith.constant 0.000000e+00 : f32
      %17 = vector.broadcast %cst_14 : f32 to vector<2x128xf32>
      %18 = arith.cmpf ogt, %16, %17 : vector<2x128xf32>
      %cst_15 = arith.constant 1.000000e-01 : f32
      %19 = vector.broadcast %cst_15 : f32 to vector<2x128xf32>
      %20 = arith.mulf %19, %16 : vector<2x128xf32>
      %21 = arith.select %18, %16, %20 : vector<2x128xi1>, vector<2x128xf32>
      %c0_16 = arith.constant 0 : index
      %c0_17 = arith.constant 0 : index
      %22 = vector.load %arg6[%c0_16, %c0_17] : memref<2x128xf32, #tpu.memory_space<vmem>>, vector<2x128xf32>
      tpu.vector_store %arg6[%c0_16, %c0_17], %21 {strides = array<i32>} : memref<2x128xf32, #tpu.memory_space<vmem>>, vector<2x128xf32>,
    } else {
    }
    return
  }
  func.func @transform_0(%arg0: i32, %arg1: i32, %arg2: i32) -> (i32, i32) {
    %c0_i32 = arith.constant 0 : i32
    return %arg0, %arg2 : i32, i32
  }
  func.func @transform_1(%arg0: i32, %arg1: i32, %arg2: i32) -> (i32, i32) {
    %c0_i32 = arith.constant 0 : i32
    return %arg2, %arg1 : i32, i32
  }
  func.func @transform_2(%arg0: i32, %arg1: i32, %arg2: i32) -> (i32, i32) {
    %c0_i32 = arith.constant 0 : i32
    %c0_i32_0 = arith.constant 0 : i32
    return %c0_i32, %arg1 : i32, i32
  }
  func.func @transform_3(%arg0: i32, %arg1: i32, %arg2: i32) -> (i32, i32) {
    %c0_i32 = arith.constant 0 : i32
    return %arg0, %arg1 : i32, i32
  }
}

</mosaic_0001>

<llo_original>
// kernel: _forward.11
$region0: #{_forward.11}
  #allocation0 [shape = 'u32[]', space=smem, size = 0x4, offset = 0x4, fixed_abs, tag = 'smem constant byte address 0x4 - core index']
  #allocation1 [shape = 'u32[144,128]{1,0:T(1,128)}', space=vmem, size = 0x12000, scoped, tag = 'internal scratch']
  %s0 = inlined_call_operand.vmem [shape: f32[2,16,8,256], index: 0, kind: input, shape index: {}]
  %s1 = inlined_call_operand.vmem [shape: f32[2,8,8,128], index: 1, kind: output, shape index: {}]
  %s2 = sld [smem:[#allocation0]]
  $region37: #{_forward.11} parent=0
    _
  %s4 = ssub.s32 1, %s2
  %s5 = scalar_select 0, %s4, %s2
  loop: start=0, step=1, limit=4
  $region2: #{_forward.11} parent=0 // loop_pre_header
    _
  $region3: #{_forward.11} parent=0 // loop_header
    %s7 = sphi 0, %s11
    %p8 = scmp.ge.s32.totalorder %s7, 4
    %s17 = sphi 0, %s19
    %s20 = sphi 0, %s17
    %s21 = sphi 0, %s20
    %s37 = sphi 0, %s21
    %s43 = sphi 0, %s45
    %s46 = sphi 0, %s43
    %s47 = sphi 0, %s46
    %s63 = sphi 0, %s47
  $region4: #{_forward.11} parent=0 // loop_header_branch
    %10 = sbr.rel (%p8) target = $region8
  $region5: #{_forward.11} parent=0 // loop_body
    %s12 = ssub.s32 %s7, 1
    %s13 = ssub.s32 %s7, 2
    %s14 = sadd.s32 %s7, 1
    %s15 = ssub.s32 %s7, %s14
    %p16 = scmp.eq.s32.totalorder %s15, 0
    %s18 = sadd.s32 %s17, 1
    %s19 = scalar_select %p16, %s17, %s18
    %p22 = pneg %p16
    %p23 = scmp.eq.s32.totalorder %s7, 1
    %p24 = por %p22, %p23
    %p25 = scmp.ne.s32.totalorder %s17, %s20
    %p26 = scmp.eq.s32.totalorder %s7, 0
    %p27 = por %p25, %p26
    %p28 = scmp.ne.s32.totalorder %s17, %s20
    %p29 = scmp.eq.s32.totalorder %s12, 1
    %p30 = por %p28, %p29
    %p31 = scmp.ne.s32.totalorder %s20, %s21
    %p32 = scmp.eq.s32.totalorder %s12, 0
    %p33 = por %p31, %p32
    %p34 = scmp.ne.s32.totalorder %s20, %s21
    %p35 = scmp.eq.s32.totalorder %s13, 1
    %p36 = por %p34, %p35
    %p38 = scmp.ne.s32.totalorder %s21, %s37
    %p39 = scmp.eq.s32.totalorder %s13, 0
    %p40 = por %p38, %p39
    %s41 = ssub.s32 %s7, %s14
    %p42 = scmp.eq.s32.totalorder %s41, 0
    %s44 = sadd.s32 %s43, 1
    %s45 = scalar_select %p42, %s43, %s44
    %p48 = pneg %p42
    %p49 = scmp.eq.s32.totalorder %s7, 1
    %p50 = por %p48, %p49
    %p51 = scmp.ne.s32.totalorder %s43, %s46
    %p52 = scmp.eq.s32.totalorder %s7, 0
    %p53 = por %p51, %p52
    %p54 = scmp.ne.s32.totalorder %s43, %s46
    %p55 = scmp.eq.s32.totalorder %s12, 1
    %p56 = por %p54, %p55
    %p57 = scmp.ne.s32.totalorder %s46, %s47
    %p58 = scmp.eq.s32.totalorder %s12, 0
    %p59 = por %p57, %p58
    %p60 = scmp.ne.s32.totalorder %s46, %s47
    %p61 = scmp.eq.s32.totalorder %s13, 1
    %p62 = por %p60, %p61
    %p64 = scmp.ne.s32.totalorder %s47, %s63
    %p65 = scmp.eq.s32.totalorder %s13, 0
    %p66 = por %p64, %p65
    %p67 = scmp.le.s32.totalorder 1, %s7
    %p68 = scmp.lt.s32.totalorder %s7, 3
    %p69 = pnand %p67, %p68
    %p70 = pneg %p69
    // Predicated region
    $region9: #{_forward.11} parent=5 // pred_check
      _
    $region10: #{_forward.11} parent=5 // pred_check_branch
      %72 = sbr.rel (%p69) target = $region12
    $region11: #{_forward.11} parent=5 // pred_region
      %s73 = ssub.s32 %s7, 1
    $region12: #{_forward.11} parent=5 // pred_fallthru
      _
    %p74 = scmp.lt.s32.totalorder %s7, 2
    // Predicated region
    $region13: #{_forward.11} parent=5 // pred_check
      %p75 = pneg %p74
    $region14: #{_forward.11} parent=5 // pred_check_branch
      %77 = sbr.rel (%p75) target = $region16
    $region15: #{_forward.11} parent=5 // pred_region
      // Predicated region
      $region17: #{_forward.11} parent=15 // pred_check
        %p78 = pneg %p27
      $region18: #{_forward.11} parent=15 // pred_check_branch
        %80 = sbr.rel (%p78) target = $region20
      $region19: #{_forward.11} parent=15 // pred_region
        %p81 = scmp.lt.s32.totalorder %s7, 1
        %s82 = scalar_select %p81, %s7, 1
        %s83 = smul.addr %s82, 32
        %s84 = smul.addr %s83, 8
        %s85 = scalar_lea.vmem %s0, %s84
      $region20: #{_forward.11} parent=15 // pred_fallthru
        _
    $region16: #{_forward.11} parent=5 // pred_fallthru
      _
    %p86 = scmp.le.s32.totalorder 1, %s7
    %p87 = scmp.lt.s32.totalorder %s7, 3
    %p88 = pnand %p86, %p87
    %p89 = pneg %p88
    // Predicated region
    $region21: #{_forward.11} parent=5 // pred_check
      _
    $region22: #{_forward.11} parent=5 // pred_check_branch
      %91 = sbr.rel (%p88) target = $region24
    $region23: #{_forward.11} parent=5 // pred_region
      %s92 = ssub.s32 %s7, 1
      %p93 = scmp.lt.s32.totalorder %s12, 1
      %s94 = scalar_select %p93, %s12, 1
      %s95 = smul.addr %s94, 32
      %s96 = smul.addr %s95, 8
      %s97 = scalar_lea.vmem %s0, %s96
      %p98 = pneg %p33
      %p99 = pneg %p30
      %p100 = pneg %p59
      %p101 = pneg %p56
      %p102 = scmp.lt.s32.totalorder %s12, 1
      %s103 = scalar_select %p102, %s12, 1
      %s104 = smul.addr %s103, 8
      %s105 = smul.addr %s104, 8
      %s106 = scalar_lea.vmem %s1, %s105
      %p107 = scmp.lt.s32.totalorder %s12, 1
      %s108 = scalar_select %p107, %s12, 1
      %s109 = smul.addr %s108, 32
      %s110 = smul.addr %s109, 8
      %s111 = scalar_lea.vmem %s0, %s110
      %p112 = scmp.lt.s32.totalorder %s12, 1
      %s113 = scalar_select %p112, %s12, 1
      %s114 = smul.addr %s113, 8
      %s115 = smul.addr %s114, 8
      %s116 = scalar_lea.vmem %s1, %s115
      %v117 = vld [vmem:[%s111] sm:$0xff]
      %v118 = vld [vmem:[%s111 + $0x8] sm:$0xff]
      %v119 = vld [vmem:[%s111 + $0x10] sm:$0xff]
      %v120 = vld [vmem:[%s111 + $0x18] sm:$0xff]
      %v121 = vld [vmem:[%s111 + $0x20] sm:$0xff]
      %v122 = vld [vmem:[%s111 + $0x28] sm:$0xff]
      %v123 = vld [vmem:[%s111 + $0x30] sm:$0xff]
      %v124 = vld [vmem:[%s111 + $0x38] sm:$0xff]
      %v125 = vld [vmem:[%s111 + $0x40] sm:$0xff]
      %v126 = vld [vmem:[%s111 + $0x48] sm:$0xff]
      %v127 = vld [vmem:[%s111 + $0x50] sm:$0xff]
      %v128 = vld [vmem:[%s111 + $0x58] sm:$0xff]
      %v129 = vld [vmem:[%s111 + $0x60] sm:$0xff]
      %v130 = vld [vmem:[%s111 + $0x68] sm:$0xff]
      %v131 = vld [vmem:[%s111 + $0x70] sm:$0xff]
      %v132 = vld [vmem:[%s111 + $0x78] sm:$0xff]
      %v133 = vld [vmem:[%s111 + $0x80] sm:$0xff]
      %v134 = vld [vmem:[%s111 + $0x88] sm:$0xff]
      %v135 = vld [vmem:[%s111 + $0x90] sm:$0xff]
      %v136 = vld [vmem:[%s111 + $0x98] sm:$0xff]
      %v137 = vld [vmem:[%s111 + $0xa0] sm:$0xff]
      %v138 = vld [vmem:[%s111 + $0xa8] sm:$0xff]
      %v139 = vld [vmem:[%s111 + $0xb0] sm:$0xff]
      %v140 = vld [vmem:[%s111 + $0xb8] sm:$0xff]
      %v141 = vld [vmem:[%s111 + $0xc0] sm:$0xff]
      %v142 = vld [vmem:[%s111 + $0xc8] sm:$0xff]
      %v143 = vld [vmem:[%s111 + $0xd0] sm:$0xff]
      %v144 = vld [vmem:[%s111 + $0xd8] sm:$0xff]
      %v145 = vld [vmem:[%s111 + $0xe0] sm:$0xff]
      %v146 = vld [vmem:[%s111 + $0xe8] sm:$0xff]
      %v147 = vld [vmem:[%s111 + $0xf0] sm:$0xff]
      %v148 = vld [vmem:[%s111 + $0xf8] sm:$0xff]
      %v149 = vmax.f32 %v117, %v119
      %v150 = vmax.f32 %v118, %v120
      %v151 = vmax.f32 %v121, %v123
      %v152 = vmax.f32 %v122, %v124
      %v153 = vmax.f32 %v125, %v127
      %v154 = vmax.f32 %v126, %v128
      %v155 = vmax.f32 %v129, %v131
      %v156 = vmax.f32 %v130, %v132
      %v157 = vmax.f32 %v133, %v135
      %v158 = vmax.f32 %v134, %v136
      %v159 = vmax.f32 %v137, %v139
      %v160 = vmax.f32 %v138, %v140
      %v161 = vmax.f32 %v141, %v143
      %v162 = vmax.f32 %v142, %v144
      %v163 = vmax.f32 %v145, %v147
      %v164 = vmax.f32 %v146, %v148
      %v165 = vmax.f32 %v149, %v150
      %v166 = vmax.f32 %v151, %v152
      %v167 = vmax.f32 %v153, %v154
      %v168 = vmax.f32 %v155, %v156
      %v169 = vmax.f32 %v157, %v158
      %v170 = vmax.f32 %v159, %v160
      %v171 = vmax.f32 %v161, %v162
      %v172 = vmax.f32 %v163, %v164
      %173 = vst [vmem:[%s116] sm:$0xff] %v165
      %174 = vst [vmem:[%s116 + $0x8] sm:$0xff] %v166
      %175 = vst [vmem:[%s116 + $0x10] sm:$0xff] %v167
      %176 = vst [vmem:[%s116 + $0x18] sm:$0xff] %v168
      %177 = vst [vmem:[%s116 + $0x20] sm:$0xff] %v169
      %178 = vst [vmem:[%s116 + $0x28] sm:$0xff] %v170
      %179 = vst [vmem:[%s116 + $0x30] sm:$0xff] %v171
      %180 = vst [vmem:[%s116 + $0x38] sm:$0xff] %v172
      %p181 = scmp.lt.s32.totalorder %s12, 1
      %s182 = scalar_select %p181, %s12, 1
      %s183 = smul.addr %s182, 8
      %s184 = smul.addr %s183, 8
      %s185 = scalar_lea.vmem %s1, %s184
      // Predicated region
      $region25: #{_forward.11} parent=23 // pred_check
        %p186 = pneg %p56
      $region26: #{_forward.11} parent=23 // pred_check_branch
        %188 = sbr.rel (%p186) target = $region28
      $region27: #{_forward.11} parent=23 // pred_region
        _
      $region28: #{_forward.11} parent=23 // pred_fallthru
        _
    $region24: #{_forward.11} parent=5 // pred_fallthru
      _
    %p189 = scmp.le.s32.totalorder 2, %s7
    // Predicated region
    $region29: #{_forward.11} parent=5 // pred_check
      %p190 = pneg %p189
    $region30: #{_forward.11} parent=5 // pred_check_branch
      %192 = sbr.rel (%p190) target = $region32
    $region31: #{_forward.11} parent=5 // pred_region
      %s193 = ssub.s32 %s7, 2
      // Predicated region
      $region33: #{_forward.11} parent=31 // pred_check
        %p194 = pneg %p62
      $region34: #{_forward.11} parent=31 // pred_check_branch
        %196 = sbr.rel (%p194) target = $region36
      $region35: #{_forward.11} parent=31 // pred_region
        %p197 = scmp.lt.s32.totalorder %s13, 1
        %s198 = scalar_select %p197, %s13, 1
        %s199 = smul.addr %s198, 8
        %s200 = smul.addr %s199, 8
        %s201 = scalar_lea.vmem %s1, %s200
      $region36: #{_forward.11} parent=31 // pred_fallthru
        _
    $region32: #{_forward.11} parent=5 // pred_fallthru
      _
  $region6: #{_forward.11} parent=0 // loop_footer
    %s11 = sadd.s32 1, %s7
  $region7: #{_forward.11} parent=0 // loop_footer_branch
    %6 = sbr.rel target = $region3
  $region8: #{_forward.11} parent=0 // loop_exit
    _

// kernel: _forward.13
$region0: #{_forward.13}
  #allocation0 [shape = 'u32[]', space=smem, size = 0x4, offset = 0x4, fixed_abs, tag = 'smem constant byte address 0x4 - core index']
  #allocation1 [shape = 'u32[144,128]{1,0:T(1,128)}', space=vmem, size = 0x12000, scoped, tag = 'internal scratch']
  %s0 = inlined_call_operand.vmem [shape: f32[128,128], index: 0, kind: input, shape index: {}]
  %s1 = inlined_call_operand.vmem [shape: bf16[128,128], index: 1, kind: input, shape index: {}]
  %s2 = inlined_call_operand.vmem [shape: f32[1,128], index: 2, kind: input, shape index: {}]
  %s3 = inlined_call_operand.vmem [shape: f32[128,128], index: 3, kind: output, shape index: {}]
  %s4 = sld [smem:[#allocation0]]
  $region53: #{_forward.13} parent=0
    _
  %s6 = ssub.s32 1, %s4
  %s7 = scalar_select 0, %s6, %s4
  loop: start=0, step=1, limit=4
  $region2: #{_forward.13} parent=0 // loop_pre_header
    _
  $region3: #{_forward.13} parent=0 // loop_header
    %s9 = sphi 0, %s13
    %p10 = scmp.ge.s32.totalorder %s9, 4
    %s16 = sphi 0, %s35
    %s17 = sphi 0, %s31
    %s18 = sphi 0, %s27
    %s19 = sphi 0, %s16
    %s20 = sphi 0, %s17
    %s21 = sphi 0, %s18
    %s22 = sphi 0, %s19
    %s23 = sphi 0, %s20
    %s24 = sphi 0, %s21
    %s40 = sphi 0, %s42
    %s43 = sphi 0, %s40
    %s44 = sphi 0, %s43
    %s60 = sphi 0, %s44
    %s68 = sphi 0, %s70
    %s71 = sphi 0, %s68
    %s72 = sphi 0, %s71
    %s88 = sphi 0, %s72
    %s94 = sphi 0, %s96
    %s97 = sphi 0, %s94
    %s98 = sphi 0, %s97
    %s114 = sphi 0, %s98
    %s122 = sphi 0, %s124
    %s125 = sphi 0, %s122
    %s126 = sphi 0, %s125
    %s142 = sphi 0, %s126
  $region4: #{_forward.13} parent=0 // loop_header_branch
    %12 = sbr.rel (%p10) target = $region8
  $region5: #{_forward.13} parent=0 // loop_body
    %s14 = ssub.s32 %s9, 1
    %s15 = ssub.s32 %s9, 2
    %s25 = sadd.s32 1, %s18
    %p26 = scmp.ge.s32.totalorder %s25, 1
    %s27 = scalar_select %p26, 0, %s25
    %s28 = sadd.s32 1, %s17
    %s29 = scalar_select %p26, %s28, %s17
    %p30 = scmp.ge.s32.totalorder %s29, 1
    %s31 = scalar_select %p30, 0, %s29
    %s32 = sadd.s32 1, %s16
    %s33 = scalar_select %p30, %s32, %s16
    %p34 = scmp.ge.s32.totalorder %s33, 2
    %s35 = scalar_select %p34, 0, %s33
    %s36 = ssub.s32 %s16, %s35
    %s37 = ssub.s32 %s18, %s27
    %s38 = sor.u32 %s36, %s37
    %p39 = scmp.eq.s32.totalorder %s38, 0
    %s41 = sadd.s32 %s40, 1
    %s42 = scalar_select %p39, %s40, %s41
    %p45 = pneg %p39
    %p46 = scmp.eq.s32.totalorder %s9, 1
    %p47 = por %p45, %p46
    %p48 = scmp.ne.s32.totalorder %s40, %s43
    %p49 = scmp.eq.s32.totalorder %s9, 0
    %p50 = por %p48, %p49
    %p51 = scmp.ne.s32.totalorder %s40, %s43
    %p52 = scmp.eq.s32.totalorder %s14, 1
    %p53 = por %p51, %p52
    %p54 = scmp.ne.s32.totalorder %s43, %s44
    %p55 = scmp.eq.s32.totalorder %s14, 0
    %p56 = por %p54, %p55
    %p57 = scmp.ne.s32.totalorder %s43, %s44
    %p58 = scmp.eq.s32.totalorder %s15, 1
    %p59 = por %p57, %p58
    %p61 = scmp.ne.s32.totalorder %s44, %s60
    %p62 = scmp.eq.s32.totalorder %s15, 0
    %p63 = por %p61, %p62
    %s64 = ssub.s32 %s18, %s27
    %s65 = ssub.s32 %s17, %s31
    %s66 = sor.u32 %s64, %s65
    %p67 = scmp.eq.s32.totalorder %s66, 0
    %s69 = sadd.s32 %s68, 1
    %s70 = scalar_select %p67, %s68, %s69
    %p73 = pneg %p67
    %p74 = scmp.eq.s32.totalorder %s9, 1
    %p75 = por %p73, %p74
    %p76 = scmp.ne.s32.totalorder %s68, %s71
    %p77 = scmp.eq.s32.totalorder %s9, 0
    %p78 = por %p76, %p77
    %p79 = scmp.ne.s32.totalorder %s68, %s71
    %p80 = scmp.eq.s32.totalorder %s14, 1
    %p81 = por %p79, %p80
    %p82 = scmp.ne.s32.totalorder %s71, %s72
    %p83 = scmp.eq.s32.totalorder %s14, 0
    %p84 = por %p82, %p83
    %p85 = scmp.ne.s32.totalorder %s71, %s72
    %p86 = scmp.eq.s32.totalorder %s15, 1
    %p87 = por %p85, %p86
    %p89 = scmp.ne.s32.totalorder %s72, %s88
    %p90 = scmp.eq.s32.totalorder %s15, 0
    %p91 = por %p89, %p90
    %s92 = ssub.s32 %s17, %s31
    %p93 = scmp.eq.s32.totalorder %s92, 0
    %s95 = sadd.s32 %s94, 1
    %s96 = scalar_select %p93, %s94, %s95
    %p99 = pneg %p93
    %p100 = scmp.eq.s32.totalorder %s9, 1
    %p101 = por %p99, %p100
    %p102 = scmp.ne.s32.totalorder %s94, %s97
    %p103 = scmp.eq.s32.totalorder %s9, 0
    %p104 = por %p102, %p103
    %p105 = scmp.ne.s32.totalorder %s94, %s97
    %p106 = scmp.eq.s32.totalorder %s14, 1
    %p107 = por %p105, %p106
    %p108 = scmp.ne.s32.totalorder %s97, %s98
    %p109 = scmp.eq.s32.totalorder %s14, 0
    %p110 = por %p108, %p109
    %p111 = scmp.ne.s32.totalorder %s97, %s98
    %p112 = scmp.eq.s32.totalorder %s15, 1
    %p113 = por %p111, %p112
    %p115 = scmp.ne.s32.totalorder %s98, %s114
    %p116 = scmp.eq.s32.totalorder %s15, 0
    %p117 = por %p115, %p116
    %s118 = ssub.s32 %s16, %s35
    %s119 = ssub.s32 %s17, %s31
    %s120 = sor.u32 %s118, %s119
    %p121 = scmp.eq.s32.totalorder %s120, 0
    %s123 = sadd.s32 %s122, 1
    %s124 = scalar_select %p121, %s122, %s123
    %p127 = pneg %p121
    %p128 = scmp.eq.s32.totalorder %s9, 1
    %p129 = por %p127, %p128
    %p130 = scmp.ne.s32.totalorder %s122, %s125
    %p131 = scmp.eq.s32.totalorder %s9, 0
    %p132 = por %p130, %p131
    %p133 = scmp.ne.s32.totalorder %s122, %s125
    %p134 = scmp.eq.s32.totalorder %s14, 1
    %p135 = por %p133, %p134
    %p136 = scmp.ne.s32.totalorder %s125, %s126
    %p137 = scmp.eq.s32.totalorder %s14, 0
    %p138 = por %p136, %p137
    %p139 = scmp.ne.s32.totalorder %s125, %s126
    %p140 = scmp.eq.s32.totalorder %s15, 1
    %p141 = por %p139, %p140
    %p143 = scmp.ne.s32.totalorder %s126, %s142
    %p144 = scmp.eq.s32.totalorder %s15, 0
    %p145 = por %p143, %p144
    %p146 = scmp.le.s32.totalorder 1, %s9
    %p147 = scmp.lt.s32.totalorder %s9, 3
    %p148 = pnand %p146, %p147
    %p149 = pneg %p148
    // Predicated region
    $region9: #{_forward.13} parent=5 // pred_check
      _
    $region10: #{_forward.13} parent=5 // pred_check_branch
      %151 = sbr.rel (%p148) target = $region12
    $region11: #{_forward.13} parent=5 // pred_region
      %s152 = ssub.s32 %s9, 1
      // Predicated region
      $region13: #{_forward.13} parent=11 // pred_check
        %p153 = pneg %p84
      $region14: #{_forward.13} parent=11 // pred_check_branch
        %155 = sbr.rel (%p153) target = $region16
      $region15: #{_forward.13} parent=11 // pred_region
        %s156 = smul.u32 16, %s21
        %p157 = scmp.lt.s32.totalorder %s156, 15
        %s158 = scalar_select %p157, %s156, 15
        %p159 = scmp.lt.s32.totalorder %s20, 0
        %s160 = scalar_select %p159, %s20, 0
        %s161 = sadd.s32 %s160, %s158
        %s162 = smul.addr %s161, 4
        %s163 = scalar_lea.vmem %s1, %s162
        %s164 = smul.u32 16, %s21
      $region16: #{_forward.13} parent=11 // pred_fallthru
        _
      // Predicated region
      $region17: #{_forward.13} parent=11 // pred_check
        %p165 = pneg %p110
      $region18: #{_forward.13} parent=11 // pred_check_branch
        %167 = sbr.rel (%p165) target = $region20
      $region19: #{_forward.13} parent=11 // pred_region
        %p168 = scmp.lt.s32.totalorder %s20, 0
        %s169 = scalar_select %p168, %s20, 0
        %s170 = scalar_lea.vmem %s2, %s169
      $region20: #{_forward.13} parent=11 // pred_fallthru
        _
    $region12: #{_forward.13} parent=5 // pred_fallthru
      _
    %p171 = scmp.lt.s32.totalorder %s9, 2
    // Predicated region
    $region21: #{_forward.13} parent=5 // pred_check
      %p172 = pneg %p171
    $region22: #{_forward.13} parent=5 // pred_check_branch
      %174 = sbr.rel (%p172) target = $region24
    $region23: #{_forward.13} parent=5 // pred_region
      // Predicated region
      $region25: #{_forward.13} parent=23 // pred_check
        %p175 = pneg %p50
      $region26: #{_forward.13} parent=23 // pred_check_branch
        %177 = sbr.rel (%p175) target = $region28
      $region27: #{_forward.13} parent=23 // pred_region
        %s178 = smul.u32 8, %s16
        %p179 = scmp.lt.s32.totalorder %s178, 15
        %s180 = scalar_select %p179, %s178, 15
        %p181 = scmp.lt.s32.totalorder %s18, 0
        %s182 = scalar_select %p181, %s18, 0
        %s183 = sadd.s32 %s182, %s180
        %s184 = smul.addr %s183, 8
        %s185 = scalar_lea.vmem %s0, %s184
        %s186 = smul.u32 8, %s16
      $region28: #{_forward.13} parent=23 // pred_fallthru
        _
    $region24: #{_forward.13} parent=5 // pred_fallthru
      _
    %p187 = scmp.le.s32.totalorder 1, %s9
    %p188 = scmp.lt.s32.totalorder %s9, 3
    %p189 = pnand %p187, %p188
    %p190 = pneg %p189
    // Predicated region
    $region29: #{_forward.13} parent=5 // pred_check
      _
    $region30: #{_forward.13} parent=5 // pred_check_branch
      %192 = sbr.rel (%p189) target = $region32
    $region31: #{_forward.13} parent=5 // pred_region
      %s193 = ssub.s32 %s9, 1
      %s194 = smul.u32 8, %s19
      %p195 = scmp.lt.s32.totalorder %s194, 15
      %s196 = scalar_select %p195, %s194, 15
      %p197 = scmp.lt.s32.totalorder %s21, 0
      %s198 = scalar_select %p197, %s21, 0
      %s199 = sadd.s32 %s198, %s196
      %s200 = smul.addr %s199, 8
      %s201 = scalar_lea.vmem %s0, %s200
      %p202 = pneg %p56
      %p203 = pneg %p53
      %s204 = smul.u32 16, %s21
      %p205 = scmp.lt.s32.totalorder %s204, 15
      %s206 = scalar_select %p205, %s204, 15
      %p207 = scmp.lt.s32.totalorder %s20, 0
      %s208 = scalar_select %p207, %s20, 0
      %s209 = sadd.s32 %s208, %s206
      %s210 = smul.addr %s209, 4
      %s211 = scalar_lea.vmem %s1, %s210
      %p212 = pneg %p84
      %p213 = pneg %p81
      %p214 = scmp.lt.s32.totalorder %s20, 0
      %s215 = scalar_select %p214, %s20, 0
      %s216 = scalar_lea.vmem %s2, %s215
      %p217 = pneg %p110
      %p218 = pneg %p107
      %p219 = pneg %p138
      %p220 = pneg %p135
      %s221 = smul.u32 8, %s19
      %p222 = scmp.lt.s32.totalorder %s221, 15
      %s223 = scalar_select %p222, %s221, 15
      %p224 = scmp.lt.s32.totalorder %s20, 0
      %s225 = scalar_select %p224, %s20, 0
      %s226 = sadd.s32 %s225, %s223
      %s227 = smul.addr %s226, 8
      %s228 = scalar_lea.vmem %s3, %s227
      %s229 = smul.u32 8, %s19
      %p230 = scmp.lt.s32.totalorder %s229, 15
      %s231 = scalar_select %p230, %s229, 15
      %p232 = scmp.lt.s32.totalorder %s21, 0
      %s233 = scalar_select %p232, %s21, 0
      %s234 = sadd.s32 %s233, %s231
      %s235 = smul.addr %s234, 8
      %s236 = scalar_lea.vmem %s0, %s235
      %s237 = smul.u32 8, %s19
      %s238 = smul.u32 16, %s21
      %p239 = scmp.lt.s32.totalorder %s238, 15
      %s240 = scalar_select %p239, %s238, 15
      %p241 = scmp.lt.s32.totalorder %s20, 0
      %s242 = scalar_select %p241, %s20, 0
      %s243 = sadd.s32 %s242, %s240
      %s244 = smul.addr %s243, 4
      %s245 = scalar_lea.vmem %s1, %s244
      %s246 = smul.u32 16, %s21
      %p247 = scmp.lt.s32.totalorder %s20, 0
      %s248 = scalar_select %p247, %s20, 0
      %s249 = scalar_lea.vmem %s2, %s248
      %s250 = smul.u32 8, %s19
      %p251 = scmp.lt.s32.totalorder %s250, 15
      %s252 = scalar_select %p251, %s250, 15
      %p253 = scmp.lt.s32.totalorder %s20, 0
      %s254 = scalar_select %p253, %s20, 0
      %s255 = sadd.s32 %s254, %s252
      %s256 = smul.addr %s255, 8
      %s257 = scalar_lea.vmem %s3, %s256
      %s258 = smul.u32 8, %s19
      %p260 = scmp.eq.s32.totalorder %s21, 0
      // Predicated region
      $region33: #{_forward.13} parent=31 // pred_check
        %p261 = pneg %p260
      $region34: #{_forward.13} parent=31 // pred_check_branch
        %263 = sbr.rel (%p261) target = $region36
      $region35: #{_forward.13} parent=31 // pred_region
        %264 = vst [vmem:[%s257] sm:$0xff] 0.0
        %265 = vst [vmem:[%s257 + $0x8] sm:$0xff] 0.0
        %266 = vst [vmem:[%s257 + $0x10] sm:$0xff] 0.0
        %267 = vst [vmem:[%s257 + $0x18] sm:$0xff] 0.0
        %268 = vst [vmem:[%s257 + $0x20] sm:$0xff] 0.0
        %269 = vst [vmem:[%s257 + $0x28] sm:$0xff] 0.0
        %270 = vst [vmem:[%s257 + $0x30] sm:$0xff] 0.0
        %271 = vst [vmem:[%s257 + $0x38] sm:$0xff] 0.0
      $region36: #{_forward.13} parent=31 // pred_fallthru
        _
      %v272 = vld [vmem:[%s257] sm:$0xff]
      %v273 = vld [vmem:[%s257 + $0x8] sm:$0xff]
      %v274 = vld [vmem:[%s257 + $0x10] sm:$0xff]
      %v275 = vld [vmem:[%s257 + $0x18] sm:$0xff]
      %v276 = vld [vmem:[%s257 + $0x20] sm:$0xff]
      %v277 = vld [vmem:[%s257 + $0x28] sm:$0xff]
      %v278 = vld [vmem:[%s257 + $0x30] sm:$0xff]
      %v279 = vld [vmem:[%s257 + $0x38] sm:$0xff]
      %v280 = vld [vmem:[%s236] sm:$0xff]
      %v281 = vld [vmem:[%s236 + $0x8] sm:$0xff]
      %v282 = vld [vmem:[%s236 + $0x10] sm:$0xff]
      %v283 = vld [vmem:[%s236 + $0x18] sm:$0xff]
      %v284 = vld [vmem:[%s236 + $0x20] sm:$0xff]
      %v285 = vld [vmem:[%s236 + $0x28] sm:$0xff]
      %v286 = vld [vmem:[%s236 + $0x30] sm:$0xff]
      %v287 = vld [vmem:[%s236 + $0x38] sm:$0xff]
      %v288 = vpack.c.bf16 %v281, %v280
      %v289 = vpack.c.bf16 %v283, %v282
      %v290 = vpack.c.bf16 %v285, %v284
      %v291 = vpack.c.bf16 %v287, %v286
      %v292 = vld [vmem:[%s245] sm:$0xf]
      %v293 = vld [vmem:[%s245 + $0x4] sm:$0xf]
      %v294 = vld [vmem:[%s245 + $0x8] sm:$0xf]
      %v295 = vld [vmem:[%s245 + $0xc] sm:$0xf]
      %v296 = vld [vmem:[%s245 + $0x10] sm:$0xf]
      %v297 = vld [vmem:[%s245 + $0x14] sm:$0xf]
      %v298 = vld [vmem:[%s245 + $0x18] sm:$0xf]
      %v299 = vld [vmem:[%s245 + $0x1c] sm:$0xf]
      %v300 = vld [vmem:[%s245 + $0x20] sm:$0xf]
      %v301 = vld [vmem:[%s245 + $0x24] sm:$0xf]
      %v302 = vld [vmem:[%s245 + $0x28] sm:$0xf]
      %v303 = vld [vmem:[%s245 + $0x2c] sm:$0xf]
      %v304 = vld [vmem:[%s245 + $0x30] sm:$0xf]
      %v305 = vld [vmem:[%s245 + $0x34] sm:$0xf]
      %v306 = vld [vmem:[%s245 + $0x38] sm:$0xf]
      %v307 = vld [vmem:[%s245 + $0x3c] sm:$0xf]
      %v324 = vunpack.c.l.b16 %v292
      %v325 = vunpack.c.l.b16 %v293
      %v326 = vunpack.c.l.b16 %v294
      %v327 = vunpack.c.l.b16 %v295
      %v328 = vunpack.c.l.b16 %v296
      %v329 = vunpack.c.l.b16 %v297
      %v330 = vunpack.c.l.b16 %v298
      %v331 = vunpack.c.l.b16 %v299
      %v332 = vunpack.c.l.b16 %v300
      %v333 = vunpack.c.l.b16 %v301
      %v334 = vunpack.c.l.b16 %v302
      %v335 = vunpack.c.l.b16 %v303
      %v336 = vunpack.c.l.b16 %v304
      %v337 = vunpack.c.l.b16 %v305
      %v338 = vunpack.c.l.b16 %v306
      %v339 = vunpack.c.l.b16 %v307
      %v340 = vpack.c.b16 %v325, %v324
      %v341 = vpack.c.b16 %v327, %v326
      %v342 = vpack.c.b16 %v329, %v328
      %v343 = vpack.c.b16 %v331, %v330
      %v344 = vpack.c.b16 %v333, %v332
      %v345 = vpack.c.b16 %v335, %v334
      %v346 = vpack.c.b16 %v337, %v336
      %v347 = vpack.c.b16 %v339, %v338
      %356 = vmatprep.subr.bf16.mxu0 0
      %357 = vmatpush1.bf16.msra.mxu0 %v347
      %358 = vmatprep.subr.bf16.mxu0 0
      %359 = vmatpush1.bf16.msra.mxu0 %v346
      %360 = vmatprep.subr.bf16.mxu0 0
      %361 = vmatpush1.bf16.msra.mxu0 %v345
      %362 = vmatprep.subr.bf16.mxu0 0
      %363 = vmatpush1.bf16.msra.mxu0 %v344
      %364 = vmatprep.subr.bf16.mxu0 0
      %365 = vmatpush1.bf16.msra.mxu0 %v343
      %366 = vmatprep.subr.bf16.mxu0 0
      %367 = vmatpush1.bf16.msra.mxu0 %v342
      %368 = vmatprep.subr.bf16.mxu0 0
      %369 = vmatpush1.bf16.msra.mxu0 %v341
      %370 = vmatprep.subr.bf16.mxu0 0
      %371 = vmatpush1.bf16.msra.mxu0 %v340
      %372 = vmatprep.subr.bf16.mxu0 0
      %373 = vmatpush2.bf16.msra.mxu0 0
      %374 = vmatprep.subr.bf16.mxu0 0
      %375 = vmatpush2.bf16.msra.mxu0 0
      %376 = vmatprep.subr.bf16.mxu0 0
      %377 = vmatpush2.bf16.msra.mxu0 0
      %378 = vmatprep.subr.bf16.mxu0 0
      %379 = vmatpush2.bf16.msra.mxu0 0
      %380 = vmatprep.subr.bf16.mxu0 0
      %381 = vmatpush2.bf16.msra.mxu0 0
      %382 = vmatprep.subr.bf16.mxu0 0
      %383 = vmatpush2.bf16.msra.mxu0 0
      %384 = vmatprep.subr.bf16.mxu0 0
      %385 = vmatpush2.bf16.msra.mxu0 0
      %386 = vmatprep.subr.bf16.mxu0 0
      %387 = vmatpush2.bf16.msra.mxu0 0
      %388 = vmatprep.mubr.bf16.mxu0 0
      %389 = vmatmul.mubr.bf16.gmra.mxu0 %v288
      %v390 = vpop.f32.mrf.mxu0
      %v391 = vadd.f32 0.0, %v390
      %v392 = vpop.f32.mrf.mxu0
      %v393 = vpop.f32.mrf.mxu0
      %v394 = vadd.f32 0.0, %v393
      %v395 = vpop.f32.mrf.mxu0
      %396 = vmatprep.mubr.bf16.mxu0 0
      %397 = vmatmul.mubr.bf16.gmra.mxu0 %v289
      %v398 = vpop.f32.mrf.mxu0
      %v399 = vadd.f32 0.0, %v398
      %v400 = vpop.f32.mrf.mxu0
      %v401 = vpop.f32.mrf.mxu0
      %v402 = vadd.f32 0.0, %v401
      %v403 = vpop.f32.mrf.mxu0
      %404 = vmatprep.mubr.bf16.mxu0 0
      %405 = vmatmul.mubr.bf16.gmra.mxu0 %v290
      %v406 = vpop.f32.mrf.mxu0
      %v407 = vadd.f32 0.0, %v406
      %v408 = vpop.f32.mrf.mxu0
      %v409 = vpop.f32.mrf.mxu0
      %v410 = vadd.f32 0.0, %v409
      %v411 = vpop.f32.mrf.mxu0
      %412 = vmatprep.mubr.bf16.mxu0 0
      %413 = vmatmul.mubr.bf16.gmra.mxu0 %v291
      %v414 = vpop.f32.mrf.mxu0
      %v415 = vadd.f32 0.0, %v414
      %v416 = vpop.f32.mrf.mxu0
      %v417 = vpop.f32.mrf.mxu0
      %v418 = vadd.f32 0.0, %v417
      %v419 = vpop.f32.mrf.mxu0
      %420 = vdwg.mxu0
      %v421 = vadd.f32 %v272, %v391
      %v422 = vadd.f32 %v273, %v394
      %v423 = vadd.f32 %v274, %v399
      %v424 = vadd.f32 %v275, %v402
      %v425 = vadd.f32 %v276, %v407
      %v426 = vadd.f32 %v277, %v410
      %v427 = vadd.f32 %v278, %v415
      %v428 = vadd.f32 %v279, %v418
      %429 = vst [vmem:[%s257] sm:$0xff] %v421
      %430 = vst [vmem:[%s257 + $0x8] sm:$0xff] %v422
      %431 = vst [vmem:[%s257 + $0x10] sm:$0xff] %v423
      %432 = vst [vmem:[%s257 + $0x18] sm:$0xff] %v424
      %433 = vst [vmem:[%s257 + $0x20] sm:$0xff] %v425
      %434 = vst [vmem:[%s257 + $0x28] sm:$0xff] %v426
      %435 = vst [vmem:[%s257 + $0x30] sm:$0xff] %v427
      %436 = vst [vmem:[%s257 + $0x38] sm:$0xff] %v428
      // Predicated region
      $region37: #{_forward.13} parent=31 // pred_check
        %p437 = pneg %p260
      $region38: #{_forward.13} parent=31 // pred_check_branch
        %439 = sbr.rel (%p437) target = $region40
      $region39: #{_forward.13} parent=31 // pred_region
        %v440 = vld [vmem:[%s257] sm:$0xff]
        %v441 = vld [vmem:[%s257 + $0x8] sm:$0xff]
        %v442 = vld [vmem:[%s257 + $0x10] sm:$0xff]
        %v443 = vld [vmem:[%s257 + $0x18] sm:$0xff]
        %v444 = vld [vmem:[%s257 + $0x20] sm:$0xff]
        %v445 = vld [vmem:[%s257 + $0x28] sm:$0xff]
        %v446 = vld [vmem:[%s257 + $0x30] sm:$0xff]
        %v447 = vld [vmem:[%s257 + $0x38] sm:$0xff]
        %v448 = vld [vmem:[%s249] sm:$0x1]
        %v450 = vlaneseq
        %v451 = vshrl.u32 %v450, 7
        %v452 = vsub.s32 0, %v451
        %v453 = vrot.slane %v448, %v452
        %v455 = vadd.f32 %v440, %v453
        %v456 = vadd.f32 %v441, %v453
        %v457 = vadd.f32 %v442, %v453
        %v458 = vadd.f32 %v443, %v453
        %v459 = vadd.f32 %v444, %v453
        %v460 = vadd.f32 %v445, %v453
        %v461 = vadd.f32 %v446, %v453
        %v462 = vadd.f32 %v447, %v453
        %463 = vst [vmem:[%s257] sm:$0xff] %v455
        %464 = vst [vmem:[%s257 + $0x8] sm:$0xff] %v456
        %465 = vst [vmem:[%s257 + $0x10] sm:$0xff] %v457
        %466 = vst [vmem:[%s257 + $0x18] sm:$0xff] %v458
        %467 = vst [vmem:[%s257 + $0x20] sm:$0xff] %v459
        %468 = vst [vmem:[%s257 + $0x28] sm:$0xff] %v460
        %469 = vst [vmem:[%s257 + $0x30] sm:$0xff] %v461
        %470 = vst [vmem:[%s257 + $0x38] sm:$0xff] %v462
      $region40: #{_forward.13} parent=31 // pred_fallthru
        _
      %s471 = smul.u32 8, %s19
      %p472 = scmp.lt.s32.totalorder %s471, 15
      %s473 = scalar_select %p472, %s471, 15
      %p474 = scmp.lt.s32.totalorder %s20, 0
      %s475 = scalar_select %p474, %s20, 0
      %s476 = sadd.s32 %s475, %s473
      %s477 = smul.addr %s476, 8
      %s478 = scalar_lea.vmem %s3, %s477
      // Predicated region
      $region41: #{_forward.13} parent=31 // pred_check
        %p479 = pneg %p135
      $region42: #{_forward.13} parent=31 // pred_check_branch
        %481 = sbr.rel (%p479) target = $region44
      $region43: #{_forward.13} parent=31 // pred_region
        %s482 = smul.u32 8, %s19
      $region44: #{_forward.13} parent=31 // pred_fallthru
        _
    $region32: #{_forward.13} parent=5 // pred_fallthru
      _
    %p483 = scmp.le.s32.totalorder 2, %s9
    // Predicated region
    $region45: #{_forward.13} parent=5 // pred_check
      %p484 = pneg %p483
    $region46: #{_forward.13} parent=5 // pred_check_branch
      %486 = sbr.rel (%p484) target = $region48
    $region47: #{_forward.13} parent=5 // pred_region
      %s487 = ssub.s32 %s9, 2
      // Predicated region
      $region49: #{_forward.13} parent=47 // pred_check
        %p488 = pneg %p141
      $region50: #{_forward.13} parent=47 // pred_check_branch
        %490 = sbr.rel (%p488) target = $region52
      $region51: #{_forward.13} parent=47 // pred_region
        %s491 = smul.u32 8, %s22
        %p492 = scmp.lt.s32.totalorder %s491, 15
        %s493 = scalar_select %p492, %s491, 15
        %p494 = scmp.lt.s32.totalorder %s23, 0
        %s495 = scalar_select %p494, %s23, 0
        %s496 = sadd.s32 %s495, %s493
        %s497 = smul.addr %s496, 8
        %s498 = scalar_lea.vmem %s3, %s497
      $region52: #{_forward.13} parent=47 // pred_fallthru
        _
    $region48: #{_forward.13} parent=5 // pred_fallthru
      _
  $region6: #{_forward.13} parent=0 // loop_footer
    %s13 = sadd.s32 1, %s9
  $region7: #{_forward.13} parent=0 // loop_footer_branch
    %8 = sbr.rel target = $region3
  $region8: #{_forward.13} parent=0 // loop_exit
    _

// kernel: _forward.14
$region0: #{_forward.14}
  #allocation0 [shape = 'u32[]', space=smem, size = 0x4, offset = 0x4, fixed_abs, tag = 'smem constant byte address 0x4 - core index']
  #allocation1 [shape = 'u32[144,128]{1,0:T(1,128)}', space=vmem, size = 0x12000, scoped, tag = 'internal scratch']
  %s0 = inlined_call_operand.vmem [shape: f32[128,128], index: 0, kind: input, shape index: {}]
  %s1 = inlined_call_operand.vmem [shape: f32[128,128], index: 1, kind: input, shape index: {}]
  %s2 = inlined_call_operand.vmem [shape: f32[128,128], index: 2, kind: output, shape index: {}]
  %s3 = sld [smem:[#allocation0]]
  $region41: #{_forward.14} parent=0
    _
  %s5 = ssub.s32 1, %s3
  %s6 = scalar_select 0, %s5, %s3
  loop: start=0, step=1, limit=4
  $region2: #{_forward.14} parent=0 // loop_pre_header
    _
  $region3: #{_forward.14} parent=0 // loop_header
    %s8 = sphi 0, %s12
    %p9 = scmp.ge.s32.totalorder %s8, 4
    %s18 = sphi 0, %s20
    %s21 = sphi 0, %s18
    %s22 = sphi 0, %s21
    %s38 = sphi 0, %s22
    %s44 = sphi 0, %s46
    %s47 = sphi 0, %s44
    %s48 = sphi 0, %s47
    %s64 = sphi 0, %s48
    %s70 = sphi 0, %s72
    %s73 = sphi 0, %s70
    %s74 = sphi 0, %s73
    %s90 = sphi 0, %s74
  $region4: #{_forward.14} parent=0 // loop_header_branch
    %11 = sbr.rel (%p9) target = $region8
  $region5: #{_forward.14} parent=0 // loop_body
    %s13 = ssub.s32 %s8, 1
    %s14 = ssub.s32 %s8, 2
    %s15 = sadd.s32 %s8, 1
    %s16 = ssub.s32 %s8, %s15
    %p17 = scmp.eq.s32.totalorder %s16, 0
    %s19 = sadd.s32 %s18, 1
    %s20 = scalar_select %p17, %s18, %s19
    %p23 = pneg %p17
    %p24 = scmp.eq.s32.totalorder %s8, 1
    %p25 = por %p23, %p24
    %p26 = scmp.ne.s32.totalorder %s18, %s21
    %p27 = scmp.eq.s32.totalorder %s8, 0
    %p28 = por %p26, %p27
    %p29 = scmp.ne.s32.totalorder %s18, %s21
    %p30 = scmp.eq.s32.totalorder %s13, 1
    %p31 = por %p29, %p30
    %p32 = scmp.ne.s32.totalorder %s21, %s22
    %p33 = scmp.eq.s32.totalorder %s13, 0
    %p34 = por %p32, %p33
    %p35 = scmp.ne.s32.totalorder %s21, %s22
    %p36 = scmp.eq.s32.totalorder %s14, 1
    %p37 = por %p35, %p36
    %p39 = scmp.ne.s32.totalorder %s22, %s38
    %p40 = scmp.eq.s32.totalorder %s14, 0
    %p41 = por %p39, %p40
    %s42 = ssub.s32 %s8, %s15
    %p43 = scmp.eq.s32.totalorder %s42, 0
    %s45 = sadd.s32 %s44, 1
    %s46 = scalar_select %p43, %s44, %s45
    %p49 = pneg %p43
    %p50 = scmp.eq.s32.totalorder %s8, 1
    %p51 = por %p49, %p50
    %p52 = scmp.ne.s32.totalorder %s44, %s47
    %p53 = scmp.eq.s32.totalorder %s8, 0
    %p54 = por %p52, %p53
    %p55 = scmp.ne.s32.totalorder %s44, %s47
    %p56 = scmp.eq.s32.totalorder %s13, 1
    %p57 = por %p55, %p56
    %p58 = scmp.ne.s32.totalorder %s47, %s48
    %p59 = scmp.eq.s32.totalorder %s13, 0
    %p60 = por %p58, %p59
    %p61 = scmp.ne.s32.totalorder %s47, %s48
    %p62 = scmp.eq.s32.totalorder %s14, 1
    %p63 = por %p61, %p62
    %p65 = scmp.ne.s32.totalorder %s48, %s64
    %p66 = scmp.eq.s32.totalorder %s14, 0
    %p67 = por %p65, %p66
    %s68 = ssub.s32 %s8, %s15
    %p69 = scmp.eq.s32.totalorder %s68, 0
    %s71 = sadd.s32 %s70, 1
    %s72 = scalar_select %p69, %s70, %s71
    %p75 = pneg %p69
    %p76 = scmp.eq.s32.totalorder %s8, 1
    %p77 = por %p75, %p76
    %p78 = scmp.ne.s32.totalorder %s70, %s73
    %p79 = scmp.eq.s32.totalorder %s8, 0
    %p80 = por %p78, %p79
    %p81 = scmp.ne.s32.totalorder %s70, %s73
    %p82 = scmp.eq.s32.totalorder %s13, 1
    %p83 = por %p81, %p82
    %p84 = scmp.ne.s32.totalorder %s73, %s74
    %p85 = scmp.eq.s32.totalorder %s13, 0
    %p86 = por %p84, %p85
    %p87 = scmp.ne.s32.totalorder %s73, %s74
    %p88 = scmp.eq.s32.totalorder %s14, 1
    %p89 = por %p87, %p88
    %p91 = scmp.ne.s32.totalorder %s74, %s90
    %p92 = scmp.eq.s32.totalorder %s14, 0
    %p93 = por %p91, %p92
    %p94 = scmp.le.s32.totalorder 1, %s8
    %p95 = scmp.lt.s32.totalorder %s8, 3
    %p96 = pnand %p94, %p95
    %p97 = pneg %p96
    // Predicated region
    $region9: #{_forward.14} parent=5 // pred_check
      _
    $region10: #{_forward.14} parent=5 // pred_check_branch
      %99 = sbr.rel (%p96) target = $region12
    $region11: #{_forward.14} parent=5 // pred_region
      %s100 = ssub.s32 %s8, 1
    $region12: #{_forward.14} parent=5 // pred_fallthru
      _
    %p101 = scmp.lt.s32.totalorder %s8, 2
    // Predicated region
    $region13: #{_forward.14} parent=5 // pred_check
      %p102 = pneg %p101
    $region14: #{_forward.14} parent=5 // pred_check_branch
      %104 = sbr.rel (%p102) target = $region16
    $region15: #{_forward.14} parent=5 // pred_region
      // Predicated region
      $region17: #{_forward.14} parent=15 // pred_check
        %p105 = pneg %p28
      $region18: #{_forward.14} parent=15 // pred_check_branch
        %107 = sbr.rel (%p105) target = $region20
      $region19: #{_forward.14} parent=15 // pred_region
        %s108 = smul.u32 8, %s8
        %p109 = scmp.lt.s32.totalorder %s108, 15
        %s110 = scalar_select %p109, %s108, 15
        %s111 = smul.addr %s110, 8
        %s112 = scalar_lea.vmem %s0, %s111
        %s113 = smul.u32 8, %s8
      $region20: #{_forward.14} parent=15 // pred_fallthru
        _
      // Predicated region
      $region21: #{_forward.14} parent=15 // pred_check
        %p114 = pneg %p54
      $region22: #{_forward.14} parent=15 // pred_check_branch
        %116 = sbr.rel (%p114) target = $region24
      $region23: #{_forward.14} parent=15 // pred_region
        %s117 = smul.u32 8, %s8
        %p118 = scmp.lt.s32.totalorder %s117, 15
        %s119 = scalar_select %p118, %s117, 15
        %s120 = smul.addr %s119, 8
        %s121 = scalar_lea.vmem %s1, %s120
        %s122 = smul.u32 8, %s8
      $region24: #{_forward.14} parent=15 // pred_fallthru
        _
    $region16: #{_forward.14} parent=5 // pred_fallthru
      _
    %p123 = scmp.le.s32.totalorder 1, %s8
    %p124 = scmp.lt.s32.totalorder %s8, 3
    %p125 = pnand %p123, %p124
    %p126 = pneg %p125
    // Predicated region
    $region25: #{_forward.14} parent=5 // pred_check
      _
    $region26: #{_forward.14} parent=5 // pred_check_branch
      %128 = sbr.rel (%p125) target = $region28
    $region27: #{_forward.14} parent=5 // pred_region
      %s129 = ssub.s32 %s8, 1
      %s130 = smul.u32 8, %s13
      %p131 = scmp.lt.s32.totalorder %s130, 15
      %s132 = scalar_select %p131, %s130, 15
      %s133 = smul.addr %s132, 8
      %s134 = scalar_lea.vmem %s0, %s133
      %p135 = pneg %p34
      %p136 = pneg %p31
      %s137 = smul.u32 8, %s13
      %p138 = scmp.lt.s32.totalorder %s137, 15
      %s139 = scalar_select %p138, %s137, 15
      %s140 = smul.addr %s139, 8
      %s141 = scalar_lea.vmem %s1, %s140
      %p142 = pneg %p60
      %p143 = pneg %p57
      %p144 = pneg %p86
      %p145 = pneg %p83
      %s146 = smul.u32 8, %s13
      %p147 = scmp.lt.s32.totalorder %s146, 15
      %s148 = scalar_select %p147, %s146, 15
      %s149 = smul.addr %s148, 8
      %s150 = scalar_lea.vmem %s2, %s149
      %s151 = smul.u32 8, %s13
      %p152 = scmp.lt.s32.totalorder %s151, 15
      %s153 = scalar_select %p152, %s151, 15
      %s154 = smul.addr %s153, 8
      %s155 = scalar_lea.vmem %s0, %s154
      %s156 = smul.u32 8, %s13
      %s157 = smul.u32 8, %s13
      %p158 = scmp.lt.s32.totalorder %s157, 15
      %s159 = scalar_select %p158, %s157, 15
      %s160 = smul.addr %s159, 8
      %s161 = scalar_lea.vmem %s1, %s160
      %s162 = smul.u32 8, %s13
      %s163 = smul.u32 8, %s13
      %p164 = scmp.lt.s32.totalorder %s163, 15
      %s165 = scalar_select %p164, %s163, 15
      %s166 = smul.addr %s165, 8
      %s167 = scalar_lea.vmem %s2, %s166
      %s168 = smul.u32 8, %s13
      %v169 = vld [vmem:[%s155] sm:$0xff]
      %v170 = vld [vmem:[%s155 + $0x8] sm:$0xff]
      %v171 = vld [vmem:[%s155 + $0x10] sm:$0xff]
      %v172 = vld [vmem:[%s155 + $0x18] sm:$0xff]
      %v173 = vld [vmem:[%s155 + $0x20] sm:$0xff]
      %v174 = vld [vmem:[%s155 + $0x28] sm:$0xff]
      %v175 = vld [vmem:[%s155 + $0x30] sm:$0xff]
      %v176 = vld [vmem:[%s155 + $0x38] sm:$0xff]
      %v177 = vld [vmem:[%s161] sm:$0xff]
      %v178 = vld [vmem:[%s161 + $0x8] sm:$0xff]
      %v179 = vld [vmem:[%s161 + $0x10] sm:$0xff]
      %v180 = vld [vmem:[%s161 + $0x18] sm:$0xff]
      %v181 = vld [vmem:[%s161 + $0x20] sm:$0xff]
      %v182 = vld [vmem:[%s161 + $0x28] sm:$0xff]
      %v183 = vld [vmem:[%s161 + $0x30] sm:$0xff]
      %v184 = vld [vmem:[%s161 + $0x38] sm:$0xff]
      %v185 = vadd.f32 %v169, %v177
      %v186 = vadd.f32 %v170, %v178
      %v187 = vadd.f32 %v171, %v179
      %v188 = vadd.f32 %v172, %v180
      %v189 = vadd.f32 %v173, %v181
      %v190 = vadd.f32 %v174, %v182
      %v191 = vadd.f32 %v175, %v183
      %v192 = vadd.f32 %v176, %v184
      %vm193 = vcmp.gt.f32.partialorder %v185, 0.0
      %vm194 = vcmp.gt.f32.partialorder %v186, 0.0
      %vm195 = vcmp.gt.f32.partialorder %v187, 0.0
      %vm196 = vcmp.gt.f32.partialorder %v188, 0.0
      %vm197 = vcmp.gt.f32.partialorder %v189, 0.0
      %vm198 = vcmp.gt.f32.partialorder %v190, 0.0
      %vm199 = vcmp.gt.f32.partialorder %v191, 0.0
      %vm200 = vcmp.gt.f32.partialorder %v192, 0.0
      %v201 = vmul.f32 %v185, 0.1
      %v202 = vmul.f32 %v186, 0.1
      %v203 = vmul.f32 %v187, 0.1
      %v204 = vmul.f32 %v188, 0.1
      %v205 = vmul.f32 %v189, 0.1
      %v206 = vmul.f32 %v190, 0.1
      %v207 = vmul.f32 %v191, 0.1
      %v208 = vmul.f32 %v192, 0.1
      %v209 = vsel %vm193, %v185, %v201
      %v210 = vsel %vm194, %v186, %v202
      %v211 = vsel %vm195, %v187, %v203
      %v212 = vsel %vm196, %v188, %v204
      %v213 = vsel %vm197, %v189, %v205
      %v214 = vsel %vm198, %v190, %v206
      %v215 = vsel %vm199, %v191, %v207
      %v216 = vsel %vm200, %v192, %v208
      %217 = vst [vmem:[%s167] sm:$0xff] %v209
      %218 = vst [vmem:[%s167 + $0x8] sm:$0xff] %v210
      %219 = vst [vmem:[%s167 + $0x10] sm:$0xff] %v211
      %220 = vst [vmem:[%s167 + $0x18] sm:$0xff] %v212
      %221 = vst [vmem:[%s167 + $0x20] sm:$0xff] %v213
      %222 = vst [vmem:[%s167 + $0x28] sm:$0xff] %v214
      %223 = vst [vmem:[%s167 + $0x30] sm:$0xff] %v215
      %224 = vst [vmem:[%s167 + $0x38] sm:$0xff] %v216
      %s225 = smul.u32 8, %s13
      %p226 = scmp.lt.s32.totalorder %s225, 15
      %s227 = scalar_select %p226, %s225, 15
      %s228 = smul.addr %s227, 8
      %s229 = scalar_lea.vmem %s2, %s228
      // Predicated region
      $region29: #{_forward.14} parent=27 // pred_check
        %p230 = pneg %p83
      $region30: #{_forward.14} parent=27 // pred_check_branch
        %232 = sbr.rel (%p230) target = $region32
      $region31: #{_forward.14} parent=27 // pred_region
        %s233 = smul.u32 8, %s13
      $region32: #{_forward.14} parent=27 // pred_fallthru
        _
    $region28: #{_forward.14} parent=5 // pred_fallthru
      _
    %p234 = scmp.le.s32.totalorder 2, %s8
    // Predicated region
    $region33: #{_forward.14} parent=5 // pred_check
      %p235 = pneg %p234
    $region34: #{_forward.14} parent=5 // pred_check_branch
      %237 = sbr.rel (%p235) target = $region36
    $region35: #{_forward.14} parent=5 // pred_region
      %s238 = ssub.s32 %s8, 2
      // Predicated region
      $region37: #{_forward.14} parent=35 // pred_check
        %p239 = pneg %p89
      $region38: #{_forward.14} parent=35 // pred_check_branch
        %241 = sbr.rel (%p239) target = $region40
      $region39: #{_forward.14} parent=35 // pred_region
        %s242 = smul.u32 8, %s14
        %p243 = scmp.lt.s32.totalorder %s242, 15
        %s244 = scalar_select %p243, %s242, 15
        %s245 = smul.addr %s244, 8
        %s246 = scalar_lea.vmem %s2, %s245
      $region40: #{_forward.14} parent=35 // pred_fallthru
        _
    $region36: #{_forward.14} parent=5 // pred_fallthru
      _
  $region6: #{_forward.14} parent=0 // loop_footer
    %s12 = sadd.s32 1, %s8
  $region7: #{_forward.14} parent=0 // loop_footer_branch
    %7 = sbr.rel target = $region3
  $region8: #{_forward.14} parent=0 // loop_exit
    _

// kernel: _forward.12
$region0: #{_forward.12}
  #allocation0 [shape = 'u32[]', space=smem, size = 0x4, offset = 0x4, fixed_abs, tag = 'smem constant byte address 0x4 - core index']
  #allocation1 [shape = 'u32[144,128]{1,0:T(1,128)}', space=vmem, size = 0x12000, scoped, tag = 'internal scratch']
  %s0 = inlined_call_operand.vmem [shape: f32[2,10,10,128], index: 0, kind: input, shape index: {}]
  %s1 = inlined_call_operand.vmem [shape: bf16[1152,128], index: 1, kind: input, shape index: {}]
  %s2 = inlined_call_operand.vmem [shape: f32[1,128], index: 2, kind: input, shape index: {}]
  %s3 = inlined_call_operand.vmem [shape: f32[2,64,128], index: 3, kind: output, shape index: {}]
  %s4 = sld [smem:[#allocation0]]
  $region45: #{_forward.12} parent=0
    _
  %s6 = ssub.s32 1, %s4
  %s7 = scalar_select 0, %s6, %s4
  loop: start=0, step=1, limit=4
  $region2: #{_forward.12} parent=0 // loop_pre_header
    _
  $region3: #{_forward.12} parent=0 // loop_header
    %s9 = sphi 0, %s13
    %p10 = scmp.ge.s32.totalorder %s9, 4
    %s19 = sphi 0, %s21
    %s22 = sphi 0, %s19
    %s23 = sphi 0, %s22
    %s39 = sphi 0, %s23
    %s43 = sphi 0, %s43
    %s45 = sphi 0, %s43
    %s46 = sphi 0, %s45
    %s60 = sphi 0, %s46
    %s64 = sphi 0, %s64
    %s66 = sphi 0, %s64
    %s67 = sphi 0, %s66
    %s81 = sphi 0, %s67
    %s87 = sphi 0, %s89
    %s90 = sphi 0, %s87
    %s91 = sphi 0, %s90
    %s107 = sphi 0, %s91
  $region4: #{_forward.12} parent=0 // loop_header_branch
    %12 = sbr.rel (%p10) target = $region8
  $region5: #{_forward.12} parent=0 // loop_body
    %s14 = ssub.s32 %s9, 1
    %s15 = ssub.s32 %s9, 2
    %s16 = sadd.s32 %s9, 1
    %s17 = ssub.s32 %s9, %s16
    %p18 = scmp.eq.s32.totalorder %s17, 0
    %s20 = sadd.s32 %s19, 1
    %s21 = scalar_select %p18, %s19, %s20
    %p24 = pneg %p18
    %p25 = scmp.eq.s32.totalorder %s9, 1
    %p26 = por %p24, %p25
    %p27 = scmp.ne.s32.totalorder %s19, %s22
    %p28 = scmp.eq.s32.totalorder %s9, 0
    %p29 = por %p27, %p28
    %p30 = scmp.ne.s32.totalorder %s19, %s22
    %p31 = scmp.eq.s32.totalorder %s14, 1
    %p32 = por %p30, %p31
    %p33 = scmp.ne.s32.totalorder %s22, %s23
    %p34 = scmp.eq.s32.totalorder %s14, 0
    %p35 = por %p33, %p34
    %p36 = scmp.ne.s32.totalorder %s22, %s23
    %p37 = scmp.eq.s32.totalorder %s15, 1
    %p38 = por %p36, %p37
    %p40 = scmp.ne.s32.totalorder %s23, %s39
    %p41 = scmp.eq.s32.totalorder %s15, 0
    %p42 = por %p40, %p41
    %s44 = sadd.s32 %s43, 1
    %p47 = scmp.eq.s32.totalorder %s9, 1
    %p48 = scmp.ne.s32.totalorder %s43, %s45
    %p49 = scmp.eq.s32.totalorder %s9, 0
    %p50 = por %p48, %p49
    %p51 = scmp.ne.s32.totalorder %s43, %s45
    %p52 = scmp.eq.s32.totalorder %s14, 1
    %p53 = por %p51, %p52
    %p54 = scmp.ne.s32.totalorder %s45, %s46
    %p55 = scmp.eq.s32.totalorder %s14, 0
    %p56 = por %p54, %p55
    %p57 = scmp.ne.s32.totalorder %s45, %s46
    %p58 = scmp.eq.s32.totalorder %s15, 1
    %p59 = por %p57, %p58
    %p61 = scmp.ne.s32.totalorder %s46, %s60
    %p62 = scmp.eq.s32.totalorder %s15, 0
    %p63 = por %p61, %p62
    %s65 = sadd.s32 %s64, 1
    %p68 = scmp.eq.s32.totalorder %s9, 1
    %p69 = scmp.ne.s32.totalorder %s64, %s66
    %p70 = scmp.eq.s32.totalorder %s9, 0
    %p71 = por %p69, %p70
    %p72 = scmp.ne.s32.totalorder %s64, %s66
    %p73 = scmp.eq.s32.totalorder %s14, 1
    %p74 = por %p72, %p73
    %p75 = scmp.ne.s32.totalorder %s66, %s67
    %p76 = scmp.eq.s32.totalorder %s14, 0
    %p77 = por %p75, %p76
    %p78 = scmp.ne.s32.totalorder %s66, %s67
    %p79 = scmp.eq.s32.totalorder %s15, 1
    %p80 = por %p78, %p79
    %p82 = scmp.ne.s32.totalorder %s67, %s81
    %p83 = scmp.eq.s32.totalorder %s15, 0
    %p84 = por %p82, %p83
    %s85 = ssub.s32 %s9, %s16
    %p86 = scmp.eq.s32.totalorder %s85, 0
    %s88 = sadd.s32 %s87, 1
    %s89 = scalar_select %p86, %s87, %s88
    %p92 = pneg %p86
    %p93 = scmp.eq.s32.totalorder %s9, 1
    %p94 = por %p92, %p93
    %p95 = scmp.ne.s32.totalorder %s87, %s90
    %p96 = scmp.eq.s32.totalorder %s9, 0
    %p97 = por %p95, %p96
    %p98 = scmp.ne.s32.totalorder %s87, %s90
    %p99 = scmp.eq.s32.totalorder %s14, 1
    %p100 = por %p98, %p99
    %p101 = scmp.ne.s32.totalorder %s90, %s91
    %p102 = scmp.eq.s32.totalorder %s14, 0
    %p103 = por %p101, %p102
    %p104 = scmp.ne.s32.totalorder %s90, %s91
    %p105 = scmp.eq.s32.totalorder %s15, 1
    %p106 = por %p104, %p105
    %p108 = scmp.ne.s32.totalorder %s91, %s107
    %p109 = scmp.eq.s32.totalorder %s15, 0
    %p110 = por %p108, %p109
    %p111 = scmp.le.s32.totalorder 1, %s9
    %p112 = scmp.lt.s32.totalorder %s9, 3
    %p113 = pnand %p111, %p112
    %p114 = pneg %p113
    // Predicated region
    $region9: #{_forward.12} parent=5 // pred_check
      _
    $region10: #{_forward.12} parent=5 // pred_check_branch
      %116 = sbr.rel (%p113) target = $region12
    $region11: #{_forward.12} parent=5 // pred_region
      %s117 = ssub.s32 %s9, 1
      // Predicated region
      $region13: #{_forward.12} parent=11 // pred_check
        %p118 = pneg %p56
      $region14: #{_forward.12} parent=11 // pred_check_branch
        %120 = sbr.rel (%p118) target = $region16
      $region15: #{_forward.12} parent=11 // pred_region
        _
      $region16: #{_forward.12} parent=11 // pred_fallthru
        _
      // Predicated region
      $region17: #{_forward.12} parent=11 // pred_check
        %p121 = pneg %p77
      $region18: #{_forward.12} parent=11 // pred_check_branch
        %123 = sbr.rel (%p121) target = $region20
      $region19: #{_forward.12} parent=11 // pred_region
        _
      $region20: #{_forward.12} parent=11 // pred_fallthru
        _
    $region12: #{_forward.12} parent=5 // pred_fallthru
      _
    %p124 = scmp.lt.s32.totalorder %s9, 2
    // Predicated region
    $region21: #{_forward.12} parent=5 // pred_check
      %p125 = pneg %p124
    $region22: #{_forward.12} parent=5 // pred_check_branch
      %127 = sbr.rel (%p125) target = $region24
    $region23: #{_forward.12} parent=5 // pred_region
      // Predicated region
      $region25: #{_forward.12} parent=23 // pred_check
        %p128 = pneg %p29
      $region26: #{_forward.12} parent=23 // pred_check_branch
        %130 = sbr.rel (%p128) target = $region28
      $region27: #{_forward.12} parent=23 // pred_region
        %p131 = scmp.lt.s32.totalorder %s9, 1
        %s132 = scalar_select %p131, %s9, 1
        %s133 = smul.addr %s132, 20
        %s134 = smul.addr %s133, 8
        %s135 = scalar_lea.vmem %s0, %s134
      $region28: #{_forward.12} parent=23 // pred_fallthru
        _
    $region24: #{_forward.12} parent=5 // pred_fallthru
      _
    %p136 = scmp.le.s32.totalorder 1, %s9
    %p137 = scmp.lt.s32.totalorder %s9, 3
    %p138 = pnand %p136, %p137
    %p139 = pneg %p138
    // Predicated region
    $region29: #{_forward.12} parent=5 // pred_check
      _
    $region30: #{_forward.12} parent=5 // pred_check_branch
      %141 = sbr.rel (%p138) target = $region32
    $region31: #{_forward.12} parent=5 // pred_region
      %s142 = ssub.s32 %s9, 1
      %p143 = scmp.lt.s32.totalorder %s14, 1
      %s144 = scalar_select %p143, %s14, 1
      %s145 = smul.addr %s144, 20
      %s146 = smul.addr %s145, 8
      %s147 = scalar_lea.vmem %s0, %s146
      %p148 = pneg %p35
      %p149 = pneg %p32
      %p150 = pneg %p56
      %p151 = pneg %p53
      %p152 = pneg %p77
      %p153 = pneg %p74
      %p154 = pneg %p103
      %p155 = pneg %p100
      %p156 = scmp.lt.s32.totalorder %s14, 1
      %s157 = scalar_select %p156, %s14, 1
      %s158 = smul.addr %s157, 8
      %s159 = smul.addr %s158, 8
      %s160 = scalar_lea.vmem %s3, %s159
      %p161 = scmp.lt.s32.totalorder %s14, 1
      %s162 = scalar_select %p161, %s14, 1
      %s163 = smul.addr %s162, 20
      %s164 = smul.addr %s163, 8
      %s165 = scalar_lea.vmem %s0, %s164
      %p166 = scmp.lt.s32.totalorder %s14, 1
      %s167 = scalar_select %p166, %s14, 1
      %s168 = smul.addr %s167, 8
      %s169 = smul.addr %s168, 8
      %s170 = scalar_lea.vmem %s3, %s169
      %v172 = vld [vmem:[%s165] sm:$0xff]
      %v173 = vld [vmem:[%s165 + $0x8] sm:$0x3]
      %v174 = vld [vmem:[%s165 + $0x10] sm:$0xff]
      %v175 = vld [vmem:[%s165 + $0x18] sm:$0x3]
      %v176 = vld [vmem:[%s165 + $0x20] sm:$0xff]
      %v177 = vld [vmem:[%s165 + $0x28] sm:$0x3]
      %v178 = vld [vmem:[%s165 + $0x30] sm:$0xff]
      %v179 = vld [vmem:[%s165 + $0x38] sm:$0x3]
      %v180 = vld [vmem:[%s165 + $0x40] sm:$0xff]
      %v181 = vld [vmem:[%s165 + $0x48] sm:$0x3]
      %v182 = vld [vmem:[%s165 + $0x50] sm:$0xff]
      %v183 = vld [vmem:[%s165 + $0x58] sm:$0x3]
      %v184 = vld [vmem:[%s165 + $0x60] sm:$0xff]
      %v185 = vld [vmem:[%s165 + $0x68] sm:$0x3]
      %v186 = vld [vmem:[%s165 + $0x70] sm:$0xff]
      %v187 = vld [vmem:[%s165 + $0x78] sm:$0x3]
      %v188 = vld [vmem:[%s165 + $0x80] sm:$0xff]
      %v189 = vld [vmem:[%s165 + $0x88] sm:$0x3]
      %v190 = vld [vmem:[%s165 + $0x90] sm:$0xff]
      %v191 = vld [vmem:[%s165 + $0x98] sm:$0x3]
      %v192 = vpack.c.bf16 %v173, %v172
      %v193 = vpack.c.bf16 %v175, %v174
      %v194 = vpack.c.bf16 %v177, %v176
      %v195 = vpack.c.bf16 %v179, %v178
      %v196 = vpack.c.bf16 %v181, %v180
      %v197 = vpack.c.bf16 %v183, %v182
      %v198 = vpack.c.bf16 %v185, %v184
      %v199 = vpack.c.bf16 %v187, %v186
      %v200 = vpack.c.bf16 %v189, %v188
      %v201 = vpack.c.bf16 %v191, %v190
      %v212 = vunpack.c.l.b16 %v192
      %v213 = vunpack.c.h.b16 %v192
      %v214 = vunpack.c.l.b16 %v193
      %v215 = vunpack.c.h.b16 %v193
      %v216 = vunpack.c.l.b16 %v194
      %v217 = vunpack.c.h.b16 %v194
      %v218 = vunpack.c.l.b16 %v195
      %v219 = vunpack.c.h.b16 %v195
      %v220 = vunpack.c.l.b16 %v196
      %v221 = vunpack.c.h.b16 %v196
      %v222 = vunpack.c.l.b16 %v197
      %v223 = vunpack.c.h.b16 %v197
      %v224 = vunpack.c.l.b16 %v198
      %v225 = vunpack.c.h.b16 %v198
      %v226 = vunpack.c.l.b16 %v199
      %v227 = vunpack.c.h.b16 %v199
      %v228 = vunpack.c.l.b16 %v200
      %v229 = vunpack.c.h.b16 %v200
      %v230 = vunpack.c.l.b16 %v201
      %v231 = vunpack.c.h.b16 %v201
      %v232 = vpack.c.b16 %v212, %v212
      %v233 = vpack.c.b16 %v213, %v213
      %v234 = vpack.c.b16 %v214, %v214
      %v235 = vpack.c.b16 %v215, %v215
      %v236 = vpack.c.b16 %v216, %v216
      %v237 = vpack.c.b16 %v217, %v217
      %v238 = vpack.c.b16 %v218, %v218
      %v239 = vpack.c.b16 %v219, %v219
      %v240 = vpack.c.b16 %v220, %v220
      %v241 = vpack.c.b16 %v221, %v221
      %v242 = vpack.c.b16 %v222, %v222
      %v243 = vpack.c.b16 %v223, %v223
      %v244 = vpack.c.b16 %v224, %v224
      %v245 = vpack.c.b16 %v225, %v225
      %v246 = vpack.c.b16 %v226, %v226
      %v247 = vpack.c.b16 %v227, %v227
      %v248 = vpack.c.b16 %v228, %v228
      %v249 = vpack.c.b16 %v229, %v229
      %v250 = vpack.c.b16 %v230, %v230
      %v251 = vpack.c.b16 %v231, %v231
      %vm252 = vsmask.f32 3328
      %vm253 = vsmask.f32 7440
      %vm254 = vmor %vm252, %vm253
      %v256 = vshrl.u32 %v232, 16
      %v258 = vrot.slane %v256, 4
      %v259 = vshll.u32 %v232, 16
      %v261 = vrot.slane %v259, 5
      %v262 = vor.u32 %v258, %v261
      %v263 = vrot.slane %v262, 4
      %v265 = vshll.u32 %v233, 16
      %v267 = vrot.slane %v265, 5
      %v268 = vsel %vm254, %v263, %v267
      %v270 = vshrl.u32 %v234, 16
      %v272 = vrot.slane %v270, 4
      %v273 = vshll.u32 %v234, 16
      %v275 = vrot.slane %v273, 5
      %v276 = vor.u32 %v272, %v275
      %v277 = vrot.slane %v276, 4
      %v279 = vshll.u32 %v235, 16
      %v281 = vrot.slane %v279, 5
      %v282 = vsel %vm254, %v277, %v281
      %v284 = vshrl.u32 %v236, 16
      %v286 = vrot.slane %v284, 4
      %v287 = vshll.u32 %v236, 16
      %v289 = vrot.slane %v287, 5
      %v290 = vor.u32 %v286, %v289
      %v291 = vrot.slane %v290, 4
      %v293 = vshll.u32 %v237, 16
      %v295 = vrot.slane %v293, 5
      %v296 = vsel %vm254, %v291, %v295
      %v298 = vshrl.u32 %v238, 16
      %v300 = vrot.slane %v298, 4
      %v301 = vshll.u32 %v238, 16
      %v303 = vrot.slane %v301, 5
      %v304 = vor.u32 %v300, %v303
      %v305 = vrot.slane %v304, 4
      %v307 = vshll.u32 %v239, 16
      %v309 = vrot.slane %v307, 5
      %v310 = vsel %vm254, %v305, %v309
      %v312 = vshrl.u32 %v240, 16
      %v314 = vrot.slane %v312, 4
      %v315 = vshll.u32 %v240, 16
      %v317 = vrot.slane %v315, 5
      %v318 = vor.u32 %v314, %v317
      %v319 = vrot.slane %v318, 4
      %v321 = vshll.u32 %v241, 16
      %v323 = vrot.slane %v321, 5
      %v324 = vsel %vm254, %v319, %v323
      %v326 = vshrl.u32 %v242, 16
      %v328 = vrot.slane %v326, 4
      %v329 = vshll.u32 %v242, 16
      %v331 = vrot.slane %v329, 5
      %v332 = vor.u32 %v328, %v331
      %v333 = vrot.slane %v332, 4
      %v335 = vshll.u32 %v243, 16
      %v337 = vrot.slane %v335, 5
      %v338 = vsel %vm254, %v333, %v337
      %v340 = vshrl.u32 %v244, 16
      %v342 = vrot.slane %v340, 4
      %v343 = vshll.u32 %v244, 16
      %v345 = vrot.slane %v343, 5
      %v346 = vor.u32 %v342, %v345
      %v347 = vrot.slane %v346, 4
      %v349 = vshll.u32 %v245, 16
      %v351 = vrot.slane %v349, 5
      %v352 = vsel %vm254, %v347, %v351
      %v354 = vshrl.u32 %v246, 16
      %v356 = vrot.slane %v354, 4
      %v357 = vshll.u32 %v246, 16
      %v359 = vrot.slane %v357, 5
      %v360 = vor.u32 %v356, %v359
      %v361 = vrot.slane %v360, 4
      %v363 = vshll.u32 %v247, 16
      %v365 = vrot.slane %v363, 5
      %v366 = vsel %vm254, %v361, %v365
      %v368 = vshrl.u32 %v248, 16
      %v370 = vrot.slane %v368, 4
      %v371 = vshll.u32 %v248, 16
      %v373 = vrot.slane %v371, 5
      %v374 = vor.u32 %v370, %v373
      %v375 = vrot.slane %v374, 4
      %v377 = vshll.u32 %v249, 16
      %v379 = vrot.slane %v377, 5
      %v380 = vsel %vm254, %v375, %v379
      %v382 = vshrl.u32 %v250, 16
      %v384 = vrot.slane %v382, 4
      %v385 = vshll.u32 %v250, 16
      %v387 = vrot.slane %v385, 5
      %v388 = vor.u32 %v384, %v387
      %v389 = vrot.slane %v388, 4
      %v391 = vshll.u32 %v251, 16
      %v393 = vrot.slane %v391, 5
      %v394 = vsel %vm254, %v389, %v393
      %vm395 = vcmask 1042432
      %vm396 = vcmask 1046532
      %vm397 = vmor %vm395, %vm396
      %v398 = vrot.slane %v232, 5
      %v399 = vrot.slane %v398, 4
      %v400 = vrot.slane %v233, 5
      %v401 = vsel %vm397, %v399, %v400
      %v402 = vrot.slane %v234, 5
      %v403 = vrot.slane %v402, 4
      %v404 = vrot.slane %v235, 5
      %v405 = vsel %vm397, %v403, %v404
      %v406 = vrot.slane %v236, 5
      %v407 = vrot.slane %v406, 4
      %v408 = vrot.slane %v237, 5
      %v409 = vsel %vm397, %v407, %v408
      %v410 = vrot.slane %v238, 5
      %v411 = vrot.slane %v410, 4
      %v412 = vrot.slane %v239, 5
      %v413 = vsel %vm397, %v411, %v412
      %v414 = vrot.slane %v240, 5
      %v415 = vrot.slane %v414, 4
      %v416 = vrot.slane %v241, 5
      %v417 = vsel %vm397, %v415, %v416
      %v418 = vrot.slane %v242, 5
      %v419 = vrot.slane %v418, 4
      %v420 = vrot.slane %v243, 5
      %v421 = vsel %vm397, %v419, %v420
      %v422 = vrot.slane %v244, 5
      %v423 = vrot.slane %v422, 4
      %v424 = vrot.slane %v245, 5
      %v425 = vsel %vm397, %v423, %v424
      %v426 = vrot.slane %v246, 5
      %v427 = vrot.slane %v426, 4
      %v428 = vrot.slane %v247, 5
      %v429 = vsel %vm397, %v427, %v428
      %v430 = vrot.slane %v248, 5
      %v431 = vrot.slane %v430, 4
      %v432 = vrot.slane %v249, 5
      %v433 = vsel %vm397, %v431, %v432
      %v434 = vrot.slane %v250, 5
      %v435 = vrot.slane %v434, 4
      %v436 = vrot.slane %v251, 5
      %v437 = vsel %vm397, %v435, %v436
      %v438 = vpack.c.b16 %v214, %v212
      %v439 = vpack.c.b16 %v218, %v216
      %v440 = vpack.c.b16 %v222, %v220
      %v441 = vpack.c.b16 %v226, %v224
      %v446 = vunpack.c.l.b16 %v268
      %v447 = vunpack.c.l.b16 %v282
      %v448 = vunpack.c.l.b16 %v296
      %v449 = vunpack.c.l.b16 %v310
      %v450 = vunpack.c.l.b16 %v324
      %v451 = vunpack.c.l.b16 %v338
      %v452 = vunpack.c.l.b16 %v352
      %v453 = vunpack.c.l.b16 %v366
      %v454 = vpack.c.b16 %v447, %v446
      %v455 = vpack.c.b16 %v449, %v448
      %v456 = vpack.c.b16 %v451, %v450
      %v457 = vpack.c.b16 %v453, %v452
      %v462 = vunpack.c.l.b16 %v401
      %v463 = vunpack.c.l.b16 %v405
      %v464 = vunpack.c.l.b16 %v409
      %v465 = vunpack.c.l.b16 %v413
      %v466 = vunpack.c.l.b16 %v417
      %v467 = vunpack.c.l.b16 %v421
      %v468 = vunpack.c.l.b16 %v425
      %v469 = vunpack.c.l.b16 %v429
      %v470 = vpack.c.b16 %v463, %v462
      %v471 = vpack.c.b16 %v465, %v464
      %v472 = vpack.c.b16 %v467, %v466
      %v473 = vpack.c.b16 %v469, %v468
      %v478 = vpack.c.b16 %v216, %v214
      %v479 = vpack.c.b16 %v220, %v218
      %v480 = vpack.c.b16 %v224, %v222
      %v481 = vpack.c.b16 %v228, %v226
      %v486 = vunpack.c.l.b16 %v380
      %v487 = vpack.c.b16 %v448, %v447
      %v488 = vpack.c.b16 %v450, %v449
      %v489 = vpack.c.b16 %v452, %v451
      %v490 = vpack.c.b16 %v486, %v453
      %v495 = vunpack.c.l.b16 %v433
      %v496 = vpack.c.b16 %v464, %v463
      %v497 = vpack.c.b16 %v466, %v465
      %v498 = vpack.c.b16 %v468, %v467
      %v499 = vpack.c.b16 %v495, %v469
      %v504 = vpack.c.b16 %v230, %v228
      %v506 = vunpack.c.l.b16 %v394
      %v507 = vpack.c.b16 %v506, %v486
      %v509 = vunpack.c.l.b16 %v437
      %v510 = vpack.c.b16 %v509, %v495
      %v512 = vld [vmem:[%s1] sm:$0xf]
      %v513 = vld [vmem:[%s1 + $0x4] sm:$0xf]
      %v514 = vld [vmem:[%s1 + $0x8] sm:$0xf]
      %v515 = vld [vmem:[%s1 + $0xc] sm:$0xf]
      %v516 = vld [vmem:[%s1 + $0x10] sm:$0xf]
      %v517 = vld [vmem:[%s1 + $0x14] sm:$0xf]
      %v518 = vld [vmem:[%s1 + $0x18] sm:$0xf]
      %v519 = vld [vmem:[%s1 + $0x1c] sm:$0xf]
      %v520 = vld [vmem:[%s1 + $0x20] sm:$0xf]
      %v521 = vld [vmem:[%s1 + $0x24] sm:$0xf]
      %v522 = vld [vmem:[%s1 + $0x28] sm:$0xf]
      %v523 = vld [vmem:[%s1 + $0x2c] sm:$0xf]
      %v524 = vld [vmem:[%s1 + $0x30] sm:$0xf]
      %v525 = vld [vmem:[%s1 + $0x34] sm:$0xf]
      %v526 = vld [vmem:[%s1 + $0x38] sm:$0xf]
      %v527 = vld [vmem:[%s1 + $0x3c] sm:$0xf]
      %v528 = vld [vmem:[%s1 + $0x40] sm:$0xf]
      %v529 = vld [vmem:[%s1 + $0x44] sm:$0xf]
      %v530 = vld [vmem:[%s1 + $0x48] sm:$0xf]
      %v531 = vld [vmem:[%s1 + $0x4c] sm:$0xf]
      %v532 = vld [vmem:[%s1 + $0x50] sm:$0xf]
      %v533 = vld [vmem:[%s1 + $0x54] sm:$0xf]
      %v534 = vld [vmem:[%s1 + $0x58] sm:$0xf]
      %v535 = vld [vmem:[%s1 + $0x5c] sm:$0xf]
      %v536 = vld [vmem:[%s1 + $0x60] sm:$0xf]
      %v537 = vld [vmem:[%s1 + $0x64] sm:$0xf]
      %v538 = vld [vmem:[%s1 + $0x68] sm:$0xf]
      %v539 = vld [vmem:[%s1 + $0x6c] sm:$0xf]
      %v540 = vld [vmem:[%s1 + $0x70] sm:$0xf]
      %v541 = vld [vmem:[%s1 + $0x74] sm:$0xf]
      %v542 = vld [vmem:[%s1 + $0x78] sm:$0xf]
      %v543 = vld [vmem:[%s1 + $0x7c] sm:$0xf]
      %v544 = vld [vmem:[%s1 + $0x80] sm:$0xf]
      %v545 = vld [vmem:[%s1 + $0x84] sm:$0xf]
      %v546 = vld [vmem:[%s1 + $0x88] sm:$0xf]
      %v547 = vld [vmem:[%s1 + $0x8c] sm:$0xf]
      %v548 = vld [vmem:[%s1 + $0x90] sm:$0xf]
      %v549 = vld [vmem:[%s1 + $0x94] sm:$0xf]
      %v550 = vld [vmem:[%s1 + $0x98] sm:$0xf]
      %v551 = vld [vmem:[%s1 + $0x9c] sm:$0xf]
      %v552 = vld [vmem:[%s1 + $0xa0] sm:$0xf]
      %v553 = vld [vmem:[%s1 + $0xa4] sm:$0xf]
      %v554 = vld [vmem:[%s1 + $0xa8] sm:$0xf]
      %v555 = vld [vmem:[%s1 + $0xac] sm:$0xf]
      %v556 = vld [vmem:[%s1 + $0xb0] sm:$0xf]
      %v557 = vld [vmem:[%s1 + $0xb4] sm:$0xf]
      %v558 = vld [vmem:[%s1 + $0xb8] sm:$0xf]
      %v559 = vld [vmem:[%s1 + $0xbc] sm:$0xf]
      %v560 = vld [vmem:[%s1 + $0xc0] sm:$0xf]
      %v561 = vld [vmem:[%s1 + $0xc4] sm:$0xf]
      %v562 = vld [vmem:[%s1 + $0xc8] sm:$0xf]
      %v563 = vld [vmem:[%s1 + $0xcc] sm:$0xf]
      %v564 = vld [vmem:[%s1 + $0xd0] sm:$0xf]
      %v565 = vld [vmem:[%s1 + $0xd4] sm:$0xf]
      %v566 = vld [vmem:[%s1 + $0xd8] sm:$0xf]
      %v567 = vld [vmem:[%s1 + $0xdc] sm:$0xf]
      %v568 = vld [vmem:[%s1 + $0xe0] sm:$0xf]
      %v569 = vld [vmem:[%s1 + $0xe4] sm:$0xf]
      %v570 = vld [vmem:[%s1 + $0xe8] sm:$0xf]
      %v571 = vld [vmem:[%s1 + $0xec] sm:$0xf]
      %v572 = vld [vmem:[%s1 + $0xf0] sm:$0xf]
      %v573 = vld [vmem:[%s1 + $0xf4] sm:$0xf]
      %v574 = vld [vmem:[%s1 + $0xf8] sm:$0xf]
      %v575 = vld [vmem:[%s1 + $0xfc] sm:$0xf]
      %v576 = vld [vmem:[%s1 + $0x100] sm:$0xf]
      %v577 = vld [vmem:[%s1 + $0x104] sm:$0xf]
      %v578 = vld [vmem:[%s1 + $0x108] sm:$0xf]
      %v579 = vld [vmem:[%s1 + $0x10c] sm:$0xf]
      %v580 = vld [vmem:[%s1 + $0x110] sm:$0xf]
      %v581 = vld [vmem:[%s1 + $0x114] sm:$0xf]
      %v582 = vld [vmem:[%s1 + $0x118] sm:$0xf]
      %v583 = vld [vmem:[%s1 + $0x11c] sm:$0xf]
      %v584 = vld [vmem:[%s1 + $0x120] sm:$0xf]
      %v585 = vld [vmem:[%s1 + $0x124] sm:$0xf]
      %v586 = vld [vmem:[%s1 + $0x128] sm:$0xf]
      %v587 = vld [vmem:[%s1 + $0x12c] sm:$0xf]
      %v588 = vld [vmem:[%s1 + $0x130] sm:$0xf]
      %v589 = vld [vmem:[%s1 + $0x134] sm:$0xf]
      %v590 = vld [vmem:[%s1 + $0x138] sm:$0xf]
      %v591 = vld [vmem:[%s1 + $0x13c] sm:$0xf]
      %v592 = vld [vmem:[%s1 + $0x140] sm:$0xf]
      %v593 = vld [vmem:[%s1 + $0x144] sm:$0xf]
      %v594 = vld [vmem:[%s1 + $0x148] sm:$0xf]
      %v595 = vld [vmem:[%s1 + $0x14c] sm:$0xf]
      %v596 = vld [vmem:[%s1 + $0x150] sm:$0xf]
      %v597 = vld [vmem:[%s1 + $0x154] sm:$0xf]
      %v598 = vld [vmem:[%s1 + $0x158] sm:$0xf]
      %v599 = vld [vmem:[%s1 + $0x15c] sm:$0xf]
      %v600 = vld [vmem:[%s1 + $0x160] sm:$0xf]
      %v601 = vld [vmem:[%s1 + $0x164] sm:$0xf]
      %v602 = vld [vmem:[%s1 + $0x168] sm:$0xf]
      %v603 = vld [vmem:[%s1 + $0x16c] sm:$0xf]
      %v604 = vld [vmem:[%s1 + $0x170] sm:$0xf]
      %v605 = vld [vmem:[%s1 + $0x174] sm:$0xf]
      %v606 = vld [vmem:[%s1 + $0x178] sm:$0xf]
      %v607 = vld [vmem:[%s1 + $0x17c] sm:$0xf]
      %v608 = vld [vmem:[%s1 + $0x180] sm:$0xf]
      %v609 = vld [vmem:[%s1 + $0x184] sm:$0xf]
      %v610 = vld [vmem:[%s1 + $0x188] sm:$0xf]
      %v611 = vld [vmem:[%s1 + $0x18c] sm:$0xf]
      %v612 = vld [vmem:[%s1 + $0x190] sm:$0xf]
      %v613 = vld [vmem:[%s1 + $0x194] sm:$0xf]
      %v614 = vld [vmem:[%s1 + $0x198] sm:$0xf]
      %v615 = vld [vmem:[%s1 + $0x19c] sm:$0xf]
      %v616 = vld [vmem:[%s1 + $0x1a0] sm:$0xf]
      %v617 = vld [vmem:[%s1 + $0x1a4] sm:$0xf]
      %v618 = vld [vmem:[%s1 + $0x1a8] sm:$0xf]
      %v619 = vld [vmem:[%s1 + $0x1ac] sm:$0xf]
      %v620 = vld [vmem:[%s1 + $0x1b0] sm:$0xf]
      %v621 = vld [vmem:[%s1 + $0x1b4] sm:$0xf]
      %v622 = vld [vmem:[%s1 + $0x1b8] sm:$0xf]
      %v623 = vld [vmem:[%s1 + $0x1bc] sm:$0xf]
      %v624 = vld [vmem:[%s1 + $0x1c0] sm:$0xf]
      %v625 = vld [vmem:[%s1 + $0x1c4] sm:$0xf]
      %v626 = vld [vmem:[%s1 + $0x1c8] sm:$0xf]
      %v627 = vld [vmem:[%s1 + $0x1cc] sm:$0xf]
      %v628 = vld [vmem:[%s1 + $0x1d0] sm:$0xf]
      %v629 = vld [vmem:[%s1 + $0x1d4] sm:$0xf]
      %v630 = vld [vmem:[%s1 + $0x1d8] sm:$0xf]
      %v631 = vld [vmem:[%s1 + $0x1dc] sm:$0xf]
      %v632 = vld [vmem:[%s1 + $0x1e0] sm:$0xf]
      %v633 = vld [vmem:[%s1 + $0x1e4] sm:$0xf]
      %v634 = vld [vmem:[%s1 + $0x1e8] sm:$0xf]
      %v635 = vld [vmem:[%s1 + $0x1ec] sm:$0xf]
      %v636 = vld [vmem:[%s1 + $0x1f0] sm:$0xf]
      %v637 = vld [vmem:[%s1 + $0x1f4] sm:$0xf]
      %v638 = vld [vmem:[%s1 + $0x1f8] sm:$0xf]
      %v639 = vld [vmem:[%s1 + $0x1fc] sm:$0xf]
      %v640 = vld [vmem:[%s1 + $0x200] sm:$0xf]
      %v641 = vld [vmem:[%s1 + $0x204] sm:$0xf]
      %v642 = vld [vmem:[%s1 + $0x208] sm:$0xf]
      %v643 = vld [vmem:[%s1 + $0x20c] sm:$0xf]
      %v644 = vld [vmem:[%s1 + $0x210] sm:$0xf]
      %v645 = vld [vmem:[%s1 + $0x214] sm:$0xf]
      %v646 = vld [vmem:[%s1 + $0x218] sm:$0xf]
      %v647 = vld [vmem:[%s1 + $0x21c] sm:$0xf]
      %v648 = vld [vmem:[%s1 + $0x220] sm:$0xf]
      %v649 = vld [vmem:[%s1 + $0x224] sm:$0xf]
      %v650 = vld [vmem:[%s1 + $0x228] sm:$0xf]
      %v651 = vld [vmem:[%s1 + $0x22c] sm:$0xf]
      %v652 = vld [vmem:[%s1 + $0x230] sm:$0xf]
      %v653 = vld [vmem:[%s1 + $0x234] sm:$0xf]
      %v654 = vld [vmem:[%s1 + $0x238] sm:$0xf]
      %v655 = vld [vmem:[%s1 + $0x23c] sm:$0xf]
      %v656 = vld [vmem:[%s2] sm:$0x1]
      %v658 = vlaneseq
      %v659 = vshrl.u32 %v658, 7
      %v660 = vsub.s32 0, %v659
      %v661 = vrot.slane %v656, %v660
      %v807 = vunpack.c.l.b16 %v512
      %v808 = vunpack.c.l.b16 %v513
      %v809 = vunpack.c.l.b16 %v514
      %v810 = vunpack.c.l.b16 %v515
      %v811 = vunpack.c.l.b16 %v516
      %v812 = vunpack.c.l.b16 %v517
      %v813 = vunpack.c.l.b16 %v518
      %v814 = vunpack.c.l.b16 %v519
      %v815 = vunpack.c.l.b16 %v520
      %v816 = vunpack.c.l.b16 %v521
      %v817 = vunpack.c.l.b16 %v522
      %v818 = vunpack.c.l.b16 %v523
      %v819 = vunpack.c.l.b16 %v524
      %v820 = vunpack.c.l.b16 %v525
      %v821 = vunpack.c.l.b16 %v526
      %v822 = vunpack.c.l.b16 %v527
      %v823 = vunpack.c.l.b16 %v528
      %v824 = vunpack.c.l.b16 %v529
      %v825 = vunpack.c.l.b16 %v530
      %v826 = vunpack.c.l.b16 %v531
      %v827 = vunpack.c.l.b16 %v532
      %v828 = vunpack.c.l.b16 %v533
      %v829 = vunpack.c.l.b16 %v534
      %v830 = vunpack.c.l.b16 %v535
      %v831 = vunpack.c.l.b16 %v536
      %v832 = vunpack.c.l.b16 %v537
      %v833 = vunpack.c.l.b16 %v538
      %v834 = vunpack.c.l.b16 %v539
      %v835 = vunpack.c.l.b16 %v540
      %v836 = vunpack.c.l.b16 %v541
      %v837 = vunpack.c.l.b16 %v542
      %v838 = vunpack.c.l.b16 %v543
      %v839 = vunpack.c.l.b16 %v544
      %v840 = vunpack.c.l.b16 %v545
      %v841 = vunpack.c.l.b16 %v546
      %v842 = vunpack.c.l.b16 %v547
      %v843 = vunpack.c.l.b16 %v548
      %v844 = vunpack.c.l.b16 %v549
      %v845 = vunpack.c.l.b16 %v550
      %v846 = vunpack.c.l.b16 %v551
      %v847 = vunpack.c.l.b16 %v552
      %v848 = vunpack.c.l.b16 %v553
      %v849 = vunpack.c.l.b16 %v554
      %v850 = vunpack.c.l.b16 %v555
      %v851 = vunpack.c.l.b16 %v556
      %v852 = vunpack.c.l.b16 %v557
      %v853 = vunpack.c.l.b16 %v558
      %v854 = vunpack.c.l.b16 %v559
      %v855 = vunpack.c.l.b16 %v560
      %v856 = vunpack.c.l.b16 %v561
      %v857 = vunpack.c.l.b16 %v562
      %v858 = vunpack.c.l.b16 %v563
      %v859 = vunpack.c.l.b16 %v564
      %v860 = vunpack.c.l.b16 %v565
      %v861 = vunpack.c.l.b16 %v566
      %v862 = vunpack.c.l.b16 %v567
      %v863 = vunpack.c.l.b16 %v568
      %v864 = vunpack.c.l.b16 %v569
      %v865 = vunpack.c.l.b16 %v570
      %v866 = vunpack.c.l.b16 %v571
      %v867 = vunpack.c.l.b16 %v572
      %v868 = vunpack.c.l.b16 %v573
      %v869 = vunpack.c.l.b16 %v574
      %v870 = vunpack.c.l.b16 %v575
      %v871 = vunpack.c.l.b16 %v576
      %v872 = vunpack.c.l.b16 %v577
      %v873 = vunpack.c.l.b16 %v578
      %v874 = vunpack.c.l.b16 %v579
      %v875 = vunpack.c.l.b16 %v580
      %v876 = vunpack.c.l.b16 %v581
      %v877 = vunpack.c.l.b16 %v582
      %v878 = vunpack.c.l.b16 %v583
      %v879 = vunpack.c.l.b16 %v584
      %v880 = vunpack.c.l.b16 %v585
      %v881 = vunpack.c.l.b16 %v586
      %v882 = vunpack.c.l.b16 %v587
      %v883 = vunpack.c.l.b16 %v588
      %v884 = vunpack.c.l.b16 %v589
      %v885 = vunpack.c.l.b16 %v590
      %v886 = vunpack.c.l.b16 %v591
      %v887 = vunpack.c.l.b16 %v592
      %v888 = vunpack.c.l.b16 %v593
      %v889 = vunpack.c.l.b16 %v594
      %v890 = vunpack.c.l.b16 %v595
      %v891 = vunpack.c.l.b16 %v596
      %v892 = vunpack.c.l.b16 %v597
      %v893 = vunpack.c.l.b16 %v598
      %v894 = vunpack.c.l.b16 %v599
      %v895 = vunpack.c.l.b16 %v600
      %v896 = vunpack.c.l.b16 %v601
      %v897 = vunpack.c.l.b16 %v602
      %v898 = vunpack.c.l.b16 %v603
      %v899 = vunpack.c.l.b16 %v604
      %v900 = vunpack.c.l.b16 %v605
      %v901 = vunpack.c.l.b16 %v606
      %v902 = vunpack.c.l.b16 %v607
      %v903 = vunpack.c.l.b16 %v608
      %v904 = vunpack.c.l.b16 %v609
      %v905 = vunpack.c.l.b16 %v610
      %v906 = vunpack.c.l.b16 %v611
      %v907 = vunpack.c.l.b16 %v612
      %v908 = vunpack.c.l.b16 %v613
      %v909 = vunpack.c.l.b16 %v614
      %v910 = vunpack.c.l.b16 %v615
      %v911 = vunpack.c.l.b16 %v616
      %v912 = vunpack.c.l.b16 %v617
      %v913 = vunpack.c.l.b16 %v618
      %v914 = vunpack.c.l.b16 %v619
      %v915 = vunpack.c.l.b16 %v620
      %v916 = vunpack.c.l.b16 %v621
      %v917 = vunpack.c.l.b16 %v622
      %v918 = vunpack.c.l.b16 %v623
      %v919 = vunpack.c.l.b16 %v624
      %v920 = vunpack.c.l.b16 %v625
      %v921 = vunpack.c.l.b16 %v626
      %v922 = vunpack.c.l.b16 %v627
      %v923 = vunpack.c.l.b16 %v628
      %v924 = vunpack.c.l.b16 %v629
      %v925 = vunpack.c.l.b16 %v630
      %v926 = vunpack.c.l.b16 %v631
      %v927 = vunpack.c.l.b16 %v632
      %v928 = vunpack.c.l.b16 %v633
      %v929 = vunpack.c.l.b16 %v634
      %v930 = vunpack.c.l.b16 %v635
      %v931 = vunpack.c.l.b16 %v636
      %v932 = vunpack.c.l.b16 %v637
      %v933 = vunpack.c.l.b16 %v638
      %v934 = vunpack.c.l.b16 %v639
      %v935 = vunpack.c.l.b16 %v640
      %v936 = vunpack.c.l.b16 %v641
      %v937 = vunpack.c.l.b16 %v642
      %v938 = vunpack.c.l.b16 %v643
      %v939 = vunpack.c.l.b16 %v644
      %v940 = vunpack.c.l.b16 %v645
      %v941 = vunpack.c.l.b16 %v646
      %v942 = vunpack.c.l.b16 %v647
      %v943 = vunpack.c.l.b16 %v648
      %v944 = vunpack.c.l.b16 %v649
      %v945 = vunpack.c.l.b16 %v650
      %v946 = vunpack.c.l.b16 %v651
      %v947 = vunpack.c.l.b16 %v652
      %v948 = vunpack.c.l.b16 %v653
      %v949 = vunpack.c.l.b16 %v654
      %v950 = vunpack.c.l.b16 %v655
      %v951 = vpack.c.b16 %v808, %v807
      %v952 = vpack.c.b16 %v810, %v809
      %v953 = vpack.c.b16 %v812, %v811
      %v954 = vpack.c.b16 %v814, %v813
      %v955 = vpack.c.b16 %v816, %v815
      %v956 = vpack.c.b16 %v818, %v817
      %v957 = vpack.c.b16 %v820, %v819
      %v958 = vpack.c.b16 %v822, %v821
      %v959 = vpack.c.b16 %v824, %v823
      %v960 = vpack.c.b16 %v826, %v825
      %v961 = vpack.c.b16 %v828, %v827
      %v962 = vpack.c.b16 %v830, %v829
      %v963 = vpack.c.b16 %v832, %v831
      %v964 = vpack.c.b16 %v834, %v833
      %v965 = vpack.c.b16 %v836, %v835
      %v966 = vpack.c.b16 %v838, %v837
      %v967 = vpack.c.b16 %v840, %v839
      %v968 = vpack.c.b16 %v842, %v841
      %v969 = vpack.c.b16 %v844, %v843
      %v970 = vpack.c.b16 %v846, %v845
      %v971 = vpack.c.b16 %v848, %v847
      %v972 = vpack.c.b16 %v850, %v849
      %v973 = vpack.c.b16 %v852, %v851
      %v974 = vpack.c.b16 %v854, %v853
      %v975 = vpack.c.b16 %v856, %v855
      %v976 = vpack.c.b16 %v858, %v857
      %v977 = vpack.c.b16 %v860, %v859
      %v978 = vpack.c.b16 %v862, %v861
      %v979 = vpack.c.b16 %v864, %v863
      %v980 = vpack.c.b16 %v866, %v865
      %v981 = vpack.c.b16 %v868, %v867
      %v982 = vpack.c.b16 %v870, %v869
      %v983 = vpack.c.b16 %v872, %v871
      %v984 = vpack.c.b16 %v874, %v873
      %v985 = vpack.c.b16 %v876, %v875
      %v986 = vpack.c.b16 %v878, %v877
      %v987 = vpack.c.b16 %v880, %v879
      %v988 = vpack.c.b16 %v882, %v881
      %v989 = vpack.c.b16 %v884, %v883
      %v990 = vpack.c.b16 %v886, %v885
      %v991 = vpack.c.b16 %v888, %v887
      %v992 = vpack.c.b16 %v890, %v889
      %v993 = vpack.c.b16 %v892, %v891
      %v994 = vpack.c.b16 %v894, %v893
      %v995 = vpack.c.b16 %v896, %v895
      %v996 = vpack.c.b16 %v898, %v897
      %v997 = vpack.c.b16 %v900, %v899
      %v998 = vpack.c.b16 %v902, %v901
      %v999 = vpack.c.b16 %v904, %v903
      %v1000 = vpack.c.b16 %v906, %v905
      %v1001 = vpack.c.b16 %v908, %v907
      %v1002 = vpack.c.b16 %v910, %v909
      %v1003 = vpack.c.b16 %v912, %v911
      %v1004 = vpack.c.b16 %v914, %v913
      %v1005 = vpack.c.b16 %v916, %v915
      %v1006 = vpack.c.b16 %v918, %v917
      %v1007 = vpack.c.b16 %v920, %v919
      %v1008 = vpack.c.b16 %v922, %v921
      %v1009 = vpack.c.b16 %v924, %v923
      %v1010 = vpack.c.b16 %v926, %v925
      %v1011 = vpack.c.b16 %v928, %v927
      %v1012 = vpack.c.b16 %v930, %v929
      %v1013 = vpack.c.b16 %v932, %v931
      %v1014 = vpack.c.b16 %v934, %v933
      %v1015 = vpack.c.b16 %v936, %v935
      %v1016 = vpack.c.b16 %v938, %v937
      %v1017 = vpack.c.b16 %v940, %v939
      %v1018 = vpack.c.b16 %v942, %v941
      %v1019 = vpack.c.b16 %v944, %v943
      %v1020 = vpack.c.b16 %v946, %v945
      %v1021 = vpack.c.b16 %v948, %v947
      %v1022 = vpack.c.b16 %v950, %v949
      %1095 = vmatprep.subr.bf16.mxu0 0
      %1096 = vmatpush1.bf16.msra.mxu0 %v958
      %1097 = vmatprep.subr.bf16.mxu0 0
      %1098 = vmatpush1.bf16.msra.mxu0 %v957
      %1099 = vmatprep.subr.bf16.mxu0 0
      %1100 = vmatpush1.bf16.msra.mxu0 %v956
      %1101 = vmatprep.subr.bf16.mxu0 0
      %1102 = vmatpush1.bf16.msra.mxu0 %v955
      %1103 = vmatprep.subr.bf16.mxu0 0
      %1104 = vmatpush1.bf16.msra.mxu0 %v954
      %1105 = vmatprep.subr.bf16.mxu0 0
      %1106 = vmatpush1.bf16.msra.mxu0 %v953
      %1107 = vmatprep.subr.bf16.mxu0 0
      %1108 = vmatpush1.bf16.msra.mxu0 %v952
      %1109 = vmatprep.subr.bf16.mxu0 0
      %1110 = vmatpush1.bf16.msra.mxu0 %v951
      %1111 = vmatprep.subr.bf16.mxu0 0
      %1112 = vmatpush2.bf16.msra.mxu0 %v966
      %1113 = vmatprep.subr.bf16.mxu0 0
      %1114 = vmatpush2.bf16.msra.mxu0 %v965
      %1115 = vmatprep.subr.bf16.mxu0 0
      %1116 = vmatpush2.bf16.msra.mxu0 %v964
      %1117 = vmatprep.subr.bf16.mxu0 0
      %1118 = vmatpush2.bf16.msra.mxu0 %v963
      %1119 = vmatprep.subr.bf16.mxu0 0
      %1120 = vmatpush2.bf16.msra.mxu0 %v962
      %1121 = vmatprep.subr.bf16.mxu0 0
      %1122 = vmatpush2.bf16.msra.mxu0 %v961
      %1123 = vmatprep.subr.bf16.mxu0 0
      %1124 = vmatpush2.bf16.msra.mxu0 %v960
      %1125 = vmatprep.subr.bf16.mxu0 0
      %1126 = vmatpush2.bf16.msra.mxu0 %v959
      %1127 = vmatprep.mubr.bf16.mxu0 %v454
      %1128 = vmatmul.mubr.bf16.gmra.mxu0 %v438
      %v1129 = vpop.f32.mrf.mxu0
      %v1130 = vadd.f32 %v661, %v1129
      %v1131 = vpop.f32.mrf.mxu0
      %v1132 = vpop.f32.mrf.mxu0
      %v1133 = vadd.f32 %v661, %v1132
      %v1134 = vpop.f32.mrf.mxu0
      %1135 = vmatprep.mubr.bf16.mxu0 %v455
      %1136 = vmatmul.mubr.bf16.gmra.mxu0 %v439
      %v1137 = vpop.f32.mrf.mxu0
      %v1138 = vadd.f32 %v661, %v1137
      %v1139 = vpop.f32.mrf.mxu0
      %v1140 = vpop.f32.mrf.mxu0
      %v1141 = vadd.f32 %v661, %v1140
      %v1142 = vpop.f32.mrf.mxu0
      %1143 = vmatprep.mubr.bf16.mxu0 %v456
      %1144 = vmatmul.mubr.bf16.gmra.mxu0 %v440
      %v1145 = vpop.f32.mrf.mxu0
      %v1146 = vadd.f32 %v661, %v1145
      %v1147 = vpop.f32.mrf.mxu0
      %v1148 = vpop.f32.mrf.mxu0
      %v1149 = vadd.f32 %v661, %v1148
      %v1150 = vpop.f32.mrf.mxu0
      %1151 = vmatprep.mubr.bf16.mxu0 %v457
      %1152 = vmatmul.mubr.bf16.gmra.mxu0 %v441
      %v1153 = vpop.f32.mrf.mxu0
      %v1154 = vadd.f32 %v661, %v1153
      %v1155 = vpop.f32.mrf.mxu0
      %v1156 = vpop.f32.mrf.mxu0
      %v1157 = vadd.f32 %v661, %v1156
      %v1158 = vpop.f32.mrf.mxu0
      %1159 = vdwg.mxu0
      %1160 = vmatprep.subr.bf16.mxu0 0
      %1161 = vmatpush1.bf16.msra.mxu0 %v974
      %1162 = vmatprep.subr.bf16.mxu0 0
      %1163 = vmatpush1.bf16.msra.mxu0 %v973
      %1164 = vmatprep.subr.bf16.mxu0 0
      %1165 = vmatpush1.bf16.msra.mxu0 %v972
      %1166 = vmatprep.subr.bf16.mxu0 0
      %1167 = vmatpush1.bf16.msra.mxu0 %v971
      %1168 = vmatprep.subr.bf16.mxu0 0
      %1169 = vmatpush1.bf16.msra.mxu0 %v970
      %1170 = vmatprep.subr.bf16.mxu0 0
      %1171 = vmatpush1.bf16.msra.mxu0 %v969
      %1172 = vmatprep.subr.bf16.mxu0 0
      %1173 = vmatpush1.bf16.msra.mxu0 %v968
      %1174 = vmatprep.subr.bf16.mxu0 0
      %1175 = vmatpush1.bf16.msra.mxu0 %v967
      %1176 = vmatprep.subr.bf16.mxu0 0
      %1177 = vmatpush2.bf16.msra.mxu0 %v982
      %1178 = vmatprep.subr.bf16.mxu0 0
      %1179 = vmatpush2.bf16.msra.mxu0 %v981
      %1180 = vmatprep.subr.bf16.mxu0 0
      %1181 = vmatpush2.bf16.msra.mxu0 %v980
      %1182 = vmatprep.subr.bf16.mxu0 0
      %1183 = vmatpush2.bf16.msra.mxu0 %v979
      %1184 = vmatprep.subr.bf16.mxu0 0
      %1185 = vmatpush2.bf16.msra.mxu0 %v978
      %1186 = vmatprep.subr.bf16.mxu0 0
      %1187 = vmatpush2.bf16.msra.mxu0 %v977
      %1188 = vmatprep.subr.bf16.mxu0 0
      %1189 = vmatpush2.bf16.msra.mxu0 %v976
      %1190 = vmatprep.subr.bf16.mxu0 0
      %1191 = vmatpush2.bf16.msra.mxu0 %v975
      %1192 = vmatprep.mubr.bf16.mxu0 %v478
      %1193 = vmatmul.mubr.bf16.gmra.mxu0 %v470
      %v1194 = vpop.f32.mrf.mxu0
      %v1195 = vadd.f32 %v1130, %v1194
      %v1196 = vpop.f32.mrf.mxu0
      %v1197 = vpop.f32.mrf.mxu0
      %v1198 = vadd.f32 %v1133, %v1197
      %v1199 = vpop.f32.mrf.mxu0
      %1200 = vmatprep.mubr.bf16.mxu0 %v479
      %1201 = vmatmul.mubr.bf16.gmra.mxu0 %v471
      %v1202 = vpop.f32.mrf.mxu0
      %v1203 = vadd.f32 %v1138, %v1202
      %v1204 = vpop.f32.mrf.mxu0
      %v1205 = vpop.f32.mrf.mxu0
      %v1206 = vadd.f32 %v1141, %v1205
      %v1207 = vpop.f32.mrf.mxu0
      %1208 = vmatprep.mubr.bf16.mxu0 %v480
      %1209 = vmatmul.mubr.bf16.gmra.mxu0 %v472
      %v1210 = vpop.f32.mrf.mxu0
      %v1211 = vadd.f32 %v1146, %v1210
      %v1212 = vpop.f32.mrf.mxu0
      %v1213 = vpop.f32.mrf.mxu0
      %v1214 = vadd.f32 %v1149, %v1213
      %v1215 = vpop.f32.mrf.mxu0
      %1216 = vmatprep.mubr.bf16.mxu0 %v481
      %1217 = vmatmul.mubr.bf16.gmra.mxu0 %v473
      %v1218 = vpop.f32.mrf.mxu0
      %v1219 = vadd.f32 %v1154, %v1218
      %v1220 = vpop.f32.mrf.mxu0
      %v1221 = vpop.f32.mrf.mxu0
      %v1222 = vadd.f32 %v1157, %v1221
      %v1223 = vpop.f32.mrf.mxu0
      %1224 = vdwg.mxu0
      %1225 = vmatprep.subr.bf16.mxu0 0
      %1226 = vmatpush1.bf16.msra.mxu0 %v990
      %1227 = vmatprep.subr.bf16.mxu0 0
      %1228 = vmatpush1.bf16.msra.mxu0 %v989
      %1229 = vmatprep.subr.bf16.mxu0 0
      %1230 = vmatpush1.bf16.msra.mxu0 %v988
      %1231 = vmatprep.subr.bf16.mxu0 0
      %1232 = vmatpush1.bf16.msra.mxu0 %v987
      %1233 = vmatprep.subr.bf16.mxu0 0
      %1234 = vmatpush1.bf16.msra.mxu0 %v986
      %1235 = vmatprep.subr.bf16.mxu0 0
      %1236 = vmatpush1.bf16.msra.mxu0 %v985
      %1237 = vmatprep.subr.bf16.mxu0 0
      %1238 = vmatpush1.bf16.msra.mxu0 %v984
      %1239 = vmatprep.subr.bf16.mxu0 0
      %1240 = vmatpush1.bf16.msra.mxu0 %v983
      %1241 = vmatprep.subr.bf16.mxu0 0
      %1242 = vmatpush2.bf16.msra.mxu0 %v998
      %1243 = vmatprep.subr.bf16.mxu0 0
      %1244 = vmatpush2.bf16.msra.mxu0 %v997
      %1245 = vmatprep.subr.bf16.mxu0 0
      %1246 = vmatpush2.bf16.msra.mxu0 %v996
      %1247 = vmatprep.subr.bf16.mxu0 0
      %1248 = vmatpush2.bf16.msra.mxu0 %v995
      %1249 = vmatprep.subr.bf16.mxu0 0
      %1250 = vmatpush2.bf16.msra.mxu0 %v994
      %1251 = vmatprep.subr.bf16.mxu0 0
      %1252 = vmatpush2.bf16.msra.mxu0 %v993
      %1253 = vmatprep.subr.bf16.mxu0 0
      %1254 = vmatpush2.bf16.msra.mxu0 %v992
      %1255 = vmatprep.subr.bf16.mxu0 0
      %1256 = vmatpush2.bf16.msra.mxu0 %v991
      %1257 = vmatprep.mubr.bf16.mxu0 %v496
      %1258 = vmatmul.mubr.bf16.gmra.mxu0 %v487
      %v1259 = vpop.f32.mrf.mxu0
      %v1260 = vadd.f32 %v1195, %v1259
      %v1261 = vpop.f32.mrf.mxu0
      %v1262 = vpop.f32.mrf.mxu0
      %v1263 = vadd.f32 %v1198, %v1262
      %v1264 = vpop.f32.mrf.mxu0
      %1265 = vmatprep.mubr.bf16.mxu0 %v497
      %1266 = vmatmul.mubr.bf16.gmra.mxu0 %v488
      %v1267 = vpop.f32.mrf.mxu0
      %v1268 = vadd.f32 %v1203, %v1267
      %v1269 = vpop.f32.mrf.mxu0
      %v1270 = vpop.f32.mrf.mxu0
      %v1271 = vadd.f32 %v1206, %v1270
      %v1272 = vpop.f32.mrf.mxu0
      %1273 = vmatprep.mubr.bf16.mxu0 %v498
      %1274 = vmatmul.mubr.bf16.gmra.mxu0 %v489
      %v1275 = vpop.f32.mrf.mxu0
      %v1276 = vadd.f32 %v1211, %v1275
      %v1277 = vpop.f32.mrf.mxu0
      %v1278 = vpop.f32.mrf.mxu0
      %v1279 = vadd.f32 %v1214, %v1278
      %v1280 = vpop.f32.mrf.mxu0
      %1281 = vmatprep.mubr.bf16.mxu0 %v499
      %1282 = vmatmul.mubr.bf16.gmra.mxu0 %v490
      %v1283 = vpop.f32.mrf.mxu0
      %v1284 = vadd.f32 %v1219, %v1283
      %v1285 = vpop.f32.mrf.mxu0
      %v1286 = vpop.f32.mrf.mxu0
      %v1287 = vadd.f32 %v1222, %v1286
      %v1288 = vpop.f32.mrf.mxu0
      %1289 = vdwg.mxu0
      %1290 = vmatprep.subr.bf16.mxu0 0
      %1291 = vmatpush1.bf16.msra.mxu0 %v1006
      %1292 = vmatprep.subr.bf16.mxu0 0
      %1293 = vmatpush1.bf16.msra.mxu0 %v1005
      %1294 = vmatprep.subr.bf16.mxu0 0
      %1295 = vmatpush1.bf16.msra.mxu0 %v1004
      %1296 = vmatprep.subr.bf16.mxu0 0
      %1297 = vmatpush1.bf16.msra.mxu0 %v1003
      %1298 = vmatprep.subr.bf16.mxu0 0
      %1299 = vmatpush1.bf16.msra.mxu0 %v1002
      %1300 = vmatprep.subr.bf16.mxu0 0
      %1301 = vmatpush1.bf16.msra.mxu0 %v1001
      %1302 = vmatprep.subr.bf16.mxu0 0
      %1303 = vmatpush1.bf16.msra.mxu0 %v1000
      %1304 = vmatprep.subr.bf16.mxu0 0
      %1305 = vmatpush1.bf16.msra.mxu0 %v999
      %1306 = vmatprep.subr.bf16.mxu0 0
      %1307 = vmatpush2.bf16.msra.mxu0 %v1014
      %1308 = vmatprep.subr.bf16.mxu0 0
      %1309 = vmatpush2.bf16.msra.mxu0 %v1013
      %1310 = vmatprep.subr.bf16.mxu0 0
      %1311 = vmatpush2.bf16.msra.mxu0 %v1012
      %1312 = vmatprep.subr.bf16.mxu0 0
      %1313 = vmatpush2.bf16.msra.mxu0 %v1011
      %1314 = vmatprep.subr.bf16.mxu0 0
      %1315 = vmatpush2.bf16.msra.mxu0 %v1010
      %1316 = vmatprep.subr.bf16.mxu0 0
      %1317 = vmatpush2.bf16.msra.mxu0 %v1009
      %1318 = vmatprep.subr.bf16.mxu0 0
      %1319 = vmatpush2.bf16.msra.mxu0 %v1008
      %1320 = vmatprep.subr.bf16.mxu0 0
      %1321 = vmatpush2.bf16.msra.mxu0 %v1007
      %1322 = vmatprep.mubr.bf16.mxu0 %v455
      %1323 = vmatmul.mubr.bf16.gmra.mxu0 %v439
      %v1324 = vpop.f32.mrf.mxu0
      %v1325 = vadd.f32 %v1260, %v1324
      %v1326 = vpop.f32.mrf.mxu0
      %v1327 = vpop.f32.mrf.mxu0
      %v1328 = vadd.f32 %v1263, %v1327
      %v1329 = vpop.f32.mrf.mxu0
      %1330 = vmatprep.mubr.bf16.mxu0 %v456
      %1331 = vmatmul.mubr.bf16.gmra.mxu0 %v440
      %v1332 = vpop.f32.mrf.mxu0
      %v1333 = vadd.f32 %v1268, %v1332
      %v1334 = vpop.f32.mrf.mxu0
      %v1335 = vpop.f32.mrf.mxu0
      %v1336 = vadd.f32 %v1271, %v1335
      %v1337 = vpop.f32.mrf.mxu0
      %1338 = vmatprep.mubr.bf16.mxu0 %v457
      %1339 = vmatmul.mubr.bf16.gmra.mxu0 %v441
      %v1340 = vpop.f32.mrf.mxu0
      %v1341 = vadd.f32 %v1276, %v1340
      %v1342 = vpop.f32.mrf.mxu0
      %v1343 = vpop.f32.mrf.mxu0
      %v1344 = vadd.f32 %v1279, %v1343
      %v1345 = vpop.f32.mrf.mxu0
      %1346 = vmatprep.mubr.bf16.mxu0 %v507
      %1347 = vmatmul.mubr.bf16.gmra.mxu0 %v504
      %v1348 = vpop.f32.mrf.mxu0
      %v1349 = vadd.f32 %v1284, %v1348
      %v1350 = vpop.f32.mrf.mxu0
      %v1351 = vpop.f32.mrf.mxu0
      %v1352 = vadd.f32 %v1287, %v1351
      %v1353 = vpop.f32.mrf.mxu0
      %1354 = vdwg.mxu0
      %1355 = vmatprep.subr.bf16.mxu0 0
      %1356 = vmatpush1.bf16.msra.mxu0 %v1022
      %1357 = vmatprep.subr.bf16.mxu0 0
      %1358 = vmatpush1.bf16.msra.mxu0 %v1021
      %1359 = vmatprep.subr.bf16.mxu0 0
      %1360 = vmatpush1.bf16.msra.mxu0 %v1020
      %1361 = vmatprep.subr.bf16.mxu0 0
      %1362 = vmatpush1.bf16.msra.mxu0 %v1019
      %1363 = vmatprep.subr.bf16.mxu0 0
      %1364 = vmatpush1.bf16.msra.mxu0 %v1018
      %1365 = vmatprep.subr.bf16.mxu0 0
      %1366 = vmatpush1.bf16.msra.mxu0 %v1017
      %1367 = vmatprep.subr.bf16.mxu0 0
      %1368 = vmatpush1.bf16.msra.mxu0 %v1016
      %1369 = vmatprep.subr.bf16.mxu0 0
      %1370 = vmatpush1.bf16.msra.mxu0 %v1015
      %1371 = vmatprep.subr.bf16.mxu0 0
      %1372 = vmatpush2.bf16.msra.mxu0 0
      %1373 = vmatprep.subr.bf16.mxu0 0
      %1374 = vmatpush2.bf16.msra.mxu0 0
      %1375 = vmatprep.subr.bf16.mxu0 0
      %1376 = vmatpush2.bf16.msra.mxu0 0
      %1377 = vmatprep.subr.bf16.mxu0 0
      %1378 = vmatpush2.bf16.msra.mxu0 0
      %1379 = vmatprep.subr.bf16.mxu0 0
      %1380 = vmatpush2.bf16.msra.mxu0 0
      %1381 = vmatprep.subr.bf16.mxu0 0
      %1382 = vmatpush2.bf16.msra.mxu0 0
      %1383 = vmatprep.subr.bf16.mxu0 0
      %1384 = vmatpush2.bf16.msra.mxu0 0
      %1385 = vmatprep.subr.bf16.mxu0 0
      %1386 = vmatpush2.bf16.msra.mxu0 0
      %1387 = vmatprep.mubr.bf16.mxu0 0
      %1388 = vmatmul.mubr.bf16.gmra.mxu0 %v471
      %v1389 = vpop.f32.mrf.mxu0
      %v1390 = vadd.f32 %v1325, %v1389
      %v1391 = vpop.f32.mrf.mxu0
      %v1392 = vpop.f32.mrf.mxu0
      %v1393 = vadd.f32 %v1328, %v1392
      %v1394 = vpop.f32.mrf.mxu0
      %1395 = vmatprep.mubr.bf16.mxu0 0
      %1396 = vmatmul.mubr.bf16.gmra.mxu0 %v472
      %v1397 = vpop.f32.mrf.mxu0
      %v1398 = vadd.f32 %v1333, %v1397
      %v1399 = vpop.f32.mrf.mxu0
      %v1400 = vpop.f32.mrf.mxu0
      %v1401 = vadd.f32 %v1336, %v1400
      %v1402 = vpop.f32.mrf.mxu0
      %1403 = vmatprep.mubr.bf16.mxu0 0
      %1404 = vmatmul.mubr.bf16.gmra.mxu0 %v473
      %v1405 = vpop.f32.mrf.mxu0
      %v1406 = vadd.f32 %v1341, %v1405
      %v1407 = vpop.f32.mrf.mxu0
      %v1408 = vpop.f32.mrf.mxu0
      %v1409 = vadd.f32 %v1344, %v1408
      %v1410 = vpop.f32.mrf.mxu0
      %1411 = vmatprep.mubr.bf16.mxu0 0
      %1412 = vmatmul.mubr.bf16.gmra.mxu0 %v510
      %v1413 = vpop.f32.mrf.mxu0
      %v1414 = vadd.f32 %v1349, %v1413
      %v1415 = vpop.f32.mrf.mxu0
      %v1416 = vpop.f32.mrf.mxu0
      %v1417 = vadd.f32 %v1352, %v1416
      %v1418 = vpop.f32.mrf.mxu0
      %1419 = vdwg.mxu0
      %vm1420 = vcmp.gt.f32.partialorder %v1390, 0.0
      %vm1421 = vcmp.gt.f32.partialorder %v1393, 0.0
      %vm1422 = vcmp.gt.f32.partialorder %v1398, 0.0
      %vm1423 = vcmp.gt.f32.partialorder %v1401, 0.0
      %vm1424 = vcmp.gt.f32.partialorder %v1406, 0.0
      %vm1425 = vcmp.gt.f32.partialorder %v1409, 0.0
      %vm1426 = vcmp.gt.f32.partialorder %v1414, 0.0
      %vm1427 = vcmp.gt.f32.partialorder %v1417, 0.0
      %v1428 = vmul.f32 %v1390, 0.1
      %v1429 = vmul.f32 %v1393, 0.1
      %v1430 = vmul.f32 %v1398, 0.1
      %v1431 = vmul.f32 %v1401, 0.1
      %v1432 = vmul.f32 %v1406, 0.1
      %v1433 = vmul.f32 %v1409, 0.1
      %v1434 = vmul.f32 %v1414, 0.1
      %v1435 = vmul.f32 %v1417, 0.1
      %v1436 = vsel %vm1420, %v1390, %v1428
      %v1437 = vsel %vm1421, %v1393, %v1429
      %v1438 = vsel %vm1422, %v1398, %v1430
      %v1439 = vsel %vm1423, %v1401, %v1431
      %v1440 = vsel %vm1424, %v1406, %v1432
      %v1441 = vsel %vm1425, %v1409, %v1433
      %v1442 = vsel %vm1426, %v1414, %v1434
      %v1443 = vsel %vm1427, %v1417, %v1435
      %1444 = vst [vmem:[%s170] sm:$0xff] %v1436
      %1445 = vst [vmem:[%s170 + $0x8] sm:$0xff] %v1437
      %1446 = vst [vmem:[%s170 + $0x10] sm:$0xff] %v1438
      %1447 = vst [vmem:[%s170 + $0x18] sm:$0xff] %v1439
      %1448 = vst [vmem:[%s170 + $0x20] sm:$0xff] %v1440
      %1449 = vst [vmem:[%s170 + $0x28] sm:$0xff] %v1441
      %1450 = vst [vmem:[%s170 + $0x30] sm:$0xff] %v1442
      %1451 = vst [vmem:[%s170 + $0x38] sm:$0xff] %v1443
      %p1452 = scmp.lt.s32.totalorder %s14, 1
      %s1453 = scalar_select %p1452, %s14, 1
      %s1454 = smul.addr %s1453, 8
      %s1455 = smul.addr %s1454, 8
      %s1456 = scalar_lea.vmem %s3, %s1455
      // Predicated region
      $region33: #{_forward.12} parent=31 // pred_check
        %p1457 = pneg %p100
      $region34: #{_forward.12} parent=31 // pred_check_branch
        %1459 = sbr.rel (%p1457) target = $region36
      $region35: #{_forward.12} parent=31 // pred_region
        _
      $region36: #{_forward.12} parent=31 // pred_fallthru
        _
    $region32: #{_forward.12} parent=5 // pred_fallthru
      _
    %p1460 = scmp.le.s32.totalorder 2, %s9
    // Predicated region
    $region37: #{_forward.12} parent=5 // pred_check
      %p1461 = pneg %p1460
    $region38: #{_forward.12} parent=5 // pred_check_branch
      %1463 = sbr.rel (%p1461) target = $region40
    $region39: #{_forward.12} parent=5 // pred_region
      %s1464 = ssub.s32 %s9, 2
      // Predicated region
      $region41: #{_forward.12} parent=39 // pred_check
        %p1465 = pneg %p106
      $region42: #{_forward.12} parent=39 // pred_check_branch
        %1467 = sbr.rel (%p1465) target = $region44
      $region43: #{_forward.12} parent=39 // pred_region
        %p1468 = scmp.lt.s32.totalorder %s15, 1
        %s1469 = scalar_select %p1468, %s15, 1
        %s1470 = smul.addr %s1469, 8
        %s1471 = smul.addr %s1470, 8
        %s1472 = scalar_lea.vmem %s3, %s1471
      $region44: #{_forward.12} parent=39 // pred_fallthru
        _
    $region40: #{_forward.12} parent=5 // pred_fallthru
      _
  $region6: #{_forward.12} parent=0 // loop_footer
    %s13 = sadd.s32 1, %s9
  $region7: #{_forward.12} parent=0 // loop_footer_branch
    %8 = sbr.rel target = $region3
  $region8: #{_forward.12} parent=0 // loop_exit
    _

// kernel: _forward.10
$region0: #{_forward.10}
  #allocation0 [shape = 'u32[]', space=smem, size = 0x4, offset = 0x4, fixed_abs, tag = 'smem constant byte address 0x4 - core index']
  #allocation1 [shape = 'u32[144,128]{1,0:T(1,128)}', space=vmem, size = 0x12000, scoped, tag = 'internal scratch']
  %s0 = inlined_call_operand.vmem [shape: f32[2,18,18,128], index: 0, kind: input, shape index: {}]
  %s1 = inlined_call_operand.vmem [shape: bf16[1152,128], index: 1, kind: input, shape index: {}]
  %s2 = inlined_call_operand.vmem [shape: f32[1,128], index: 2, kind: input, shape index: {}]
  %s3 = inlined_call_operand.vmem [shape: f32[2,256,128], index: 3, kind: output, shape index: {}]
  %s4 = sld [smem:[#allocation0]]
  $region45: #{_forward.10} parent=0
    _
  %s6 = ssub.s32 1, %s4
  %s7 = scalar_select 0, %s6, %s4
  loop: start=0, step=1, limit=4
  $region2: #{_forward.10} parent=0 // loop_pre_header
    _
  $region3: #{_forward.10} parent=0 // loop_header
    %s9 = sphi 0, %s13
    %p10 = scmp.ge.s32.totalorder %s9, 4
    %s19 = sphi 0, %s21
    %s22 = sphi 0, %s19
    %s23 = sphi 0, %s22
    %s39 = sphi 0, %s23
    %s43 = sphi 0, %s43
    %s45 = sphi 0, %s43
    %s46 = sphi 0, %s45
    %s60 = sphi 0, %s46
    %s64 = sphi 0, %s64
    %s66 = sphi 0, %s64
    %s67 = sphi 0, %s66
    %s81 = sphi 0, %s67
    %s87 = sphi 0, %s89
    %s90 = sphi 0, %s87
    %s91 = sphi 0, %s90
    %s107 = sphi 0, %s91
  $region4: #{_forward.10} parent=0 // loop_header_branch
    %12 = sbr.rel (%p10) target = $region8
  $region5: #{_forward.10} parent=0 // loop_body
    %s14 = ssub.s32 %s9, 1
    %s15 = ssub.s32 %s9, 2
    %s16 = sadd.s32 %s9, 1
    %s17 = ssub.s32 %s9, %s16
    %p18 = scmp.eq.s32.totalorder %s17, 0
    %s20 = sadd.s32 %s19, 1
    %s21 = scalar_select %p18, %s19, %s20
    %p24 = pneg %p18
    %p25 = scmp.eq.s32.totalorder %s9, 1
    %p26 = por %p24, %p25
    %p27 = scmp.ne.s32.totalorder %s19, %s22
    %p28 = scmp.eq.s32.totalorder %s9, 0
    %p29 = por %p27, %p28
    %p30 = scmp.ne.s32.totalorder %s19, %s22
    %p31 = scmp.eq.s32.totalorder %s14, 1
    %p32 = por %p30, %p31
    %p33 = scmp.ne.s32.totalorder %s22, %s23
    %p34 = scmp.eq.s32.totalorder %s14, 0
    %p35 = por %p33, %p34
    %p36 = scmp.ne.s32.totalorder %s22, %s23
    %p37 = scmp.eq.s32.totalorder %s15, 1
    %p38 = por %p36, %p37
    %p40 = scmp.ne.s32.totalorder %s23, %s39
    %p41 = scmp.eq.s32.totalorder %s15, 0
    %p42 = por %p40, %p41
    %s44 = sadd.s32 %s43, 1
    %p47 = scmp.eq.s32.totalorder %s9, 1
    %p48 = scmp.ne.s32.totalorder %s43, %s45
    %p49 = scmp.eq.s32.totalorder %s9, 0
    %p50 = por %p48, %p49
    %p51 = scmp.ne.s32.totalorder %s43, %s45
    %p52 = scmp.eq.s32.totalorder %s14, 1
    %p53 = por %p51, %p52
    %p54 = scmp.ne.s32.totalorder %s45, %s46
    %p55 = scmp.eq.s32.totalorder %s14, 0
    %p56 = por %p54, %p55
    %p57 = scmp.ne.s32.totalorder %s45, %s46
    %p58 = scmp.eq.s32.totalorder %s15, 1
    %p59 = por %p57, %p58
    %p61 = scmp.ne.s32.totalorder %s46, %s60
    %p62 = scmp.eq.s32.totalorder %s15, 0
    %p63 = por %p61, %p62
    %s65 = sadd.s32 %s64, 1
    %p68 = scmp.eq.s32.totalorder %s9, 1
    %p69 = scmp.ne.s32.totalorder %s64, %s66
    %p70 = scmp.eq.s32.totalorder %s9, 0
    %p71 = por %p69, %p70
    %p72 = scmp.ne.s32.totalorder %s64, %s66
    %p73 = scmp.eq.s32.totalorder %s14, 1
    %p74 = por %p72, %p73
    %p75 = scmp.ne.s32.totalorder %s66, %s67
    %p76 = scmp.eq.s32.totalorder %s14, 0
    %p77 = por %p75, %p76
    %p78 = scmp.ne.s32.totalorder %s66, %s67
    %p79 = scmp.eq.s32.totalorder %s15, 1
    %p80 = por %p78, %p79
    %p82 = scmp.ne.s32.totalorder %s67, %s81
    %p83 = scmp.eq.s32.totalorder %s15, 0
    %p84 = por %p82, %p83
    %s85 = ssub.s32 %s9, %s16
    %p86 = scmp.eq.s32.totalorder %s85, 0
    %s88 = sadd.s32 %s87, 1
    %s89 = scalar_select %p86, %s87, %s88
    %p92 = pneg %p86
    %p93 = scmp.eq.s32.totalorder %s9, 1
    %p94 = por %p92, %p93
    %p95 = scmp.ne.s32.totalorder %s87, %s90
    %p96 = scmp.eq.s32.totalorder %s9, 0
    %p97 = por %p95, %p96
    %p98 = scmp.ne.s32.totalorder %s87, %s90
    %p99 = scmp.eq.s32.totalorder %s14, 1
    %p100 = por %p98, %p99
    %p101 = scmp.ne.s32.totalorder %s90, %s91
    %p102 = scmp.eq.s32.totalorder %s14, 0
    %p103 = por %p101, %p102
    %p104 = scmp.ne.s32.totalorder %s90, %s91
    %p105 = scmp.eq.s32.totalorder %s15, 1
    %p106 = por %p104, %p105
    %p108 = scmp.ne.s32.totalorder %s91, %s107
    %p109 = scmp.eq.s32.totalorder %s15, 0
    %p110 = por %p108, %p109
    %p111 = scmp.le.s32.totalorder 1, %s9
    %p112 = scmp.lt.s32.totalorder %s9, 3
    %p113 = pnand %p111, %p112
    %p114 = pneg %p113
    // Predicated region
    $region9: #{_forward.10} parent=5 // pred_check
      _
    $region10: #{_forward.10} parent=5 // pred_check_branch
      %116 = sbr.rel (%p113) target = $region12
    $region11: #{_forward.10} parent=5 // pred_region
      %s117 = ssub.s32 %s9, 1
      // Predicated region
      $region13: #{_forward.10} parent=11 // pred_check
        %p118 = pneg %p56
      $region14: #{_forward.10} parent=11 // pred_check_branch
        %120 = sbr.rel (%p118) target = $region16
      $region15: #{_forward.10} parent=11 // pred_region
        _
      $region16: #{_forward.10} parent=11 // pred_fallthru
        _
      // Predicated region
      $region17: #{_forward.10} parent=11 // pred_check
        %p121 = pneg %p77
      $region18: #{_forward.10} parent=11 // pred_check_branch
        %123 = sbr.rel (%p121) target = $region20
      $region19: #{_forward.10} parent=11 // pred_region
        _
      $region20: #{_forward.10} parent=11 // pred_fallthru
        _
    $region12: #{_forward.10} parent=5 // pred_fallthru
      _
    %p124 = scmp.lt.s32.totalorder %s9, 2
    // Predicated region
    $region21: #{_forward.10} parent=5 // pred_check
      %p125 = pneg %p124
    $region22: #{_forward.10} parent=5 // pred_check_branch
      %127 = sbr.rel (%p125) target = $region24
    $region23: #{_forward.10} parent=5 // pred_region
      // Predicated region
      $region25: #{_forward.10} parent=23 // pred_check
        %p128 = pneg %p29
      $region26: #{_forward.10} parent=23 // pred_check_branch
        %130 = sbr.rel (%p128) target = $region28
      $region27: #{_forward.10} parent=23 // pred_region
        %p131 = scmp.lt.s32.totalorder %s9, 1
        %s132 = scalar_select %p131, %s9, 1
        %s133 = smul.addr %s132, 54
        %s134 = smul.addr %s133, 8
        %s135 = scalar_lea.vmem %s0, %s134
      $region28: #{_forward.10} parent=23 // pred_fallthru
        _
    $region24: #{_forward.10} parent=5 // pred_fallthru
      _
    %p136 = scmp.le.s32.totalorder 1, %s9
    %p137 = scmp.lt.s32.totalorder %s9, 3
    %p138 = pnand %p136, %p137
    %p139 = pneg %p138
    // Predicated region
    $region29: #{_forward.10} parent=5 // pred_check
      _
    $region30: #{_forward.10} parent=5 // pred_check_branch
      %141 = sbr.rel (%p138) target = $region32
    $region31: #{_forward.10} parent=5 // pred_region
      %s142 = ssub.s32 %s9, 1
      %p143 = scmp.lt.s32.totalorder %s14, 1
      %s144 = scalar_select %p143, %s14, 1
      %s145 = smul.addr %s144, 54
      %s146 = smul.addr %s145, 8
      %s147 = scalar_lea.vmem %s0, %s146
      %p148 = pneg %p35
      %p149 = pneg %p32
      %p150 = pneg %p56
      %p151 = pneg %p53
      %p152 = pneg %p77
      %p153 = pneg %p74
      %p154 = pneg %p103
      %p155 = pneg %p100
      %p156 = scmp.lt.s32.totalorder %s14, 1
      %s157 = scalar_select %p156, %s14, 1
      %s158 = smul.addr %s157, 32
      %s159 = smul.addr %s158, 8
      %s160 = scalar_lea.vmem %s3, %s159
      %p161 = scmp.lt.s32.totalorder %s14, 1
      %s162 = scalar_select %p161, %s14, 1
      %s163 = smul.addr %s162, 54
      %s164 = smul.addr %s163, 8
      %s165 = scalar_lea.vmem %s0, %s164
      %p166 = scmp.lt.s32.totalorder %s14, 1
      %s167 = scalar_select %p166, %s14, 1
      %s168 = smul.addr %s167, 32
      %s169 = smul.addr %s168, 8
      %s170 = scalar_lea.vmem %s3, %s169
      %v172 = vld [vmem:[%s165] sm:$0xff]
      %v173 = vld [vmem:[%s165 + $0x8] sm:$0xff]
      %v174 = vld [vmem:[%s165 + $0x10] sm:$0x3]
      %v175 = vld [vmem:[%s165 + $0x18] sm:$0xff]
      %v176 = vld [vmem:[%s165 + $0x20] sm:$0xff]
      %v177 = vld [vmem:[%s165 + $0x28] sm:$0x3]
      %v178 = vld [vmem:[%s165 + $0x30] sm:$0xff]
      %v179 = vld [vmem:[%s165 + $0x38] sm:$0xff]
      %v180 = vld [vmem:[%s165 + $0x40] sm:$0x3]
      %v181 = vld [vmem:[%s165 + $0x48] sm:$0xff]
      %v182 = vld [vmem:[%s165 + $0x50] sm:$0xff]
      %v183 = vld [vmem:[%s165 + $0x58] sm:$0x3]
      %v184 = vld [vmem:[%s165 + $0x60] sm:$0xff]
      %v185 = vld [vmem:[%s165 + $0x68] sm:$0xff]
      %v186 = vld [vmem:[%s165 + $0x70] sm:$0x3]
      %v187 = vld [vmem:[%s165 + $0x78] sm:$0xff]
      %v188 = vld [vmem:[%s165 + $0x80] sm:$0xff]
      %v189 = vld [vmem:[%s165 + $0x88] sm:$0x3]
      %v190 = vld [vmem:[%s165 + $0x90] sm:$0xff]
      %v191 = vld [vmem:[%s165 + $0x98] sm:$0xff]
      %v192 = vld [vmem:[%s165 + $0xa0] sm:$0x3]
      %v193 = vld [vmem:[%s165 + $0xa8] sm:$0xff]
      %v194 = vld [vmem:[%s165 + $0xb0] sm:$0xff]
      %v195 = vld [vmem:[%s165 + $0xb8] sm:$0x3]
      %v196 = vld [vmem:[%s165 + $0xc0] sm:$0xff]
      %v197 = vld [vmem:[%s165 + $0xc8] sm:$0xff]
      %v198 = vld [vmem:[%s165 + $0xd0] sm:$0x3]
      %v199 = vld [vmem:[%s165 + $0xd8] sm:$0xff]
      %v200 = vld [vmem:[%s165 + $0xe0] sm:$0xff]
      %v201 = vld [vmem:[%s165 + $0xe8] sm:$0x3]
      %v202 = vld [vmem:[%s165 + $0xf0] sm:$0xff]
      %v203 = vld [vmem:[%s165 + $0xf8] sm:$0xff]
      %v204 = vld [vmem:[%s165 + $0x100] sm:$0x3]
      %v205 = vld [vmem:[%s165 + $0x108] sm:$0xff]
      %v206 = vld [vmem:[%s165 + $0x110] sm:$0xff]
      %v207 = vld [vmem:[%s165 + $0x118] sm:$0x3]
      %v208 = vld [vmem:[%s165 + $0x120] sm:$0xff]
      %v209 = vld [vmem:[%s165 + $0x128] sm:$0xff]
      %v210 = vld [vmem:[%s165 + $0x130] sm:$0x3]
      %v211 = vld [vmem:[%s165 + $0x138] sm:$0xff]
      %v212 = vld [vmem:[%s165 + $0x140] sm:$0xff]
      %v213 = vld [vmem:[%s165 + $0x148] sm:$0x3]
      %v214 = vld [vmem:[%s165 + $0x150] sm:$0xff]
      %v215 = vld [vmem:[%s165 + $0x158] sm:$0xff]
      %v216 = vld [vmem:[%s165 + $0x160] sm:$0x3]
      %v217 = vld [vmem:[%s165 + $0x168] sm:$0xff]
      %v218 = vld [vmem:[%s165 + $0x170] sm:$0xff]
      %v219 = vld [vmem:[%s165 + $0x178] sm:$0x3]
      %v220 = vld [vmem:[%s165 + $0x180] sm:$0xff]
      %v221 = vld [vmem:[%s165 + $0x188] sm:$0xff]
      %v222 = vld [vmem:[%s165 + $0x190] sm:$0x3]
      %v223 = vld [vmem:[%s165 + $0x198] sm:$0xff]
      %v224 = vld [vmem:[%s165 + $0x1a0] sm:$0xff]
      %v225 = vld [vmem:[%s165 + $0x1a8] sm:$0x3]
      %v226 = vpack.c.bf16 %v173, %v172
      %v227 = vpack.c.bf16 %v174, %v174
      %v228 = vpack.c.bf16 %v176, %v175
      %v229 = vpack.c.bf16 %v177, %v177
      %v230 = vpack.c.bf16 %v179, %v178
      %v231 = vpack.c.bf16 %v180, %v180
      %v232 = vpack.c.bf16 %v182, %v181
      %v233 = vpack.c.bf16 %v183, %v183
      %v234 = vpack.c.bf16 %v185, %v184
      %v235 = vpack.c.bf16 %v186, %v186
      %v236 = vpack.c.bf16 %v188, %v187
      %v237 = vpack.c.bf16 %v189, %v189
      %v238 = vpack.c.bf16 %v191, %v190
      %v239 = vpack.c.bf16 %v192, %v192
      %v240 = vpack.c.bf16 %v194, %v193
      %v241 = vpack.c.bf16 %v195, %v195
      %v242 = vpack.c.bf16 %v197, %v196
      %v243 = vpack.c.bf16 %v198, %v198
      %v244 = vpack.c.bf16 %v200, %v199
      %v245 = vpack.c.bf16 %v201, %v201
      %v246 = vpack.c.bf16 %v203, %v202
      %v247 = vpack.c.bf16 %v204, %v204
      %v248 = vpack.c.bf16 %v206, %v205
      %v249 = vpack.c.bf16 %v207, %v207
      %v250 = vpack.c.bf16 %v209, %v208
      %v251 = vpack.c.bf16 %v210, %v210
      %v252 = vpack.c.bf16 %v212, %v211
      %v253 = vpack.c.bf16 %v213, %v213
      %v254 = vpack.c.bf16 %v215, %v214
      %v255 = vpack.c.bf16 %v216, %v216
      %v256 = vpack.c.bf16 %v218, %v217
      %v257 = vpack.c.bf16 %v219, %v219
      %v258 = vpack.c.bf16 %v221, %v220
      %v259 = vpack.c.bf16 %v222, %v222
      %v260 = vpack.c.bf16 %v224, %v223
      %v261 = vpack.c.bf16 %v225, %v225
      %vm262 = vsmask.f32 7424
      %v264 = vshrl.u32 %v226, 16
      %v266 = vshll.u32 %v226, 16
      %v268 = vrot.slane %v266, 1
      %v269 = vor.u32 %v264, %v268
      %v271 = vshll.u32 %v227, 16
      %v273 = vrot.slane %v271, 1
      %v274 = vsel %vm262, %v269, %v273
      %v276 = vshrl.u32 %v228, 16
      %v278 = vshll.u32 %v228, 16
      %v280 = vrot.slane %v278, 1
      %v281 = vor.u32 %v276, %v280
      %v283 = vshll.u32 %v229, 16
      %v285 = vrot.slane %v283, 1
      %v286 = vsel %vm262, %v281, %v285
      %v288 = vshrl.u32 %v230, 16
      %v290 = vshll.u32 %v230, 16
      %v292 = vrot.slane %v290, 1
      %v293 = vor.u32 %v288, %v292
      %v295 = vshll.u32 %v231, 16
      %v297 = vrot.slane %v295, 1
      %v298 = vsel %vm262, %v293, %v297
      %v300 = vshrl.u32 %v232, 16
      %v302 = vshll.u32 %v232, 16
      %v304 = vrot.slane %v302, 1
      %v305 = vor.u32 %v300, %v304
      %v307 = vshll.u32 %v233, 16
      %v309 = vrot.slane %v307, 1
      %v310 = vsel %vm262, %v305, %v309
      %v312 = vshrl.u32 %v234, 16
      %v314 = vshll.u32 %v234, 16
      %v316 = vrot.slane %v314, 1
      %v317 = vor.u32 %v312, %v316
      %v319 = vshll.u32 %v235, 16
      %v321 = vrot.slane %v319, 1
      %v322 = vsel %vm262, %v317, %v321
      %v324 = vshrl.u32 %v236, 16
      %v326 = vshll.u32 %v236, 16
      %v328 = vrot.slane %v326, 1
      %v329 = vor.u32 %v324, %v328
      %v331 = vshll.u32 %v237, 16
      %v333 = vrot.slane %v331, 1
      %v334 = vsel %vm262, %v329, %v333
      %v336 = vshrl.u32 %v238, 16
      %v338 = vshll.u32 %v238, 16
      %v340 = vrot.slane %v338, 1
      %v341 = vor.u32 %v336, %v340
      %v343 = vshll.u32 %v239, 16
      %v345 = vrot.slane %v343, 1
      %v346 = vsel %vm262, %v341, %v345
      %v348 = vshrl.u32 %v240, 16
      %v350 = vshll.u32 %v240, 16
      %v352 = vrot.slane %v350, 1
      %v353 = vor.u32 %v348, %v352
      %v355 = vshll.u32 %v241, 16
      %v357 = vrot.slane %v355, 1
      %v358 = vsel %vm262, %v353, %v357
      %v360 = vshrl.u32 %v242, 16
      %v362 = vshll.u32 %v242, 16
      %v364 = vrot.slane %v362, 1
      %v365 = vor.u32 %v360, %v364
      %v367 = vshll.u32 %v243, 16
      %v369 = vrot.slane %v367, 1
      %v370 = vsel %vm262, %v365, %v369
      %v372 = vshrl.u32 %v244, 16
      %v374 = vshll.u32 %v244, 16
      %v376 = vrot.slane %v374, 1
      %v377 = vor.u32 %v372, %v376
      %v379 = vshll.u32 %v245, 16
      %v381 = vrot.slane %v379, 1
      %v382 = vsel %vm262, %v377, %v381
      %v384 = vshrl.u32 %v246, 16
      %v386 = vshll.u32 %v246, 16
      %v388 = vrot.slane %v386, 1
      %v389 = vor.u32 %v384, %v388
      %v391 = vshll.u32 %v247, 16
      %v393 = vrot.slane %v391, 1
      %v394 = vsel %vm262, %v389, %v393
      %v396 = vshrl.u32 %v248, 16
      %v398 = vshll.u32 %v248, 16
      %v400 = vrot.slane %v398, 1
      %v401 = vor.u32 %v396, %v400
      %v403 = vshll.u32 %v249, 16
      %v405 = vrot.slane %v403, 1
      %v406 = vsel %vm262, %v401, %v405
      %v408 = vshrl.u32 %v250, 16
      %v410 = vshll.u32 %v250, 16
      %v412 = vrot.slane %v410, 1
      %v413 = vor.u32 %v408, %v412
      %v415 = vshll.u32 %v251, 16
      %v417 = vrot.slane %v415, 1
      %v418 = vsel %vm262, %v413, %v417
      %v420 = vshrl.u32 %v252, 16
      %v422 = vshll.u32 %v252, 16
      %v424 = vrot.slane %v422, 1
      %v425 = vor.u32 %v420, %v424
      %v427 = vshll.u32 %v253, 16
      %v429 = vrot.slane %v427, 1
      %v430 = vsel %vm262, %v425, %v429
      %v432 = vshrl.u32 %v254, 16
      %v434 = vshll.u32 %v254, 16
      %v436 = vrot.slane %v434, 1
      %v437 = vor.u32 %v432, %v436
      %v439 = vshll.u32 %v255, 16
      %v441 = vrot.slane %v439, 1
      %v442 = vsel %vm262, %v437, %v441
      %v444 = vshrl.u32 %v256, 16
      %v446 = vshll.u32 %v256, 16
      %v448 = vrot.slane %v446, 1
      %v449 = vor.u32 %v444, %v448
      %v451 = vshll.u32 %v257, 16
      %v453 = vrot.slane %v451, 1
      %v454 = vsel %vm262, %v449, %v453
      %v456 = vshrl.u32 %v258, 16
      %v458 = vshll.u32 %v258, 16
      %v460 = vrot.slane %v458, 1
      %v461 = vor.u32 %v456, %v460
      %v463 = vshll.u32 %v259, 16
      %v465 = vrot.slane %v463, 1
      %v466 = vsel %vm262, %v461, %v465
      %v468 = vshrl.u32 %v260, 16
      %v470 = vshll.u32 %v260, 16
      %v472 = vrot.slane %v470, 1
      %v473 = vor.u32 %v468, %v472
      %v475 = vshll.u32 %v261, 16
      %v477 = vrot.slane %v475, 1
      %v478 = vsel %vm262, %v473, %v477
      %vm533 = vcmask 1046528
      %v534 = vrot.slane %v226, 1
      %v535 = vrot.slane %v227, 1
      %v536 = vsel %vm533, %v534, %v535
      %v537 = vrot.slane %v228, 1
      %v538 = vrot.slane %v229, 1
      %v539 = vsel %vm533, %v537, %v538
      %v540 = vrot.slane %v230, 1
      %v541 = vrot.slane %v231, 1
      %v542 = vsel %vm533, %v540, %v541
      %v543 = vrot.slane %v232, 1
      %v544 = vrot.slane %v233, 1
      %v545 = vsel %vm533, %v543, %v544
      %v546 = vrot.slane %v234, 1
      %v547 = vrot.slane %v235, 1
      %v548 = vsel %vm533, %v546, %v547
      %v549 = vrot.slane %v236, 1
      %v550 = vrot.slane %v237, 1
      %v551 = vsel %vm533, %v549, %v550
      %v552 = vrot.slane %v238, 1
      %v553 = vrot.slane %v239, 1
      %v554 = vsel %vm533, %v552, %v553
      %v555 = vrot.slane %v240, 1
      %v556 = vrot.slane %v241, 1
      %v557 = vsel %vm533, %v555, %v556
      %v558 = vrot.slane %v242, 1
      %v559 = vrot.slane %v243, 1
      %v560 = vsel %vm533, %v558, %v559
      %v561 = vrot.slane %v244, 1
      %v562 = vrot.slane %v245, 1
      %v563 = vsel %vm533, %v561, %v562
      %v564 = vrot.slane %v246, 1
      %v565 = vrot.slane %v247, 1
      %v566 = vsel %vm533, %v564, %v565
      %v567 = vrot.slane %v248, 1
      %v568 = vrot.slane %v249, 1
      %v569 = vsel %vm533, %v567, %v568
      %v570 = vrot.slane %v250, 1
      %v571 = vrot.slane %v251, 1
      %v572 = vsel %vm533, %v570, %v571
      %v573 = vrot.slane %v252, 1
      %v574 = vrot.slane %v253, 1
      %v575 = vsel %vm533, %v573, %v574
      %v576 = vrot.slane %v254, 1
      %v577 = vrot.slane %v255, 1
      %v578 = vsel %vm533, %v576, %v577
      %v579 = vrot.slane %v256, 1
      %v580 = vrot.slane %v257, 1
      %v581 = vsel %vm533, %v579, %v580
      %v582 = vrot.slane %v258, 1
      %v583 = vrot.slane %v259, 1
      %v584 = vsel %vm533, %v582, %v583
      %v585 = vrot.slane %v260, 1
      %v586 = vrot.slane %v261, 1
      %v587 = vsel %vm533, %v585, %v586
      %v606 = vld [vmem:[%s1] sm:$0xf]
      %v607 = vld [vmem:[%s1 + $0x4] sm:$0xf]
      %v608 = vld [vmem:[%s1 + $0x8] sm:$0xf]
      %v609 = vld [vmem:[%s1 + $0xc] sm:$0xf]
      %v610 = vld [vmem:[%s1 + $0x10] sm:$0xf]
      %v611 = vld [vmem:[%s1 + $0x14] sm:$0xf]
      %v612 = vld [vmem:[%s1 + $0x18] sm:$0xf]
      %v613 = vld [vmem:[%s1 + $0x1c] sm:$0xf]
      %v614 = vld [vmem:[%s1 + $0x20] sm:$0xf]
      %v615 = vld [vmem:[%s1 + $0x24] sm:$0xf]
      %v616 = vld [vmem:[%s1 + $0x28] sm:$0xf]
      %v617 = vld [vmem:[%s1 + $0x2c] sm:$0xf]
      %v618 = vld [vmem:[%s1 + $0x30] sm:$0xf]
      %v619 = vld [vmem:[%s1 + $0x34] sm:$0xf]
      %v620 = vld [vmem:[%s1 + $0x38] sm:$0xf]
      %v621 = vld [vmem:[%s1 + $0x3c] sm:$0xf]
      %v622 = vld [vmem:[%s1 + $0x40] sm:$0xf]
      %v623 = vld [vmem:[%s1 + $0x44] sm:$0xf]
      %v624 = vld [vmem:[%s1 + $0x48] sm:$0xf]
      %v625 = vld [vmem:[%s1 + $0x4c] sm:$0xf]
      %v626 = vld [vmem:[%s1 + $0x50] sm:$0xf]
      %v627 = vld [vmem:[%s1 + $0x54] sm:$0xf]
      %v628 = vld [vmem:[%s1 + $0x58] sm:$0xf]
      %v629 = vld [vmem:[%s1 + $0x5c] sm:$0xf]
      %v630 = vld [vmem:[%s1 + $0x60] sm:$0xf]
      %v631 = vld [vmem:[%s1 + $0x64] sm:$0xf]
      %v632 = vld [vmem:[%s1 + $0x68] sm:$0xf]
      %v633 = vld [vmem:[%s1 + $0x6c] sm:$0xf]
      %v634 = vld [vmem:[%s1 + $0x70] sm:$0xf]
      %v635 = vld [vmem:[%s1 + $0x74] sm:$0xf]
      %v636 = vld [vmem:[%s1 + $0x78] sm:$0xf]
      %v637 = vld [vmem:[%s1 + $0x7c] sm:$0xf]
      %v638 = vld [vmem:[%s1 + $0x80] sm:$0xf]
      %v639 = vld [vmem:[%s1 + $0x84] sm:$0xf]
      %v640 = vld [vmem:[%s1 + $0x88] sm:$0xf]
      %v641 = vld [vmem:[%s1 + $0x8c] sm:$0xf]
      %v642 = vld [vmem:[%s1 + $0x90] sm:$0xf]
      %v643 = vld [vmem:[%s1 + $0x94] sm:$0xf]
      %v644 = vld [vmem:[%s1 + $0x98] sm:$0xf]
      %v645 = vld [vmem:[%s1 + $0x9c] sm:$0xf]
      %v646 = vld [vmem:[%s1 + $0xa0] sm:$0xf]
      %v647 = vld [vmem:[%s1 + $0xa4] sm:$0xf]
      %v648 = vld [vmem:[%s1 + $0xa8] sm:$0xf]
      %v649 = vld [vmem:[%s1 + $0xac] sm:$0xf]
      %v650 = vld [vmem:[%s1 + $0xb0] sm:$0xf]
      %v651 = vld [vmem:[%s1 + $0xb4] sm:$0xf]
      %v652 = vld [vmem:[%s1 + $0xb8] sm:$0xf]
      %v653 = vld [vmem:[%s1 + $0xbc] sm:$0xf]
      %v654 = vld [vmem:[%s1 + $0xc0] sm:$0xf]
      %v655 = vld [vmem:[%s1 + $0xc4] sm:$0xf]
      %v656 = vld [vmem:[%s1 + $0xc8] sm:$0xf]
      %v657 = vld [vmem:[%s1 + $0xcc] sm:$0xf]
      %v658 = vld [vmem:[%s1 + $0xd0] sm:$0xf]
      %v659 = vld [vmem:[%s1 + $0xd4] sm:$0xf]
      %v660 = vld [vmem:[%s1 + $0xd8] sm:$0xf]
      %v661 = vld [vmem:[%s1 + $0xdc] sm:$0xf]
      %v662 = vld [vmem:[%s1 + $0xe0] sm:$0xf]
      %v663 = vld [vmem:[%s1 + $0xe4] sm:$0xf]
      %v664 = vld [vmem:[%s1 + $0xe8] sm:$0xf]
      %v665 = vld [vmem:[%s1 + $0xec] sm:$0xf]
      %v666 = vld [vmem:[%s1 + $0xf0] sm:$0xf]
      %v667 = vld [vmem:[%s1 + $0xf4] sm:$0xf]
      %v668 = vld [vmem:[%s1 + $0xf8] sm:$0xf]
      %v669 = vld [vmem:[%s1 + $0xfc] sm:$0xf]
      %v670 = vld [vmem:[%s1 + $0x100] sm:$0xf]
      %v671 = vld [vmem:[%s1 + $0x104] sm:$0xf]
      %v672 = vld [vmem:[%s1 + $0x108] sm:$0xf]
      %v673 = vld [vmem:[%s1 + $0x10c] sm:$0xf]
      %v674 = vld [vmem:[%s1 + $0x110] sm:$0xf]
      %v675 = vld [vmem:[%s1 + $0x114] sm:$0xf]
      %v676 = vld [vmem:[%s1 + $0x118] sm:$0xf]
      %v677 = vld [vmem:[%s1 + $0x11c] sm:$0xf]
      %v678 = vld [vmem:[%s1 + $0x120] sm:$0xf]
      %v679 = vld [vmem:[%s1 + $0x124] sm:$0xf]
      %v680 = vld [vmem:[%s1 + $0x128] sm:$0xf]
      %v681 = vld [vmem:[%s1 + $0x12c] sm:$0xf]
      %v682 = vld [vmem:[%s1 + $0x130] sm:$0xf]
      %v683 = vld [vmem:[%s1 + $0x134] sm:$0xf]
      %v684 = vld [vmem:[%s1 + $0x138] sm:$0xf]
      %v685 = vld [vmem:[%s1 + $0x13c] sm:$0xf]
      %v686 = vld [vmem:[%s1 + $0x140] sm:$0xf]
      %v687 = vld [vmem:[%s1 + $0x144] sm:$0xf]
      %v688 = vld [vmem:[%s1 + $0x148] sm:$0xf]
      %v689 = vld [vmem:[%s1 + $0x14c] sm:$0xf]
      %v690 = vld [vmem:[%s1 + $0x150] sm:$0xf]
      %v691 = vld [vmem:[%s1 + $0x154] sm:$0xf]
      %v692 = vld [vmem:[%s1 + $0x158] sm:$0xf]
      %v693 = vld [vmem:[%s1 + $0x15c] sm:$0xf]
      %v694 = vld [vmem:[%s1 + $0x160] sm:$0xf]
      %v695 = vld [vmem:[%s1 + $0x164] sm:$0xf]
      %v696 = vld [vmem:[%s1 + $0x168] sm:$0xf]
      %v697 = vld [vmem:[%s1 + $0x16c] sm:$0xf]
      %v698 = vld [vmem:[%s1 + $0x170] sm:$0xf]
      %v699 = vld [vmem:[%s1 + $0x174] sm:$0xf]
      %v700 = vld [vmem:[%s1 + $0x178] sm:$0xf]
      %v701 = vld [vmem:[%s1 + $0x17c] sm:$0xf]
      %v702 = vld [vmem:[%s1 + $0x180] sm:$0xf]
      %v703 = vld [vmem:[%s1 + $0x184] sm:$0xf]
      %v704 = vld [vmem:[%s1 + $0x188] sm:$0xf]
      %v705 = vld [vmem:[%s1 + $0x18c] sm:$0xf]
      %v706 = vld [vmem:[%s1 + $0x190] sm:$0xf]
      %v707 = vld [vmem:[%s1 + $0x194] sm:$0xf]
      %v708 = vld [vmem:[%s1 + $0x198] sm:$0xf]
      %v709 = vld [vmem:[%s1 + $0x19c] sm:$0xf]
      %v710 = vld [vmem:[%s1 + $0x1a0] sm:$0xf]
      %v711 = vld [vmem:[%s1 + $0x1a4] sm:$0xf]
      %v712 = vld [vmem:[%s1 + $0x1a8] sm:$0xf]
      %v713 = vld [vmem:[%s1 + $0x1ac] sm:$0xf]
      %v714 = vld [vmem:[%s1 + $0x1b0] sm:$0xf]
      %v715 = vld [vmem:[%s1 + $0x1b4] sm:$0xf]
      %v716 = vld [vmem:[%s1 + $0x1b8] sm:$0xf]
      %v717 = vld [vmem:[%s1 + $0x1bc] sm:$0xf]
      %v718 = vld [vmem:[%s1 + $0x1c0] sm:$0xf]
      %v719 = vld [vmem:[%s1 + $0x1c4] sm:$0xf]
      %v720 = vld [vmem:[%s1 + $0x1c8] sm:$0xf]
      %v721 = vld [vmem:[%s1 + $0x1cc] sm:$0xf]
      %v722 = vld [vmem:[%s1 + $0x1d0] sm:$0xf]
      %v723 = vld [vmem:[%s1 + $0x1d4] sm:$0xf]
      %v724 = vld [vmem:[%s1 + $0x1d8] sm:$0xf]
      %v725 = vld [vmem:[%s1 + $0x1dc] sm:$0xf]
      %v726 = vld [vmem:[%s1 + $0x1e0] sm:$0xf]
      %v727 = vld [vmem:[%s1 + $0x1e4] sm:$0xf]
      %v728 = vld [vmem:[%s1 + $0x1e8] sm:$0xf]
      %v729 = vld [vmem:[%s1 + $0x1ec] sm:$0xf]
      %v730 = vld [vmem:[%s1 + $0x1f0] sm:$0xf]
      %v731 = vld [vmem:[%s1 + $0x1f4] sm:$0xf]
      %v732 = vld [vmem:[%s1 + $0x1f8] sm:$0xf]
      %v733 = vld [vmem:[%s1 + $0x1fc] sm:$0xf]
      %v734 = vld [vmem:[%s1 + $0x200] sm:$0xf]
      %v735 = vld [vmem:[%s1 + $0x204] sm:$0xf]
      %v736 = vld [vmem:[%s1 + $0x208] sm:$0xf]
      %v737 = vld [vmem:[%s1 + $0x20c] sm:$0xf]
      %v738 = vld [vmem:[%s1 + $0x210] sm:$0xf]
      %v739 = vld [vmem:[%s1 + $0x214] sm:$0xf]
      %v740 = vld [vmem:[%s1 + $0x218] sm:$0xf]
      %v741 = vld [vmem:[%s1 + $0x21c] sm:$0xf]
      %v742 = vld [vmem:[%s1 + $0x220] sm:$0xf]
      %v743 = vld [vmem:[%s1 + $0x224] sm:$0xf]
      %v744 = vld [vmem:[%s1 + $0x228] sm:$0xf]
      %v745 = vld [vmem:[%s1 + $0x22c] sm:$0xf]
      %v746 = vld [vmem:[%s1 + $0x230] sm:$0xf]
      %v747 = vld [vmem:[%s1 + $0x234] sm:$0xf]
      %v748 = vld [vmem:[%s1 + $0x238] sm:$0xf]
      %v749 = vld [vmem:[%s1 + $0x23c] sm:$0xf]
      %v750 = vld [vmem:[%s2] sm:$0x1]
      %v752 = vlaneseq
      %v753 = vshrl.u32 %v752, 7
      %v754 = vsub.s32 0, %v753
      %v755 = vrot.slane %v750, %v754
      %v901 = vunpack.c.l.b16 %v606
      %v902 = vunpack.c.l.b16 %v607
      %v903 = vunpack.c.l.b16 %v608
      %v904 = vunpack.c.l.b16 %v609
      %v905 = vunpack.c.l.b16 %v610
      %v906 = vunpack.c.l.b16 %v611
      %v907 = vunpack.c.l.b16 %v612
      %v908 = vunpack.c.l.b16 %v613
      %v909 = vunpack.c.l.b16 %v614
      %v910 = vunpack.c.l.b16 %v615
      %v911 = vunpack.c.l.b16 %v616
      %v912 = vunpack.c.l.b16 %v617
      %v913 = vunpack.c.l.b16 %v618
      %v914 = vunpack.c.l.b16 %v619
      %v915 = vunpack.c.l.b16 %v620
      %v916 = vunpack.c.l.b16 %v621
      %v917 = vunpack.c.l.b16 %v622
      %v918 = vunpack.c.l.b16 %v623
      %v919 = vunpack.c.l.b16 %v624
      %v920 = vunpack.c.l.b16 %v625
      %v921 = vunpack.c.l.b16 %v626
      %v922 = vunpack.c.l.b16 %v627
      %v923 = vunpack.c.l.b16 %v628
      %v924 = vunpack.c.l.b16 %v629
      %v925 = vunpack.c.l.b16 %v630
      %v926 = vunpack.c.l.b16 %v631
      %v927 = vunpack.c.l.b16 %v632
      %v928 = vunpack.c.l.b16 %v633
      %v929 = vunpack.c.l.b16 %v634
      %v930 = vunpack.c.l.b16 %v635
      %v931 = vunpack.c.l.b16 %v636
      %v932 = vunpack.c.l.b16 %v637
      %v933 = vunpack.c.l.b16 %v638
      %v934 = vunpack.c.l.b16 %v639
      %v935 = vunpack.c.l.b16 %v640
      %v936 = vunpack.c.l.b16 %v641
      %v937 = vunpack.c.l.b16 %v642
      %v938 = vunpack.c.l.b16 %v643
      %v939 = vunpack.c.l.b16 %v644
      %v940 = vunpack.c.l.b16 %v645
      %v941 = vunpack.c.l.b16 %v646
      %v942 = vunpack.c.l.b16 %v647
      %v943 = vunpack.c.l.b16 %v648
      %v944 = vunpack.c.l.b16 %v649
      %v945 = vunpack.c.l.b16 %v650
      %v946 = vunpack.c.l.b16 %v651
      %v947 = vunpack.c.l.b16 %v652
      %v948 = vunpack.c.l.b16 %v653
      %v949 = vunpack.c.l.b16 %v654
      %v950 = vunpack.c.l.b16 %v655
      %v951 = vunpack.c.l.b16 %v656
      %v952 = vunpack.c.l.b16 %v657
      %v953 = vunpack.c.l.b16 %v658
      %v954 = vunpack.c.l.b16 %v659
      %v955 = vunpack.c.l.b16 %v660
      %v956 = vunpack.c.l.b16 %v661
      %v957 = vunpack.c.l.b16 %v662
      %v958 = vunpack.c.l.b16 %v663
      %v959 = vunpack.c.l.b16 %v664
      %v960 = vunpack.c.l.b16 %v665
      %v961 = vunpack.c.l.b16 %v666
      %v962 = vunpack.c.l.b16 %v667
      %v963 = vunpack.c.l.b16 %v668
      %v964 = vunpack.c.l.b16 %v669
      %v965 = vunpack.c.l.b16 %v670
      %v966 = vunpack.c.l.b16 %v671
      %v967 = vunpack.c.l.b16 %v672
      %v968 = vunpack.c.l.b16 %v673
      %v969 = vunpack.c.l.b16 %v674
      %v970 = vunpack.c.l.b16 %v675
      %v971 = vunpack.c.l.b16 %v676
      %v972 = vunpack.c.l.b16 %v677
      %v973 = vunpack.c.l.b16 %v678
      %v974 = vunpack.c.l.b16 %v679
      %v975 = vunpack.c.l.b16 %v680
      %v976 = vunpack.c.l.b16 %v681
      %v977 = vunpack.c.l.b16 %v682
      %v978 = vunpack.c.l.b16 %v683
      %v979 = vunpack.c.l.b16 %v684
      %v980 = vunpack.c.l.b16 %v685
      %v981 = vunpack.c.l.b16 %v686
      %v982 = vunpack.c.l.b16 %v687
      %v983 = vunpack.c.l.b16 %v688
      %v984 = vunpack.c.l.b16 %v689
      %v985 = vunpack.c.l.b16 %v690
      %v986 = vunpack.c.l.b16 %v691
      %v987 = vunpack.c.l.b16 %v692
      %v988 = vunpack.c.l.b16 %v693
      %v989 = vunpack.c.l.b16 %v694
      %v990 = vunpack.c.l.b16 %v695
      %v991 = vunpack.c.l.b16 %v696
      %v992 = vunpack.c.l.b16 %v697
      %v993 = vunpack.c.l.b16 %v698
      %v994 = vunpack.c.l.b16 %v699
      %v995 = vunpack.c.l.b16 %v700
      %v996 = vunpack.c.l.b16 %v701
      %v997 = vunpack.c.l.b16 %v702
      %v998 = vunpack.c.l.b16 %v703
      %v999 = vunpack.c.l.b16 %v704
      %v1000 = vunpack.c.l.b16 %v705
      %v1001 = vunpack.c.l.b16 %v706
      %v1002 = vunpack.c.l.b16 %v707
      %v1003 = vunpack.c.l.b16 %v708
      %v1004 = vunpack.c.l.b16 %v709
      %v1005 = vunpack.c.l.b16 %v710
      %v1006 = vunpack.c.l.b16 %v711
      %v1007 = vunpack.c.l.b16 %v712
      %v1008 = vunpack.c.l.b16 %v713
      %v1009 = vunpack.c.l.b16 %v714
      %v1010 = vunpack.c.l.b16 %v715
      %v1011 = vunpack.c.l.b16 %v716
      %v1012 = vunpack.c.l.b16 %v717
      %v1013 = vunpack.c.l.b16 %v718
      %v1014 = vunpack.c.l.b16 %v719
      %v1015 = vunpack.c.l.b16 %v720
      %v1016 = vunpack.c.l.b16 %v721
      %v1017 = vunpack.c.l.b16 %v722
      %v1018 = vunpack.c.l.b16 %v723
      %v1019 = vunpack.c.l.b16 %v724
      %v1020 = vunpack.c.l.b16 %v725
      %v1021 = vunpack.c.l.b16 %v726
      %v1022 = vunpack.c.l.b16 %v727
      %v1023 = vunpack.c.l.b16 %v728
      %v1024 = vunpack.c.l.b16 %v729
      %v1025 = vunpack.c.l.b16 %v730
      %v1026 = vunpack.c.l.b16 %v731
      %v1027 = vunpack.c.l.b16 %v732
      %v1028 = vunpack.c.l.b16 %v733
      %v1029 = vunpack.c.l.b16 %v734
      %v1030 = vunpack.c.l.b16 %v735
      %v1031 = vunpack.c.l.b16 %v736
      %v1032 = vunpack.c.l.b16 %v737
      %v1033 = vunpack.c.l.b16 %v738
      %v1034 = vunpack.c.l.b16 %v739
      %v1035 = vunpack.c.l.b16 %v740
      %v1036 = vunpack.c.l.b16 %v741
      %v1037 = vunpack.c.l.b16 %v742
      %v1038 = vunpack.c.l.b16 %v743
      %v1039 = vunpack.c.l.b16 %v744
      %v1040 = vunpack.c.l.b16 %v745
      %v1041 = vunpack.c.l.b16 %v746
      %v1042 = vunpack.c.l.b16 %v747
      %v1043 = vunpack.c.l.b16 %v748
      %v1044 = vunpack.c.l.b16 %v749
      %v1045 = vpack.c.b16 %v902, %v901
      %v1046 = vpack.c.b16 %v904, %v903
      %v1047 = vpack.c.b16 %v906, %v905
      %v1048 = vpack.c.b16 %v908, %v907
      %v1049 = vpack.c.b16 %v910, %v909
      %v1050 = vpack.c.b16 %v912, %v911
      %v1051 = vpack.c.b16 %v914, %v913
      %v1052 = vpack.c.b16 %v916, %v915
      %v1053 = vpack.c.b16 %v918, %v917
      %v1054 = vpack.c.b16 %v920, %v919
      %v1055 = vpack.c.b16 %v922, %v921
      %v1056 = vpack.c.b16 %v924, %v923
      %v1057 = vpack.c.b16 %v926, %v925
      %v1058 = vpack.c.b16 %v928, %v927
      %v1059 = vpack.c.b16 %v930, %v929
      %v1060 = vpack.c.b16 %v932, %v931
      %v1061 = vpack.c.b16 %v934, %v933
      %v1062 = vpack.c.b16 %v936, %v935
      %v1063 = vpack.c.b16 %v938, %v937
      %v1064 = vpack.c.b16 %v940, %v939
      %v1065 = vpack.c.b16 %v942, %v941
      %v1066 = vpack.c.b16 %v944, %v943
      %v1067 = vpack.c.b16 %v946, %v945
      %v1068 = vpack.c.b16 %v948, %v947
      %v1069 = vpack.c.b16 %v950, %v949
      %v1070 = vpack.c.b16 %v952, %v951
      %v1071 = vpack.c.b16 %v954, %v953
      %v1072 = vpack.c.b16 %v956, %v955
      %v1073 = vpack.c.b16 %v958, %v957
      %v1074 = vpack.c.b16 %v960, %v959
      %v1075 = vpack.c.b16 %v962, %v961
      %v1076 = vpack.c.b16 %v964, %v963
      %v1077 = vpack.c.b16 %v966, %v965
      %v1078 = vpack.c.b16 %v968, %v967
      %v1079 = vpack.c.b16 %v970, %v969
      %v1080 = vpack.c.b16 %v972, %v971
      %v1081 = vpack.c.b16 %v974, %v973
      %v1082 = vpack.c.b16 %v976, %v975
      %v1083 = vpack.c.b16 %v978, %v977
      %v1084 = vpack.c.b16 %v980, %v979
      %v1085 = vpack.c.b16 %v982, %v981
      %v1086 = vpack.c.b16 %v984, %v983
      %v1087 = vpack.c.b16 %v986, %v985
      %v1088 = vpack.c.b16 %v988, %v987
      %v1089 = vpack.c.b16 %v990, %v989
      %v1090 = vpack.c.b16 %v992, %v991
      %v1091 = vpack.c.b16 %v994, %v993
      %v1092 = vpack.c.b16 %v996, %v995
      %v1093 = vpack.c.b16 %v998, %v997
      %v1094 = vpack.c.b16 %v1000, %v999
      %v1095 = vpack.c.b16 %v1002, %v1001
      %v1096 = vpack.c.b16 %v1004, %v1003
      %v1097 = vpack.c.b16 %v1006, %v1005
      %v1098 = vpack.c.b16 %v1008, %v1007
      %v1099 = vpack.c.b16 %v1010, %v1009
      %v1100 = vpack.c.b16 %v1012, %v1011
      %v1101 = vpack.c.b16 %v1014, %v1013
      %v1102 = vpack.c.b16 %v1016, %v1015
      %v1103 = vpack.c.b16 %v1018, %v1017
      %v1104 = vpack.c.b16 %v1020, %v1019
      %v1105 = vpack.c.b16 %v1022, %v1021
      %v1106 = vpack.c.b16 %v1024, %v1023
      %v1107 = vpack.c.b16 %v1026, %v1025
      %v1108 = vpack.c.b16 %v1028, %v1027
      %v1109 = vpack.c.b16 %v1030, %v1029
      %v1110 = vpack.c.b16 %v1032, %v1031
      %v1111 = vpack.c.b16 %v1034, %v1033
      %v1112 = vpack.c.b16 %v1036, %v1035
      %v1113 = vpack.c.b16 %v1038, %v1037
      %v1114 = vpack.c.b16 %v1040, %v1039
      %v1115 = vpack.c.b16 %v1042, %v1041
      %v1116 = vpack.c.b16 %v1044, %v1043
      %1189 = vmatprep.subr.bf16.mxu0 0
      %1190 = vmatpush1.bf16.msra.mxu0 %v1052
      %1191 = vmatprep.subr.bf16.mxu0 0
      %1192 = vmatpush1.bf16.msra.mxu0 %v1051
      %1193 = vmatprep.subr.bf16.mxu0 0
      %1194 = vmatpush1.bf16.msra.mxu0 %v1050
      %1195 = vmatprep.subr.bf16.mxu0 0
      %1196 = vmatpush1.bf16.msra.mxu0 %v1049
      %1197 = vmatprep.subr.bf16.mxu0 0
      %1198 = vmatpush1.bf16.msra.mxu0 %v1048
      %1199 = vmatprep.subr.bf16.mxu0 0
      %1200 = vmatpush1.bf16.msra.mxu0 %v1047
      %1201 = vmatprep.subr.bf16.mxu0 0
      %1202 = vmatpush1.bf16.msra.mxu0 %v1046
      %1203 = vmatprep.subr.bf16.mxu0 0
      %1204 = vmatpush1.bf16.msra.mxu0 %v1045
      %1205 = vmatprep.subr.bf16.mxu0 0
      %1206 = vmatpush2.bf16.msra.mxu0 %v1060
      %1207 = vmatprep.subr.bf16.mxu0 0
      %1208 = vmatpush2.bf16.msra.mxu0 %v1059
      %1209 = vmatprep.subr.bf16.mxu0 0
      %1210 = vmatpush2.bf16.msra.mxu0 %v1058
      %1211 = vmatprep.subr.bf16.mxu0 0
      %1212 = vmatpush2.bf16.msra.mxu0 %v1057
      %1213 = vmatprep.subr.bf16.mxu0 0
      %1214 = vmatpush2.bf16.msra.mxu0 %v1056
      %1215 = vmatprep.subr.bf16.mxu0 0
      %1216 = vmatpush2.bf16.msra.mxu0 %v1055
      %1217 = vmatprep.subr.bf16.mxu0 0
      %1218 = vmatpush2.bf16.msra.mxu0 %v1054
      %1219 = vmatprep.subr.bf16.mxu0 0
      %1220 = vmatpush2.bf16.msra.mxu0 %v1053
      %1221 = vmatprep.mubr.bf16.mxu0 %v274
      %1222 = vmatmul.mubr.bf16.gmra.mxu0 %v226
      %v1223 = vpop.f32.mrf.mxu0
      %v1224 = vadd.f32 %v755, %v1223
      %v1225 = vpop.f32.mrf.mxu0
      %v1226 = vpop.f32.mrf.mxu0
      %v1227 = vadd.f32 %v755, %v1226
      %v1228 = vpop.f32.mrf.mxu0
      %1229 = vmatprep.mubr.bf16.mxu0 %v286
      %1230 = vmatmul.mubr.bf16.gmra.mxu0 %v228
      %v1231 = vpop.f32.mrf.mxu0
      %v1232 = vadd.f32 %v755, %v1231
      %v1233 = vpop.f32.mrf.mxu0
      %v1234 = vpop.f32.mrf.mxu0
      %v1235 = vadd.f32 %v755, %v1234
      %v1236 = vpop.f32.mrf.mxu0
      %1237 = vmatprep.mubr.bf16.mxu0 %v298
      %1238 = vmatmul.mubr.bf16.gmra.mxu0 %v230
      %v1239 = vpop.f32.mrf.mxu0
      %v1240 = vadd.f32 %v755, %v1239
      %v1241 = vpop.f32.mrf.mxu0
      %v1242 = vpop.f32.mrf.mxu0
      %v1243 = vadd.f32 %v755, %v1242
      %v1244 = vpop.f32.mrf.mxu0
      %1245 = vmatprep.mubr.bf16.mxu0 %v310
      %1246 = vmatmul.mubr.bf16.gmra.mxu0 %v232
      %v1247 = vpop.f32.mrf.mxu0
      %v1248 = vadd.f32 %v755, %v1247
      %v1249 = vpop.f32.mrf.mxu0
      %v1250 = vpop.f32.mrf.mxu0
      %v1251 = vadd.f32 %v755, %v1250
      %v1252 = vpop.f32.mrf.mxu0
      %1253 = vmatprep.mubr.bf16.mxu0 %v322
      %1254 = vmatmul.mubr.bf16.gmra.mxu0 %v234
      %v1255 = vpop.f32.mrf.mxu0
      %v1256 = vadd.f32 %v755, %v1255
      %v1257 = vpop.f32.mrf.mxu0
      %v1258 = vpop.f32.mrf.mxu0
      %v1259 = vadd.f32 %v755, %v1258
      %v1260 = vpop.f32.mrf.mxu0
      %1261 = vmatprep.mubr.bf16.mxu0 %v334
      %1262 = vmatmul.mubr.bf16.gmra.mxu0 %v236
      %v1263 = vpop.f32.mrf.mxu0
      %v1264 = vadd.f32 %v755, %v1263
      %v1265 = vpop.f32.mrf.mxu0
      %v1266 = vpop.f32.mrf.mxu0
      %v1267 = vadd.f32 %v755, %v1266
      %v1268 = vpop.f32.mrf.mxu0
      %1269 = vmatprep.mubr.bf16.mxu0 %v346
      %1270 = vmatmul.mubr.bf16.gmra.mxu0 %v238
      %v1271 = vpop.f32.mrf.mxu0
      %v1272 = vadd.f32 %v755, %v1271
      %v1273 = vpop.f32.mrf.mxu0
      %v1274 = vpop.f32.mrf.mxu0
      %v1275 = vadd.f32 %v755, %v1274
      %v1276 = vpop.f32.mrf.mxu0
      %1277 = vmatprep.mubr.bf16.mxu0 %v358
      %1278 = vmatmul.mubr.bf16.gmra.mxu0 %v240
      %v1279 = vpop.f32.mrf.mxu0
      %v1280 = vadd.f32 %v755, %v1279
      %v1281 = vpop.f32.mrf.mxu0
      %v1282 = vpop.f32.mrf.mxu0
      %v1283 = vadd.f32 %v755, %v1282
      %v1284 = vpop.f32.mrf.mxu0
      %1285 = vmatprep.mubr.bf16.mxu0 %v370
      %1286 = vmatmul.mubr.bf16.gmra.mxu0 %v242
      %v1287 = vpop.f32.mrf.mxu0
      %v1288 = vadd.f32 %v755, %v1287
      %v1289 = vpop.f32.mrf.mxu0
      %v1290 = vpop.f32.mrf.mxu0
      %v1291 = vadd.f32 %v755, %v1290
      %v1292 = vpop.f32.mrf.mxu0
      %1293 = vmatprep.mubr.bf16.mxu0 %v382
      %1294 = vmatmul.mubr.bf16.gmra.mxu0 %v244
      %v1295 = vpop.f32.mrf.mxu0
      %v1296 = vadd.f32 %v755, %v1295
      %v1297 = vpop.f32.mrf.mxu0
      %v1298 = vpop.f32.mrf.mxu0
      %v1299 = vadd.f32 %v755, %v1298
      %v1300 = vpop.f32.mrf.mxu0
      %1301 = vmatprep.mubr.bf16.mxu0 %v394
      %1302 = vmatmul.mubr.bf16.gmra.mxu0 %v246
      %v1303 = vpop.f32.mrf.mxu0
      %v1304 = vadd.f32 %v755, %v1303
      %v1305 = vpop.f32.mrf.mxu0
      %v1306 = vpop.f32.mrf.mxu0
      %v1307 = vadd.f32 %v755, %v1306
      %v1308 = vpop.f32.mrf.mxu0
      %1309 = vmatprep.mubr.bf16.mxu0 %v406
      %1310 = vmatmul.mubr.bf16.gmra.mxu0 %v248
      %v1311 = vpop.f32.mrf.mxu0
      %v1312 = vadd.f32 %v755, %v1311
      %v1313 = vpop.f32.mrf.mxu0
      %v1314 = vpop.f32.mrf.mxu0
      %v1315 = vadd.f32 %v755, %v1314
      %v1316 = vpop.f32.mrf.mxu0
      %1317 = vmatprep.mubr.bf16.mxu0 %v418
      %1318 = vmatmul.mubr.bf16.gmra.mxu0 %v250
      %v1319 = vpop.f32.mrf.mxu0
      %v1320 = vadd.f32 %v755, %v1319
      %v1321 = vpop.f32.mrf.mxu0
      %v1322 = vpop.f32.mrf.mxu0
      %v1323 = vadd.f32 %v755, %v1322
      %v1324 = vpop.f32.mrf.mxu0
      %1325 = vmatprep.mubr.bf16.mxu0 %v430
      %1326 = vmatmul.mubr.bf16.gmra.mxu0 %v252
      %v1327 = vpop.f32.mrf.mxu0
      %v1328 = vadd.f32 %v755, %v1327
      %v1329 = vpop.f32.mrf.mxu0
      %v1330 = vpop.f32.mrf.mxu0
      %v1331 = vadd.f32 %v755, %v1330
      %v1332 = vpop.f32.mrf.mxu0
      %1333 = vmatprep.mubr.bf16.mxu0 %v442
      %1334 = vmatmul.mubr.bf16.gmra.mxu0 %v254
      %v1335 = vpop.f32.mrf.mxu0
      %v1336 = vadd.f32 %v755, %v1335
      %v1337 = vpop.f32.mrf.mxu0
      %v1338 = vpop.f32.mrf.mxu0
      %v1339 = vadd.f32 %v755, %v1338
      %v1340 = vpop.f32.mrf.mxu0
      %1341 = vmatprep.mubr.bf16.mxu0 %v454
      %1342 = vmatmul.mubr.bf16.gmra.mxu0 %v256
      %v1343 = vpop.f32.mrf.mxu0
      %v1344 = vadd.f32 %v755, %v1343
      %v1345 = vpop.f32.mrf.mxu0
      %v1346 = vpop.f32.mrf.mxu0
      %v1347 = vadd.f32 %v755, %v1346
      %v1348 = vpop.f32.mrf.mxu0
      %1349 = vdwg.mxu0
      %1350 = vmatprep.subr.bf16.mxu0 0
      %1351 = vmatpush1.bf16.msra.mxu0 %v1068
      %1352 = vmatprep.subr.bf16.mxu0 0
      %1353 = vmatpush1.bf16.msra.mxu0 %v1067
      %1354 = vmatprep.subr.bf16.mxu0 0
      %1355 = vmatpush1.bf16.msra.mxu0 %v1066
      %1356 = vmatprep.subr.bf16.mxu0 0
      %1357 = vmatpush1.bf16.msra.mxu0 %v1065
      %1358 = vmatprep.subr.bf16.mxu0 0
      %1359 = vmatpush1.bf16.msra.mxu0 %v1064
      %1360 = vmatprep.subr.bf16.mxu0 0
      %1361 = vmatpush1.bf16.msra.mxu0 %v1063
      %1362 = vmatprep.subr.bf16.mxu0 0
      %1363 = vmatpush1.bf16.msra.mxu0 %v1062
      %1364 = vmatprep.subr.bf16.mxu0 0
      %1365 = vmatpush1.bf16.msra.mxu0 %v1061
      %1366 = vmatprep.subr.bf16.mxu0 0
      %1367 = vmatpush2.bf16.msra.mxu0 %v1076
      %1368 = vmatprep.subr.bf16.mxu0 0
      %1369 = vmatpush2.bf16.msra.mxu0 %v1075
      %1370 = vmatprep.subr.bf16.mxu0 0
      %1371 = vmatpush2.bf16.msra.mxu0 %v1074
      %1372 = vmatprep.subr.bf16.mxu0 0
      %1373 = vmatpush2.bf16.msra.mxu0 %v1073
      %1374 = vmatprep.subr.bf16.mxu0 0
      %1375 = vmatpush2.bf16.msra.mxu0 %v1072
      %1376 = vmatprep.subr.bf16.mxu0 0
      %1377 = vmatpush2.bf16.msra.mxu0 %v1071
      %1378 = vmatprep.subr.bf16.mxu0 0
      %1379 = vmatpush2.bf16.msra.mxu0 %v1070
      %1380 = vmatprep.subr.bf16.mxu0 0
      %1381 = vmatpush2.bf16.msra.mxu0 %v1069
      %1382 = vmatprep.mubr.bf16.mxu0 %v228
      %1383 = vmatmul.mubr.bf16.gmra.mxu0 %v536
      %v1384 = vpop.f32.mrf.mxu0
      %v1385 = vadd.f32 %v1224, %v1384
      %v1386 = vpop.f32.mrf.mxu0
      %v1387 = vpop.f32.mrf.mxu0
      %v1388 = vadd.f32 %v1227, %v1387
      %v1389 = vpop.f32.mrf.mxu0
      %1390 = vmatprep.mubr.bf16.mxu0 %v230
      %1391 = vmatmul.mubr.bf16.gmra.mxu0 %v539
      %v1392 = vpop.f32.mrf.mxu0
      %v1393 = vadd.f32 %v1232, %v1392
      %v1394 = vpop.f32.mrf.mxu0
      %v1395 = vpop.f32.mrf.mxu0
      %v1396 = vadd.f32 %v1235, %v1395
      %v1397 = vpop.f32.mrf.mxu0
      %1398 = vmatprep.mubr.bf16.mxu0 %v232
      %1399 = vmatmul.mubr.bf16.gmra.mxu0 %v542
      %v1400 = vpop.f32.mrf.mxu0
      %v1401 = vadd.f32 %v1240, %v1400
      %v1402 = vpop.f32.mrf.mxu0
      %v1403 = vpop.f32.mrf.mxu0
      %v1404 = vadd.f32 %v1243, %v1403
      %v1405 = vpop.f32.mrf.mxu0
      %1406 = vmatprep.mubr.bf16.mxu0 %v234
      %1407 = vmatmul.mubr.bf16.gmra.mxu0 %v545
      %v1408 = vpop.f32.mrf.mxu0
      %v1409 = vadd.f32 %v1248, %v1408
      %v1410 = vpop.f32.mrf.mxu0
      %v1411 = vpop.f32.mrf.mxu0
      %v1412 = vadd.f32 %v1251, %v1411
      %v1413 = vpop.f32.mrf.mxu0
      %1414 = vmatprep.mubr.bf16.mxu0 %v236
      %1415 = vmatmul.mubr.bf16.gmra.mxu0 %v548
      %v1416 = vpop.f32.mrf.mxu0
      %v1417 = vadd.f32 %v1256, %v1416
      %v1418 = vpop.f32.mrf.mxu0
      %v1419 = vpop.f32.mrf.mxu0
      %v1420 = vadd.f32 %v1259, %v1419
      %v1421 = vpop.f32.mrf.mxu0
      %1422 = vmatprep.mubr.bf16.mxu0 %v238
      %1423 = vmatmul.mubr.bf16.gmra.mxu0 %v551
      %v1424 = vpop.f32.mrf.mxu0
      %v1425 = vadd.f32 %v1264, %v1424
      %v1426 = vpop.f32.mrf.mxu0
      %v1427 = vpop.f32.mrf.mxu0
      %v1428 = vadd.f32 %v1267, %v1427
      %v1429 = vpop.f32.mrf.mxu0
      %1430 = vmatprep.mubr.bf16.mxu0 %v240
      %1431 = vmatmul.mubr.bf16.gmra.mxu0 %v554
      %v1432 = vpop.f32.mrf.mxu0
      %v1433 = vadd.f32 %v1272, %v1432
      %v1434 = vpop.f32.mrf.mxu0
      %v1435 = vpop.f32.mrf.mxu0
      %v1436 = vadd.f32 %v1275, %v1435
      %v1437 = vpop.f32.mrf.mxu0
      %1438 = vmatprep.mubr.bf16.mxu0 %v242
      %1439 = vmatmul.mubr.bf16.gmra.mxu0 %v557
      %v1440 = vpop.f32.mrf.mxu0
      %v1441 = vadd.f32 %v1280, %v1440
      %v1442 = vpop.f32.mrf.mxu0
      %v1443 = vpop.f32.mrf.mxu0
      %v1444 = vadd.f32 %v1283, %v1443
      %v1445 = vpop.f32.mrf.mxu0
      %1446 = vmatprep.mubr.bf16.mxu0 %v244
      %1447 = vmatmul.mubr.bf16.gmra.mxu0 %v560
      %v1448 = vpop.f32.mrf.mxu0
      %v1449 = vadd.f32 %v1288, %v1448
      %v1450 = vpop.f32.mrf.mxu0
      %v1451 = vpop.f32.mrf.mxu0
      %v1452 = vadd.f32 %v1291, %v1451
      %v1453 = vpop.f32.mrf.mxu0
      %1454 = vmatprep.mubr.bf16.mxu0 %v246
      %1455 = vmatmul.mubr.bf16.gmra.mxu0 %v563
      %v1456 = vpop.f32.mrf.mxu0
      %v1457 = vadd.f32 %v1296, %v1456
      %v1458 = vpop.f32.mrf.mxu0
      %v1459 = vpop.f32.mrf.mxu0
      %v1460 = vadd.f32 %v1299, %v1459
      %v1461 = vpop.f32.mrf.mxu0
      %1462 = vmatprep.mubr.bf16.mxu0 %v248
      %1463 = vmatmul.mubr.bf16.gmra.mxu0 %v566
      %v1464 = vpop.f32.mrf.mxu0
      %v1465 = vadd.f32 %v1304, %v1464
      %v1466 = vpop.f32.mrf.mxu0
      %v1467 = vpop.f32.mrf.mxu0
      %v1468 = vadd.f32 %v1307, %v1467
      %v1469 = vpop.f32.mrf.mxu0
      %1470 = vmatprep.mubr.bf16.mxu0 %v250
      %1471 = vmatmul.mubr.bf16.gmra.mxu0 %v569
      %v1472 = vpop.f32.mrf.mxu0
      %v1473 = vadd.f32 %v1312, %v1472
      %v1474 = vpop.f32.mrf.mxu0
      %v1475 = vpop.f32.mrf.mxu0
      %v1476 = vadd.f32 %v1315, %v1475
      %v1477 = vpop.f32.mrf.mxu0
      %1478 = vmatprep.mubr.bf16.mxu0 %v252
      %1479 = vmatmul.mubr.bf16.gmra.mxu0 %v572
      %v1480 = vpop.f32.mrf.mxu0
      %v1481 = vadd.f32 %v1320, %v1480
      %v1482 = vpop.f32.mrf.mxu0
      %v1483 = vpop.f32.mrf.mxu0
      %v1484 = vadd.f32 %v1323, %v1483
      %v1485 = vpop.f32.mrf.mxu0
      %1486 = vmatprep.mubr.bf16.mxu0 %v254
      %1487 = vmatmul.mubr.bf16.gmra.mxu0 %v575
      %v1488 = vpop.f32.mrf.mxu0
      %v1489 = vadd.f32 %v1328, %v1488
      %v1490 = vpop.f32.mrf.mxu0
      %v1491 = vpop.f32.mrf.mxu0
      %v1492 = vadd.f32 %v1331, %v1491
      %v1493 = vpop.f32.mrf.mxu0
      %1494 = vmatprep.mubr.bf16.mxu0 %v256
      %1495 = vmatmul.mubr.bf16.gmra.mxu0 %v578
      %v1496 = vpop.f32.mrf.mxu0
      %v1497 = vadd.f32 %v1336, %v1496
      %v1498 = vpop.f32.mrf.mxu0
      %v1499 = vpop.f32.mrf.mxu0
      %v1500 = vadd.f32 %v1339, %v1499
      %v1501 = vpop.f32.mrf.mxu0
      %1502 = vmatprep.mubr.bf16.mxu0 %v258
      %1503 = vmatmul.mubr.bf16.gmra.mxu0 %v581
      %v1504 = vpop.f32.mrf.mxu0
      %v1505 = vadd.f32 %v1344, %v1504
      %v1506 = vpop.f32.mrf.mxu0
      %v1507 = vpop.f32.mrf.mxu0
      %v1508 = vadd.f32 %v1347, %v1507
      %v1509 = vpop.f32.mrf.mxu0
      %1510 = vdwg.mxu0
      %1511 = vmatprep.subr.bf16.mxu0 0
      %1512 = vmatpush1.bf16.msra.mxu0 %v1084
      %1513 = vmatprep.subr.bf16.mxu0 0
      %1514 = vmatpush1.bf16.msra.mxu0 %v1083
      %1515 = vmatprep.subr.bf16.mxu0 0
      %1516 = vmatpush1.bf16.msra.mxu0 %v1082
      %1517 = vmatprep.subr.bf16.mxu0 0
      %1518 = vmatpush1.bf16.msra.mxu0 %v1081
      %1519 = vmatprep.subr.bf16.mxu0 0
      %1520 = vmatpush1.bf16.msra.mxu0 %v1080
      %1521 = vmatprep.subr.bf16.mxu0 0
      %1522 = vmatpush1.bf16.msra.mxu0 %v1079
      %1523 = vmatprep.subr.bf16.mxu0 0
      %1524 = vmatpush1.bf16.msra.mxu0 %v1078
      %1525 = vmatprep.subr.bf16.mxu0 0
      %1526 = vmatpush1.bf16.msra.mxu0 %v1077
      %1527 = vmatprep.subr.bf16.mxu0 0
      %1528 = vmatpush2.bf16.msra.mxu0 %v1092
      %1529 = vmatprep.subr.bf16.mxu0 0
      %1530 = vmatpush2.bf16.msra.mxu0 %v1091
      %1531 = vmatprep.subr.bf16.mxu0 0
      %1532 = vmatpush2.bf16.msra.mxu0 %v1090
      %1533 = vmatprep.subr.bf16.mxu0 0
      %1534 = vmatpush2.bf16.msra.mxu0 %v1089
      %1535 = vmatprep.subr.bf16.mxu0 0
      %1536 = vmatpush2.bf16.msra.mxu0 %v1088
      %1537 = vmatprep.subr.bf16.mxu0 0
      %1538 = vmatpush2.bf16.msra.mxu0 %v1087
      %1539 = vmatprep.subr.bf16.mxu0 0
      %1540 = vmatpush2.bf16.msra.mxu0 %v1086
      %1541 = vmatprep.subr.bf16.mxu0 0
      %1542 = vmatpush2.bf16.msra.mxu0 %v1085
      %1543 = vmatprep.mubr.bf16.mxu0 %v539
      %1544 = vmatmul.mubr.bf16.gmra.mxu0 %v286
      %v1545 = vpop.f32.mrf.mxu0
      %v1546 = vadd.f32 %v1385, %v1545
      %v1547 = vpop.f32.mrf.mxu0
      %v1548 = vpop.f32.mrf.mxu0
      %v1549 = vadd.f32 %v1388, %v1548
      %v1550 = vpop.f32.mrf.mxu0
      %1551 = vmatprep.mubr.bf16.mxu0 %v542
      %1552 = vmatmul.mubr.bf16.gmra.mxu0 %v298
      %v1553 = vpop.f32.mrf.mxu0
      %v1554 = vadd.f32 %v1393, %v1553
      %v1555 = vpop.f32.mrf.mxu0
      %v1556 = vpop.f32.mrf.mxu0
      %v1557 = vadd.f32 %v1396, %v1556
      %v1558 = vpop.f32.mrf.mxu0
      %1559 = vmatprep.mubr.bf16.mxu0 %v545
      %1560 = vmatmul.mubr.bf16.gmra.mxu0 %v310
      %v1561 = vpop.f32.mrf.mxu0
      %v1562 = vadd.f32 %v1401, %v1561
      %v1563 = vpop.f32.mrf.mxu0
      %v1564 = vpop.f32.mrf.mxu0
      %v1565 = vadd.f32 %v1404, %v1564
      %v1566 = vpop.f32.mrf.mxu0
      %1567 = vmatprep.mubr.bf16.mxu0 %v548
      %1568 = vmatmul.mubr.bf16.gmra.mxu0 %v322
      %v1569 = vpop.f32.mrf.mxu0
      %v1570 = vadd.f32 %v1409, %v1569
      %v1571 = vpop.f32.mrf.mxu0
      %v1572 = vpop.f32.mrf.mxu0
      %v1573 = vadd.f32 %v1412, %v1572
      %v1574 = vpop.f32.mrf.mxu0
      %1575 = vmatprep.mubr.bf16.mxu0 %v551
      %1576 = vmatmul.mubr.bf16.gmra.mxu0 %v334
      %v1577 = vpop.f32.mrf.mxu0
      %v1578 = vadd.f32 %v1417, %v1577
      %v1579 = vpop.f32.mrf.mxu0
      %v1580 = vpop.f32.mrf.mxu0
      %v1581 = vadd.f32 %v1420, %v1580
      %v1582 = vpop.f32.mrf.mxu0
      %1583 = vmatprep.mubr.bf16.mxu0 %v554
      %1584 = vmatmul.mubr.bf16.gmra.mxu0 %v346
      %v1585 = vpop.f32.mrf.mxu0
      %v1586 = vadd.f32 %v1425, %v1585
      %v1587 = vpop.f32.mrf.mxu0
      %v1588 = vpop.f32.mrf.mxu0
      %v1589 = vadd.f32 %v1428, %v1588
      %v1590 = vpop.f32.mrf.mxu0
      %1591 = vmatprep.mubr.bf16.mxu0 %v557
      %1592 = vmatmul.mubr.bf16.gmra.mxu0 %v358
      %v1593 = vpop.f32.mrf.mxu0
      %v1594 = vadd.f32 %v1433, %v1593
      %v1595 = vpop.f32.mrf.mxu0
      %v1596 = vpop.f32.mrf.mxu0
      %v1597 = vadd.f32 %v1436, %v1596
      %v1598 = vpop.f32.mrf.mxu0
      %1599 = vmatprep.mubr.bf16.mxu0 %v560
      %1600 = vmatmul.mubr.bf16.gmra.mxu0 %v370
      %v1601 = vpop.f32.mrf.mxu0
      %v1602 = vadd.f32 %v1441, %v1601
      %v1603 = vpop.f32.mrf.mxu0
      %v1604 = vpop.f32.mrf.mxu0
      %v1605 = vadd.f32 %v1444, %v1604
      %v1606 = vpop.f32.mrf.mxu0
      %1607 = vmatprep.mubr.bf16.mxu0 %v563
      %1608 = vmatmul.mubr.bf16.gmra.mxu0 %v382
      %v1609 = vpop.f32.mrf.mxu0
      %v1610 = vadd.f32 %v1449, %v1609
      %v1611 = vpop.f32.mrf.mxu0
      %v1612 = vpop.f32.mrf.mxu0
      %v1613 = vadd.f32 %v1452, %v1612
      %v1614 = vpop.f32.mrf.mxu0
      %1615 = vmatprep.mubr.bf16.mxu0 %v566
      %1616 = vmatmul.mubr.bf16.gmra.mxu0 %v394
      %v1617 = vpop.f32.mrf.mxu0
      %v1618 = vadd.f32 %v1457, %v1617
      %v1619 = vpop.f32.mrf.mxu0
      %v1620 = vpop.f32.mrf.mxu0
      %v1621 = vadd.f32 %v1460, %v1620
      %v1622 = vpop.f32.mrf.mxu0
      %1623 = vmatprep.mubr.bf16.mxu0 %v569
      %1624 = vmatmul.mubr.bf16.gmra.mxu0 %v406
      %v1625 = vpop.f32.mrf.mxu0
      %v1626 = vadd.f32 %v1465, %v1625
      %v1627 = vpop.f32.mrf.mxu0
      %v1628 = vpop.f32.mrf.mxu0
      %v1629 = vadd.f32 %v1468, %v1628
      %v1630 = vpop.f32.mrf.mxu0
      %1631 = vmatprep.mubr.bf16.mxu0 %v572
      %1632 = vmatmul.mubr.bf16.gmra.mxu0 %v418
      %v1633 = vpop.f32.mrf.mxu0
      %v1634 = vadd.f32 %v1473, %v1633
      %v1635 = vpop.f32.mrf.mxu0
      %v1636 = vpop.f32.mrf.mxu0
      %v1637 = vadd.f32 %v1476, %v1636
      %v1638 = vpop.f32.mrf.mxu0
      %1639 = vmatprep.mubr.bf16.mxu0 %v575
      %1640 = vmatmul.mubr.bf16.gmra.mxu0 %v430
      %v1641 = vpop.f32.mrf.mxu0
      %v1642 = vadd.f32 %v1481, %v1641
      %v1643 = vpop.f32.mrf.mxu0
      %v1644 = vpop.f32.mrf.mxu0
      %v1645 = vadd.f32 %v1484, %v1644
      %v1646 = vpop.f32.mrf.mxu0
      %1647 = vmatprep.mubr.bf16.mxu0 %v578
      %1648 = vmatmul.mubr.bf16.gmra.mxu0 %v442
      %v1649 = vpop.f32.mrf.mxu0
      %v1650 = vadd.f32 %v1489, %v1649
      %v1651 = vpop.f32.mrf.mxu0
      %v1652 = vpop.f32.mrf.mxu0
      %v1653 = vadd.f32 %v1492, %v1652
      %v1654 = vpop.f32.mrf.mxu0
      %1655 = vmatprep.mubr.bf16.mxu0 %v581
      %1656 = vmatmul.mubr.bf16.gmra.mxu0 %v454
      %v1657 = vpop.f32.mrf.mxu0
      %v1658 = vadd.f32 %v1497, %v1657
      %v1659 = vpop.f32.mrf.mxu0
      %v1660 = vpop.f32.mrf.mxu0
      %v1661 = vadd.f32 %v1500, %v1660
      %v1662 = vpop.f32.mrf.mxu0
      %1663 = vmatprep.mubr.bf16.mxu0 %v584
      %1664 = vmatmul.mubr.bf16.gmra.mxu0 %v466
      %v1665 = vpop.f32.mrf.mxu0
      %v1666 = vadd.f32 %v1505, %v1665
      %v1667 = vpop.f32.mrf.mxu0
      %v1668 = vpop.f32.mrf.mxu0
      %v1669 = vadd.f32 %v1508, %v1668
      %v1670 = vpop.f32.mrf.mxu0
      %1671 = vdwg.mxu0
      %1672 = vmatprep.subr.bf16.mxu0 0
      %1673 = vmatpush1.bf16.msra.mxu0 %v1100
      %1674 = vmatprep.subr.bf16.mxu0 0
      %1675 = vmatpush1.bf16.msra.mxu0 %v1099
      %1676 = vmatprep.subr.bf16.mxu0 0
      %1677 = vmatpush1.bf16.msra.mxu0 %v1098
      %1678 = vmatprep.subr.bf16.mxu0 0
      %1679 = vmatpush1.bf16.msra.mxu0 %v1097
      %1680 = vmatprep.subr.bf16.mxu0 0
      %1681 = vmatpush1.bf16.msra.mxu0 %v1096
      %1682 = vmatprep.subr.bf16.mxu0 0
      %1683 = vmatpush1.bf16.msra.mxu0 %v1095
      %1684 = vmatprep.subr.bf16.mxu0 0
      %1685 = vmatpush1.bf16.msra.mxu0 %v1094
      %1686 = vmatprep.subr.bf16.mxu0 0
      %1687 = vmatpush1.bf16.msra.mxu0 %v1093
      %1688 = vmatprep.subr.bf16.mxu0 0
      %1689 = vmatpush2.bf16.msra.mxu0 %v1108
      %1690 = vmatprep.subr.bf16.mxu0 0
      %1691 = vmatpush2.bf16.msra.mxu0 %v1107
      %1692 = vmatprep.subr.bf16.mxu0 0
      %1693 = vmatpush2.bf16.msra.mxu0 %v1106
      %1694 = vmatprep.subr.bf16.mxu0 0
      %1695 = vmatpush2.bf16.msra.mxu0 %v1105
      %1696 = vmatprep.subr.bf16.mxu0 0
      %1697 = vmatpush2.bf16.msra.mxu0 %v1104
      %1698 = vmatprep.subr.bf16.mxu0 0
      %1699 = vmatpush2.bf16.msra.mxu0 %v1103
      %1700 = vmatprep.subr.bf16.mxu0 0
      %1701 = vmatpush2.bf16.msra.mxu0 %v1102
      %1702 = vmatprep.subr.bf16.mxu0 0
      %1703 = vmatpush2.bf16.msra.mxu0 %v1101
      %1704 = vmatprep.mubr.bf16.mxu0 %v298
      %1705 = vmatmul.mubr.bf16.gmra.mxu0 %v230
      %v1706 = vpop.f32.mrf.mxu0
      %v1707 = vadd.f32 %v1546, %v1706
      %v1708 = vpop.f32.mrf.mxu0
      %v1709 = vpop.f32.mrf.mxu0
      %v1710 = vadd.f32 %v1549, %v1709
      %v1711 = vpop.f32.mrf.mxu0
      %1712 = vmatprep.mubr.bf16.mxu0 %v310
      %1713 = vmatmul.mubr.bf16.gmra.mxu0 %v232
      %v1714 = vpop.f32.mrf.mxu0
      %v1715 = vadd.f32 %v1554, %v1714
      %v1716 = vpop.f32.mrf.mxu0
      %v1717 = vpop.f32.mrf.mxu0
      %v1718 = vadd.f32 %v1557, %v1717
      %v1719 = vpop.f32.mrf.mxu0
      %1720 = vmatprep.mubr.bf16.mxu0 %v322
      %1721 = vmatmul.mubr.bf16.gmra.mxu0 %v234
      %v1722 = vpop.f32.mrf.mxu0
      %v1723 = vadd.f32 %v1562, %v1722
      %v1724 = vpop.f32.mrf.mxu0
      %v1725 = vpop.f32.mrf.mxu0
      %v1726 = vadd.f32 %v1565, %v1725
      %v1727 = vpop.f32.mrf.mxu0
      %1728 = vmatprep.mubr.bf16.mxu0 %v334
      %1729 = vmatmul.mubr.bf16.gmra.mxu0 %v236
      %v1730 = vpop.f32.mrf.mxu0
      %v1731 = vadd.f32 %v1570, %v1730
      %v1732 = vpop.f32.mrf.mxu0
      %v1733 = vpop.f32.mrf.mxu0
      %v1734 = vadd.f32 %v1573, %v1733
      %v1735 = vpop.f32.mrf.mxu0
      %1736 = vmatprep.mubr.bf16.mxu0 %v346
      %1737 = vmatmul.mubr.bf16.gmra.mxu0 %v238
      %v1738 = vpop.f32.mrf.mxu0
      %v1739 = vadd.f32 %v1578, %v1738
      %v1740 = vpop.f32.mrf.mxu0
      %v1741 = vpop.f32.mrf.mxu0
      %v1742 = vadd.f32 %v1581, %v1741
      %v1743 = vpop.f32.mrf.mxu0
      %1744 = vmatprep.mubr.bf16.mxu0 %v358
      %1745 = vmatmul.mubr.bf16.gmra.mxu0 %v240
      %v1746 = vpop.f32.mrf.mxu0
      %v1747 = vadd.f32 %v1586, %v1746
      %v1748 = vpop.f32.mrf.mxu0
      %v1749 = vpop.f32.mrf.mxu0
      %v1750 = vadd.f32 %v1589, %v1749
      %v1751 = vpop.f32.mrf.mxu0
      %1752 = vmatprep.mubr.bf16.mxu0 %v370
      %1753 = vmatmul.mubr.bf16.gmra.mxu0 %v242
      %v1754 = vpop.f32.mrf.mxu0
      %v1755 = vadd.f32 %v1594, %v1754
      %v1756 = vpop.f32.mrf.mxu0
      %v1757 = vpop.f32.mrf.mxu0
      %v1758 = vadd.f32 %v1597, %v1757
      %v1759 = vpop.f32.mrf.mxu0
      %1760 = vmatprep.mubr.bf16.mxu0 %v382
      %1761 = vmatmul.mubr.bf16.gmra.mxu0 %v244
      %v1762 = vpop.f32.mrf.mxu0
      %v1763 = vadd.f32 %v1602, %v1762
      %v1764 = vpop.f32.mrf.mxu0
      %v1765 = vpop.f32.mrf.mxu0
      %v1766 = vadd.f32 %v1605, %v1765
      %v1767 = vpop.f32.mrf.mxu0
      %1768 = vmatprep.mubr.bf16.mxu0 %v394
      %1769 = vmatmul.mubr.bf16.gmra.mxu0 %v246
      %v1770 = vpop.f32.mrf.mxu0
      %v1771 = vadd.f32 %v1610, %v1770
      %v1772 = vpop.f32.mrf.mxu0
      %v1773 = vpop.f32.mrf.mxu0
      %v1774 = vadd.f32 %v1613, %v1773
      %v1775 = vpop.f32.mrf.mxu0
      %1776 = vmatprep.mubr.bf16.mxu0 %v406
      %1777 = vmatmul.mubr.bf16.gmra.mxu0 %v248
      %v1778 = vpop.f32.mrf.mxu0
      %v1779 = vadd.f32 %v1618, %v1778
      %v1780 = vpop.f32.mrf.mxu0
      %v1781 = vpop.f32.mrf.mxu0
      %v1782 = vadd.f32 %v1621, %v1781
      %v1783 = vpop.f32.mrf.mxu0
      %1784 = vmatprep.mubr.bf16.mxu0 %v418
      %1785 = vmatmul.mubr.bf16.gmra.mxu0 %v250
      %v1786 = vpop.f32.mrf.mxu0
      %v1787 = vadd.f32 %v1626, %v1786
      %v1788 = vpop.f32.mrf.mxu0
      %v1789 = vpop.f32.mrf.mxu0
      %v1790 = vadd.f32 %v1629, %v1789
      %v1791 = vpop.f32.mrf.mxu0
      %1792 = vmatprep.mubr.bf16.mxu0 %v430
      %1793 = vmatmul.mubr.bf16.gmra.mxu0 %v252
      %v1794 = vpop.f32.mrf.mxu0
      %v1795 = vadd.f32 %v1634, %v1794
      %v1796 = vpop.f32.mrf.mxu0
      %v1797 = vpop.f32.mrf.mxu0
      %v1798 = vadd.f32 %v1637, %v1797
      %v1799 = vpop.f32.mrf.mxu0
      %1800 = vmatprep.mubr.bf16.mxu0 %v442
      %1801 = vmatmul.mubr.bf16.gmra.mxu0 %v254
      %v1802 = vpop.f32.mrf.mxu0
      %v1803 = vadd.f32 %v1642, %v1802
      %v1804 = vpop.f32.mrf.mxu0
      %v1805 = vpop.f32.mrf.mxu0
      %v1806 = vadd.f32 %v1645, %v1805
      %v1807 = vpop.f32.mrf.mxu0
      %1808 = vmatprep.mubr.bf16.mxu0 %v454
      %1809 = vmatmul.mubr.bf16.gmra.mxu0 %v256
      %v1810 = vpop.f32.mrf.mxu0
      %v1811 = vadd.f32 %v1650, %v1810
      %v1812 = vpop.f32.mrf.mxu0
      %v1813 = vpop.f32.mrf.mxu0
      %v1814 = vadd.f32 %v1653, %v1813
      %v1815 = vpop.f32.mrf.mxu0
      %1816 = vmatprep.mubr.bf16.mxu0 %v466
      %1817 = vmatmul.mubr.bf16.gmra.mxu0 %v258
      %v1818 = vpop.f32.mrf.mxu0
      %v1819 = vadd.f32 %v1658, %v1818
      %v1820 = vpop.f32.mrf.mxu0
      %v1821 = vpop.f32.mrf.mxu0
      %v1822 = vadd.f32 %v1661, %v1821
      %v1823 = vpop.f32.mrf.mxu0
      %1824 = vmatprep.mubr.bf16.mxu0 %v478
      %1825 = vmatmul.mubr.bf16.gmra.mxu0 %v260
      %v1826 = vpop.f32.mrf.mxu0
      %v1827 = vadd.f32 %v1666, %v1826
      %v1828 = vpop.f32.mrf.mxu0
      %v1829 = vpop.f32.mrf.mxu0
      %v1830 = vadd.f32 %v1669, %v1829
      %v1831 = vpop.f32.mrf.mxu0
      %1832 = vdwg.mxu0
      %1833 = vmatprep.subr.bf16.mxu0 0
      %1834 = vmatpush1.bf16.msra.mxu0 %v1116
      %1835 = vmatprep.subr.bf16.mxu0 0
      %1836 = vmatpush1.bf16.msra.mxu0 %v1115
      %1837 = vmatprep.subr.bf16.mxu0 0
      %1838 = vmatpush1.bf16.msra.mxu0 %v1114
      %1839 = vmatprep.subr.bf16.mxu0 0
      %1840 = vmatpush1.bf16.msra.mxu0 %v1113
      %1841 = vmatprep.subr.bf16.mxu0 0
      %1842 = vmatpush1.bf16.msra.mxu0 %v1112
      %1843 = vmatprep.subr.bf16.mxu0 0
      %1844 = vmatpush1.bf16.msra.mxu0 %v1111
      %1845 = vmatprep.subr.bf16.mxu0 0
      %1846 = vmatpush1.bf16.msra.mxu0 %v1110
      %1847 = vmatprep.subr.bf16.mxu0 0
      %1848 = vmatpush1.bf16.msra.mxu0 %v1109
      %1849 = vmatprep.subr.bf16.mxu0 0
      %1850 = vmatpush2.bf16.msra.mxu0 0
      %1851 = vmatprep.subr.bf16.mxu0 0
      %1852 = vmatpush2.bf16.msra.mxu0 0
      %1853 = vmatprep.subr.bf16.mxu0 0
      %1854 = vmatpush2.bf16.msra.mxu0 0
      %1855 = vmatprep.subr.bf16.mxu0 0
      %1856 = vmatpush2.bf16.msra.mxu0 0
      %1857 = vmatprep.subr.bf16.mxu0 0
      %1858 = vmatpush2.bf16.msra.mxu0 0
      %1859 = vmatprep.subr.bf16.mxu0 0
      %1860 = vmatpush2.bf16.msra.mxu0 0
      %1861 = vmatprep.subr.bf16.mxu0 0
      %1862 = vmatpush2.bf16.msra.mxu0 0
      %1863 = vmatprep.subr.bf16.mxu0 0
      %1864 = vmatpush2.bf16.msra.mxu0 0
      %1865 = vmatprep.mubr.bf16.mxu0 0
      %1866 = vmatmul.mubr.bf16.gmra.mxu0 %v542
      %v1867 = vpop.f32.mrf.mxu0
      %v1868 = vadd.f32 %v1707, %v1867
      %v1869 = vpop.f32.mrf.mxu0
      %v1870 = vpop.f32.mrf.mxu0
      %v1871 = vadd.f32 %v1710, %v1870
      %v1872 = vpop.f32.mrf.mxu0
      %1873 = vmatprep.mubr.bf16.mxu0 0
      %1874 = vmatmul.mubr.bf16.gmra.mxu0 %v545
      %v1875 = vpop.f32.mrf.mxu0
      %v1876 = vadd.f32 %v1715, %v1875
      %v1877 = vpop.f32.mrf.mxu0
      %v1878 = vpop.f32.mrf.mxu0
      %v1879 = vadd.f32 %v1718, %v1878
      %v1880 = vpop.f32.mrf.mxu0
      %1881 = vmatprep.mubr.bf16.mxu0 0
      %1882 = vmatmul.mubr.bf16.gmra.mxu0 %v548
      %v1883 = vpop.f32.mrf.mxu0
      %v1884 = vadd.f32 %v1723, %v1883
      %v1885 = vpop.f32.mrf.mxu0
      %v1886 = vpop.f32.mrf.mxu0
      %v1887 = vadd.f32 %v1726, %v1886
      %v1888 = vpop.f32.mrf.mxu0
      %1889 = vmatprep.mubr.bf16.mxu0 0
      %1890 = vmatmul.mubr.bf16.gmra.mxu0 %v551
      %v1891 = vpop.f32.mrf.mxu0
      %v1892 = vadd.f32 %v1731, %v1891
      %v1893 = vpop.f32.mrf.mxu0
      %v1894 = vpop.f32.mrf.mxu0
      %v1895 = vadd.f32 %v1734, %v1894
      %v1896 = vpop.f32.mrf.mxu0
      %1897 = vmatprep.mubr.bf16.mxu0 0
      %1898 = vmatmul.mubr.bf16.gmra.mxu0 %v554
      %v1899 = vpop.f32.mrf.mxu0
      %v1900 = vadd.f32 %v1739, %v1899
      %v1901 = vpop.f32.mrf.mxu0
      %v1902 = vpop.f32.mrf.mxu0
      %v1903 = vadd.f32 %v1742, %v1902
      %v1904 = vpop.f32.mrf.mxu0
      %1905 = vmatprep.mubr.bf16.mxu0 0
      %1906 = vmatmul.mubr.bf16.gmra.mxu0 %v557
      %v1907 = vpop.f32.mrf.mxu0
      %v1908 = vadd.f32 %v1747, %v1907
      %v1909 = vpop.f32.mrf.mxu0
      %v1910 = vpop.f32.mrf.mxu0
      %v1911 = vadd.f32 %v1750, %v1910
      %v1912 = vpop.f32.mrf.mxu0
      %1913 = vmatprep.mubr.bf16.mxu0 0
      %1914 = vmatmul.mubr.bf16.gmra.mxu0 %v560
      %v1915 = vpop.f32.mrf.mxu0
      %v1916 = vadd.f32 %v1755, %v1915
      %v1917 = vpop.f32.mrf.mxu0
      %v1918 = vpop.f32.mrf.mxu0
      %v1919 = vadd.f32 %v1758, %v1918
      %v1920 = vpop.f32.mrf.mxu0
      %1921 = vmatprep.mubr.bf16.mxu0 0
      %1922 = vmatmul.mubr.bf16.gmra.mxu0 %v563
      %v1923 = vpop.f32.mrf.mxu0
      %v1924 = vadd.f32 %v1763, %v1923
      %v1925 = vpop.f32.mrf.mxu0
      %v1926 = vpop.f32.mrf.mxu0
      %v1927 = vadd.f32 %v1766, %v1926
      %v1928 = vpop.f32.mrf.mxu0
      %1929 = vmatprep.mubr.bf16.mxu0 0
      %1930 = vmatmul.mubr.bf16.gmra.mxu0 %v566
      %v1931 = vpop.f32.mrf.mxu0
      %v1932 = vadd.f32 %v1771, %v1931
      %v1933 = vpop.f32.mrf.mxu0
      %v1934 = vpop.f32.mrf.mxu0
      %v1935 = vadd.f32 %v1774, %v1934
      %v1936 = vpop.f32.mrf.mxu0
      %1937 = vmatprep.mubr.bf16.mxu0 0
      %1938 = vmatmul.mubr.bf16.gmra.mxu0 %v569
      %v1939 = vpop.f32.mrf.mxu0
      %v1940 = vadd.f32 %v1779, %v1939
      %v1941 = vpop.f32.mrf.mxu0
      %v1942 = vpop.f32.mrf.mxu0
      %v1943 = vadd.f32 %v1782, %v1942
      %v1944 = vpop.f32.mrf.mxu0
      %1945 = vmatprep.mubr.bf16.mxu0 0
      %1946 = vmatmul.mubr.bf16.gmra.mxu0 %v572
      %v1947 = vpop.f32.mrf.mxu0
      %v1948 = vadd.f32 %v1787, %v1947
      %v1949 = vpop.f32.mrf.mxu0
      %v1950 = vpop.f32.mrf.mxu0
      %v1951 = vadd.f32 %v1790, %v1950
      %v1952 = vpop.f32.mrf.mxu0
      %1953 = vmatprep.mubr.bf16.mxu0 0
      %1954 = vmatmul.mubr.bf16.gmra.mxu0 %v575
      %v1955 = vpop.f32.mrf.mxu0
      %v1956 = vadd.f32 %v1795, %v1955
      %v1957 = vpop.f32.mrf.mxu0
      %v1958 = vpop.f32.mrf.mxu0
      %v1959 = vadd.f32 %v1798, %v1958
      %v1960 = vpop.f32.mrf.mxu0
      %1961 = vmatprep.mubr.bf16.mxu0 0
      %1962 = vmatmul.mubr.bf16.gmra.mxu0 %v578
      %v1963 = vpop.f32.mrf.mxu0
      %v1964 = vadd.f32 %v1803, %v1963
      %v1965 = vpop.f32.mrf.mxu0
      %v1966 = vpop.f32.mrf.mxu0
      %v1967 = vadd.f32 %v1806, %v1966
      %v1968 = vpop.f32.mrf.mxu0
      %1969 = vmatprep.mubr.bf16.mxu0 0
      %1970 = vmatmul.mubr.bf16.gmra.mxu0 %v581
      %v1971 = vpop.f32.mrf.mxu0
      %v1972 = vadd.f32 %v1811, %v1971
      %v1973 = vpop.f32.mrf.mxu0
      %v1974 = vpop.f32.mrf.mxu0
      %v1975 = vadd.f32 %v1814, %v1974
      %v1976 = vpop.f32.mrf.mxu0
      %1977 = vmatprep.mubr.bf16.mxu0 0
      %1978 = vmatmul.mubr.bf16.gmra.mxu0 %v584
      %v1979 = vpop.f32.mrf.mxu0
      %v1980 = vadd.f32 %v1819, %v1979
      %v1981 = vpop.f32.mrf.mxu0
      %v1982 = vpop.f32.mrf.mxu0
      %v1983 = vadd.f32 %v1822, %v1982
      %v1984 = vpop.f32.mrf.mxu0
      %1985 = vmatprep.mubr.bf16.mxu0 0
      %1986 = vmatmul.mubr.bf16.gmra.mxu0 %v587
      %v1987 = vpop.f32.mrf.mxu0
      %v1988 = vadd.f32 %v1827, %v1987
      %v1989 = vpop.f32.mrf.mxu0
      %v1990 = vpop.f32.mrf.mxu0
      %v1991 = vadd.f32 %v1830, %v1990
      %v1992 = vpop.f32.mrf.mxu0
      %1993 = vdwg.mxu0
      %vm1994 = vcmp.gt.f32.partialorder %v1868, 0.0
      %vm1995 = vcmp.gt.f32.partialorder %v1871, 0.0
      %vm1996 = vcmp.gt.f32.partialorder %v1876, 0.0
      %vm1997 = vcmp.gt.f32.partialorder %v1879, 0.0
      %vm1998 = vcmp.gt.f32.partialorder %v1884, 0.0
      %vm1999 = vcmp.gt.f32.partialorder %v1887, 0.0
      %vm2000 = vcmp.gt.f32.partialorder %v1892, 0.0
      %vm2001 = vcmp.gt.f32.partialorder %v1895, 0.0
      %vm2002 = vcmp.gt.f32.partialorder %v1900, 0.0
      %vm2003 = vcmp.gt.f32.partialorder %v1903, 0.0
      %vm2004 = vcmp.gt.f32.partialorder %v1908, 0.0
      %vm2005 = vcmp.gt.f32.partialorder %v1911, 0.0
      %vm2006 = vcmp.gt.f32.partialorder %v1916, 0.0
      %vm2007 = vcmp.gt.f32.partialorder %v1919, 0.0
      %vm2008 = vcmp.gt.f32.partialorder %v1924, 0.0
      %vm2009 = vcmp.gt.f32.partialorder %v1927, 0.0
      %vm2010 = vcmp.gt.f32.partialorder %v1932, 0.0
      %vm2011 = vcmp.gt.f32.partialorder %v1935, 0.0
      %vm2012 = vcmp.gt.f32.partialorder %v1940, 0.0
      %vm2013 = vcmp.gt.f32.partialorder %v1943, 0.0
      %vm2014 = vcmp.gt.f32.partialorder %v1948, 0.0
      %vm2015 = vcmp.gt.f32.partialorder %v1951, 0.0
      %vm2016 = vcmp.gt.f32.partialorder %v1956, 0.0
      %vm2017 = vcmp.gt.f32.partialorder %v1959, 0.0
      %vm2018 = vcmp.gt.f32.partialorder %v1964, 0.0
      %vm2019 = vcmp.gt.f32.partialorder %v1967, 0.0
      %vm2020 = vcmp.gt.f32.partialorder %v1972, 0.0
      %vm2021 = vcmp.gt.f32.partialorder %v1975, 0.0
      %vm2022 = vcmp.gt.f32.partialorder %v1980, 0.0
      %vm2023 = vcmp.gt.f32.partialorder %v1983, 0.0
      %vm2024 = vcmp.gt.f32.partialorder %v1988, 0.0
      %vm2025 = vcmp.gt.f32.partialorder %v1991, 0.0
      %v2026 = vmul.f32 %v1868, 0.1
      %v2027 = vmul.f32 %v1871, 0.1
      %v2028 = vmul.f32 %v1876, 0.1
      %v2029 = vmul.f32 %v1879, 0.1
      %v2030 = vmul.f32 %v1884, 0.1
      %v2031 = vmul.f32 %v1887, 0.1
      %v2032 = vmul.f32 %v1892, 0.1
      %v2033 = vmul.f32 %v1895, 0.1
      %v2034 = vmul.f32 %v1900, 0.1
      %v2035 = vmul.f32 %v1903, 0.1
      %v2036 = vmul.f32 %v1908, 0.1
      %v2037 = vmul.f32 %v1911, 0.1
      %v2038 = vmul.f32 %v1916, 0.1
      %v2039 = vmul.f32 %v1919, 0.1
      %v2040 = vmul.f32 %v1924, 0.1
      %v2041 = vmul.f32 %v1927, 0.1
      %v2042 = vmul.f32 %v1932, 0.1
      %v2043 = vmul.f32 %v1935, 0.1
      %v2044 = vmul.f32 %v1940, 0.1
      %v2045 = vmul.f32 %v1943, 0.1
      %v2046 = vmul.f32 %v1948, 0.1
      %v2047 = vmul.f32 %v1951, 0.1
      %v2048 = vmul.f32 %v1956, 0.1
      %v2049 = vmul.f32 %v1959, 0.1
      %v2050 = vmul.f32 %v1964, 0.1
      %v2051 = vmul.f32 %v1967, 0.1
      %v2052 = vmul.f32 %v1972, 0.1
      %v2053 = vmul.f32 %v1975, 0.1
      %v2054 = vmul.f32 %v1980, 0.1
      %v2055 = vmul.f32 %v1983, 0.1
      %v2056 = vmul.f32 %v1988, 0.1
      %v2057 = vmul.f32 %v1991, 0.1
      %v2058 = vsel %vm1994, %v1868, %v2026
      %v2059 = vsel %vm1995, %v1871, %v2027
      %v2060 = vsel %vm1996, %v1876, %v2028
      %v2061 = vsel %vm1997, %v1879, %v2029
      %v2062 = vsel %vm1998, %v1884, %v2030
      %v2063 = vsel %vm1999, %v1887, %v2031
      %v2064 = vsel %vm2000, %v1892, %v2032
      %v2065 = vsel %vm2001, %v1895, %v2033
      %v2066 = vsel %vm2002, %v1900, %v2034
      %v2067 = vsel %vm2003, %v1903, %v2035
      %v2068 = vsel %vm2004, %v1908, %v2036
      %v2069 = vsel %vm2005, %v1911, %v2037
      %v2070 = vsel %vm2006, %v1916, %v2038
      %v2071 = vsel %vm2007, %v1919, %v2039
      %v2072 = vsel %vm2008, %v1924, %v2040
      %v2073 = vsel %vm2009, %v1927, %v2041
      %v2074 = vsel %vm2010, %v1932, %v2042
      %v2075 = vsel %vm2011, %v1935, %v2043
      %v2076 = vsel %vm2012, %v1940, %v2044
      %v2077 = vsel %vm2013, %v1943, %v2045
      %v2078 = vsel %vm2014, %v1948, %v2046
      %v2079 = vsel %vm2015, %v1951, %v2047
      %v2080 = vsel %vm2016, %v1956, %v2048
      %v2081 = vsel %vm2017, %v1959, %v2049
      %v2082 = vsel %vm2018, %v1964, %v2050
      %v2083 = vsel %vm2019, %v1967, %v2051
      %v2084 = vsel %vm2020, %v1972, %v2052
      %v2085 = vsel %vm2021, %v1975, %v2053
      %v2086 = vsel %vm2022, %v1980, %v2054
      %v2087 = vsel %vm2023, %v1983, %v2055
      %v2088 = vsel %vm2024, %v1988, %v2056
      %v2089 = vsel %vm2025, %v1991, %v2057
      %2090 = vst [vmem:[%s170] sm:$0xff] %v2058
      %2091 = vst [vmem:[%s170 + $0x8] sm:$0xff] %v2059
      %2092 = vst [vmem:[%s170 + $0x10] sm:$0xff] %v2060
      %2093 = vst [vmem:[%s170 + $0x18] sm:$0xff] %v2061
      %2094 = vst [vmem:[%s170 + $0x20] sm:$0xff] %v2062
      %2095 = vst [vmem:[%s170 + $0x28] sm:$0xff] %v2063
      %2096 = vst [vmem:[%s170 + $0x30] sm:$0xff] %v2064
      %2097 = vst [vmem:[%s170 + $0x38] sm:$0xff] %v2065
      %2098 = vst [vmem:[%s170 + $0x40] sm:$0xff] %v2066
      %2099 = vst [vmem:[%s170 + $0x48] sm:$0xff] %v2067
      %2100 = vst [vmem:[%s170 + $0x50] sm:$0xff] %v2068
      %2101 = vst [vmem:[%s170 + $0x58] sm:$0xff] %v2069
      %2102 = vst [vmem:[%s170 + $0x60] sm:$0xff] %v2070
      %2103 = vst [vmem:[%s170 + $0x68] sm:$0xff] %v2071
      %2104 = vst [vmem:[%s170 + $0x70] sm:$0xff] %v2072
      %2105 = vst [vmem:[%s170 + $0x78] sm:$0xff] %v2073
      %2106 = vst [vmem:[%s170 + $0x80] sm:$0xff] %v2074
      %2107 = vst [vmem:[%s170 + $0x88] sm:$0xff] %v2075
      %2108 = vst [vmem:[%s170 + $0x90] sm:$0xff] %v2076
      %2109 = vst [vmem:[%s170 + $0x98] sm:$0xff] %v2077
      %2110 = vst [vmem:[%s170 + $0xa0] sm:$0xff] %v2078
      %2111 = vst [vmem:[%s170 + $0xa8] sm:$0xff] %v2079
      %2112 = vst [vmem:[%s170 + $0xb0] sm:$0xff] %v2080
      %2113 = vst [vmem:[%s170 + $0xb8] sm:$0xff] %v2081
      %2114 = vst [vmem:[%s170 + $0xc0] sm:$0xff] %v2082
      %2115 = vst [vmem:[%s170 + $0xc8] sm:$0xff] %v2083
      %2116 = vst [vmem:[%s170 + $0xd0] sm:$0xff] %v2084
      %2117 = vst [vmem:[%s170 + $0xd8] sm:$0xff] %v2085
      %2118 = vst [vmem:[%s170 + $0xe0] sm:$0xff] %v2086
      %2119 = vst [vmem:[%s170 + $0xe8] sm:$0xff] %v2087
      %2120 = vst [vmem:[%s170 + $0xf0] sm:$0xff] %v2088
      %2121 = vst [vmem:[%s170 + $0xf8] sm:$0xff] %v2089
      %p2122 = scmp.lt.s32.totalorder %s14, 1
      %s2123 = scalar_select %p2122, %s14, 1
      %s2124 = smul.addr %s2123, 32
      %s2125 = smul.addr %s2124, 8
      %s2126 = scalar_lea.vmem %s3, %s2125
      // Predicated region
      $region33: #{_forward.10} parent=31 // pred_check
        %p2127 = pneg %p100
      $region34: #{_forward.10} parent=31 // pred_check_branch
        %2129 = sbr.rel (%p2127) target = $region36
      $region35: #{_forward.10} parent=31 // pred_region
        _
      $region36: #{_forward.10} parent=31 // pred_fallthru
        _
    $region32: #{_forward.10} parent=5 // pred_fallthru
      _
    %p2130 = scmp.le.s32.totalorder 2, %s9
    // Predicated region
    $region37: #{_forward.10} parent=5 // pred_check
      %p2131 = pneg %p2130
    $region38: #{_forward.10} parent=5 // pred_check_branch
      %2133 = sbr.rel (%p2131) target = $region40
    $region39: #{_forward.10} parent=5 // pred_region
      %s2134 = ssub.s32 %s9, 2
      // Predicated region
      $region41: #{_forward.10} parent=39 // pred_check
        %p2135 = pneg %p106
      $region42: #{_forward.10} parent=39 // pred_check_branch
        %2137 = sbr.rel (%p2135) target = $region44
      $region43: #{_forward.10} parent=39 // pred_region
        %p2138 = scmp.lt.s32.totalorder %s15, 1
        %s2139 = scalar_select %p2138, %s15, 1
        %s2140 = smul.addr %s2139, 32
        %s2141 = smul.addr %s2140, 8
        %s2142 = scalar_lea.vmem %s3, %s2141
      $region44: #{_forward.10} parent=39 // pred_fallthru
        _
    $region40: #{_forward.10} parent=5 // pred_fallthru
      _
  $region6: #{_forward.10} parent=0 // loop_footer
    %s13 = sadd.s32 1, %s9
  $region7: #{_forward.10} parent=0 // loop_footer_branch
    %8 = sbr.rel target = $region3
  $region8: #{_forward.10} parent=0 // loop_exit
    _

// kernel: _forward.15
$region0: #{_forward.15}
  #allocation0 [shape = 'u32[]', space=smem, size = 0x4, offset = 0x4, fixed_abs, tag = 'smem constant byte address 0x4 - core index']
  #allocation1 [shape = 'u32[144,128]{1,0:T(1,128)}', space=vmem, size = 0x12000, scoped, tag = 'internal scratch']
  %s0 = inlined_call_operand.vmem [shape: f32[2,9,9,128], index: 0, kind: input, shape index: {}]
  %s1 = inlined_call_operand.vmem [shape: f32[2,8,8,128], index: 1, kind: output, shape index: {}]
  %s2 = sld [smem:[#allocation0]]
  $region37: #{_forward.15} parent=0
    _
  %s4 = ssub.s32 1, %s2
  %s5 = scalar_select 0, %s4, %s2
  loop: start=0, step=1, limit=4
  $region2: #{_forward.15} parent=0 // loop_pre_header
    _
  $region3: #{_forward.15} parent=0 // loop_header
    %s7 = sphi 0, %s11
    %p8 = scmp.ge.s32.totalorder %s7, 4
    %s17 = sphi 0, %s19
    %s20 = sphi 0, %s17
    %s21 = sphi 0, %s20
    %s37 = sphi 0, %s21
    %s43 = sphi 0, %s45
    %s46 = sphi 0, %s43
    %s47 = sphi 0, %s46
    %s63 = sphi 0, %s47
  $region4: #{_forward.15} parent=0 // loop_header_branch
    %10 = sbr.rel (%p8) target = $region8
  $region5: #{_forward.15} parent=0 // loop_body
    %s12 = ssub.s32 %s7, 1
    %s13 = ssub.s32 %s7, 2
    %s14 = sadd.s32 %s7, 1
    %s15 = ssub.s32 %s7, %s14
    %p16 = scmp.eq.s32.totalorder %s15, 0
    %s18 = sadd.s32 %s17, 1
    %s19 = scalar_select %p16, %s17, %s18
    %p22 = pneg %p16
    %p23 = scmp.eq.s32.totalorder %s7, 1
    %p24 = por %p22, %p23
    %p25 = scmp.ne.s32.totalorder %s17, %s20
    %p26 = scmp.eq.s32.totalorder %s7, 0
    %p27 = por %p25, %p26
    %p28 = scmp.ne.s32.totalorder %s17, %s20
    %p29 = scmp.eq.s32.totalorder %s12, 1
    %p30 = por %p28, %p29
    %p31 = scmp.ne.s32.totalorder %s20, %s21
    %p32 = scmp.eq.s32.totalorder %s12, 0
    %p33 = por %p31, %p32
    %p34 = scmp.ne.s32.totalorder %s20, %s21
    %p35 = scmp.eq.s32.totalorder %s13, 1
    %p36 = por %p34, %p35
    %p38 = scmp.ne.s32.totalorder %s21, %s37
    %p39 = scmp.eq.s32.totalorder %s13, 0
    %p40 = por %p38, %p39
    %s41 = ssub.s32 %s7, %s14
    %p42 = scmp.eq.s32.totalorder %s41, 0
    %s44 = sadd.s32 %s43, 1
    %s45 = scalar_select %p42, %s43, %s44
    %p48 = pneg %p42
    %p49 = scmp.eq.s32.totalorder %s7, 1
    %p50 = por %p48, %p49
    %p51 = scmp.ne.s32.totalorder %s43, %s46
    %p52 = scmp.eq.s32.totalorder %s7, 0
    %p53 = por %p51, %p52
    %p54 = scmp.ne.s32.totalorder %s43, %s46
    %p55 = scmp.eq.s32.totalorder %s12, 1
    %p56 = por %p54, %p55
    %p57 = scmp.ne.s32.totalorder %s46, %s47
    %p58 = scmp.eq.s32.totalorder %s12, 0
    %p59 = por %p57, %p58
    %p60 = scmp.ne.s32.totalorder %s46, %s47
    %p61 = scmp.eq.s32.totalorder %s13, 1
    %p62 = por %p60, %p61
    %p64 = scmp.ne.s32.totalorder %s47, %s63
    %p65 = scmp.eq.s32.totalorder %s13, 0
    %p66 = por %p64, %p65
    %p67 = scmp.le.s32.totalorder 1, %s7
    %p68 = scmp.lt.s32.totalorder %s7, 3
    %p69 = pnand %p67, %p68
    %p70 = pneg %p69
    // Predicated region
    $region9: #{_forward.15} parent=5 // pred_check
      _
    $region10: #{_forward.15} parent=5 // pred_check_branch
      %72 = sbr.rel (%p69) target = $region12
    $region11: #{_forward.15} parent=5 // pred_region
      %s73 = ssub.s32 %s7, 1
    $region12: #{_forward.15} parent=5 // pred_fallthru
      _
    %p74 = scmp.lt.s32.totalorder %s7, 2
    // Predicated region
    $region13: #{_forward.15} parent=5 // pred_check
      %p75 = pneg %p74
    $region14: #{_forward.15} parent=5 // pred_check_branch
      %77 = sbr.rel (%p75) target = $region16
    $region15: #{_forward.15} parent=5 // pred_region
      // Predicated region
      $region17: #{_forward.15} parent=15 // pred_check
        %p78 = pneg %p27
      $region18: #{_forward.15} parent=15 // pred_check_branch
        %80 = sbr.rel (%p78) target = $region20
      $region19: #{_forward.15} parent=15 // pred_region
        %p81 = scmp.lt.s32.totalorder %s7, 1
        %s82 = scalar_select %p81, %s7, 1
        %s83 = smul.addr %s82, 18
        %s84 = smul.addr %s83, 8
        %s85 = scalar_lea.vmem %s0, %s84
      $region20: #{_forward.15} parent=15 // pred_fallthru
        _
    $region16: #{_forward.15} parent=5 // pred_fallthru
      _
    %p86 = scmp.le.s32.totalorder 1, %s7
    %p87 = scmp.lt.s32.totalorder %s7, 3
    %p88 = pnand %p86, %p87
    %p89 = pneg %p88
    // Predicated region
    $region21: #{_forward.15} parent=5 // pred_check
      _
    $region22: #{_forward.15} parent=5 // pred_check_branch
      %91 = sbr.rel (%p88) target = $region24
    $region23: #{_forward.15} parent=5 // pred_region
      %s92 = ssub.s32 %s7, 1
      %p93 = scmp.lt.s32.totalorder %s12, 1
      %s94 = scalar_select %p93, %s12, 1
      %s95 = smul.addr %s94, 18
      %s96 = smul.addr %s95, 8
      %s97 = scalar_lea.vmem %s0, %s96
      %p98 = pneg %p33
      %p99 = pneg %p30
      %p100 = pneg %p59
      %p101 = pneg %p56
      %p102 = scmp.lt.s32.totalorder %s12, 1
      %s103 = scalar_select %p102, %s12, 1
      %s104 = smul.addr %s103, 8
      %s105 = smul.addr %s104, 8
      %s106 = scalar_lea.vmem %s1, %s105
      %p107 = scmp.lt.s32.totalorder %s12, 1
      %s108 = scalar_select %p107, %s12, 1
      %s109 = smul.addr %s108, 18
      %s110 = smul.addr %s109, 8
      %s111 = scalar_lea.vmem %s0, %s110
      %p112 = scmp.lt.s32.totalorder %s12, 1
      %s113 = scalar_select %p112, %s12, 1
      %s114 = smul.addr %s113, 8
      %s115 = smul.addr %s114, 8
      %s116 = scalar_lea.vmem %s1, %s115
      %v117 = vld [vmem:[%s111] sm:$0xff]
      %v118 = vld [vmem:[%s111 + $0x8] sm:$0x1]
      %v119 = vld [vmem:[%s111 + $0x10] sm:$0xff]
      %v120 = vld [vmem:[%s111 + $0x18] sm:$0x1]
      %v121 = vld [vmem:[%s111 + $0x20] sm:$0xff]
      %v122 = vld [vmem:[%s111 + $0x28] sm:$0x1]
      %v123 = vld [vmem:[%s111 + $0x30] sm:$0xff]
      %v124 = vld [vmem:[%s111 + $0x38] sm:$0x1]
      %v125 = vld [vmem:[%s111 + $0x40] sm:$0xff]
      %v126 = vld [vmem:[%s111 + $0x48] sm:$0x1]
      %v127 = vld [vmem:[%s111 + $0x50] sm:$0xff]
      %v128 = vld [vmem:[%s111 + $0x58] sm:$0x1]
      %v129 = vld [vmem:[%s111 + $0x60] sm:$0xff]
      %v130 = vld [vmem:[%s111 + $0x68] sm:$0x1]
      %v131 = vld [vmem:[%s111 + $0x70] sm:$0xff]
      %v132 = vld [vmem:[%s111 + $0x78] sm:$0x1]
      %v133 = vld [vmem:[%s111 + $0x80] sm:$0xff]
      %v134 = vld [vmem:[%s111 + $0x88] sm:$0x1]
      %v135 = vmax.f32 %v117, %v119
      %v136 = vmax.f32 %v119, %v121
      %v137 = vmax.f32 %v121, %v123
      %v138 = vmax.f32 %v123, %v125
      %v139 = vmax.f32 %v125, %v127
      %v140 = vmax.f32 %v127, %v129
      %v141 = vmax.f32 %v129, %v131
      %v142 = vmax.f32 %v131, %v133
      %v143 = vmax.f32 %v118, %v120
      %v144 = vmax.f32 %v120, %v122
      %v145 = vmax.f32 %v122, %v124
      %v146 = vmax.f32 %v124, %v126
      %v147 = vmax.f32 %v126, %v128
      %v148 = vmax.f32 %v128, %v130
      %v149 = vmax.f32 %v130, %v132
      %v150 = vmax.f32 %v132, %v134
      %vm167 = vcmask 1046528
      %v168 = vrot.slane %v135, 1
      %v169 = vrot.slane %v143, 1
      %v170 = vsel %vm167, %v168, %v169
      %v171 = vrot.slane %v136, 1
      %v172 = vrot.slane %v144, 1
      %v173 = vsel %vm167, %v171, %v172
      %v174 = vrot.slane %v137, 1
      %v175 = vrot.slane %v145, 1
      %v176 = vsel %vm167, %v174, %v175
      %v177 = vrot.slane %v138, 1
      %v178 = vrot.slane %v146, 1
      %v179 = vsel %vm167, %v177, %v178
      %v180 = vrot.slane %v139, 1
      %v181 = vrot.slane %v147, 1
      %v182 = vsel %vm167, %v180, %v181
      %v183 = vrot.slane %v140, 1
      %v184 = vrot.slane %v148, 1
      %v185 = vsel %vm167, %v183, %v184
      %v186 = vrot.slane %v141, 1
      %v187 = vrot.slane %v149, 1
      %v188 = vsel %vm167, %v186, %v187
      %v189 = vrot.slane %v142, 1
      %v190 = vrot.slane %v150, 1
      %v191 = vsel %vm167, %v189, %v190
      %v200 = vmax.f32 %v135, %v170
      %v201 = vmax.f32 %v136, %v173
      %v202 = vmax.f32 %v137, %v176
      %v203 = vmax.f32 %v138, %v179
      %v204 = vmax.f32 %v139, %v182
      %v205 = vmax.f32 %v140, %v185
      %v206 = vmax.f32 %v141, %v188
      %v207 = vmax.f32 %v142, %v191
      %208 = vst [vmem:[%s116] sm:$0xff] %v200
      %209 = vst [vmem:[%s116 + $0x8] sm:$0xff] %v201
      %210 = vst [vmem:[%s116 + $0x10] sm:$0xff] %v202
      %211 = vst [vmem:[%s116 + $0x18] sm:$0xff] %v203
      %212 = vst [vmem:[%s116 + $0x20] sm:$0xff] %v204
      %213 = vst [vmem:[%s116 + $0x28] sm:$0xff] %v205
      %214 = vst [vmem:[%s116 + $0x30] sm:$0xff] %v206
      %215 = vst [vmem:[%s116 + $0x38] sm:$0xff] %v207
      %p216 = scmp.lt.s32.totalorder %s12, 1
      %s217 = scalar_select %p216, %s12, 1
      %s218 = smul.addr %s217, 8
      %s219 = smul.addr %s218, 8
      %s220 = scalar_lea.vmem %s1, %s219
      // Predicated region
      $region25: #{_forward.15} parent=23 // pred_check
        %p221 = pneg %p56
      $region26: #{_forward.15} parent=23 // pred_check_branch
        %223 = sbr.rel (%p221) target = $region28
      $region27: #{_forward.15} parent=23 // pred_region
        _
      $region28: #{_forward.15} parent=23 // pred_fallthru
        _
    $region24: #{_forward.15} parent=5 // pred_fallthru
      _
    %p224 = scmp.le.s32.totalorder 2, %s7
    // Predicated region
    $region29: #{_forward.15} parent=5 // pred_check
      %p225 = pneg %p224
    $region30: #{_forward.15} parent=5 // pred_check_branch
      %227 = sbr.rel (%p225) target = $region32
    $region31: #{_forward.15} parent=5 // pred_region
      %s228 = ssub.s32 %s7, 2
      // Predicated region
      $region33: #{_forward.15} parent=31 // pred_check
        %p229 = pneg %p62
      $region34: #{_forward.15} parent=31 // pred_check_branch
        %231 = sbr.rel (%p229) target = $region36
      $region35: #{_forward.15} parent=31 // pred_region
        %p232 = scmp.lt.s32.totalorder %s13, 1
        %s233 = scalar_select %p232, %s13, 1
        %s234 = smul.addr %s233, 8
        %s235 = smul.addr %s234, 8
        %s236 = scalar_lea.vmem %s1, %s235
      $region36: #{_forward.15} parent=31 // pred_fallthru
        _
    $region32: #{_forward.15} parent=5 // pred_fallthru
      _
  $region6: #{_forward.15} parent=0 // loop_footer
    %s11 = sadd.s32 1, %s7
  $region7: #{_forward.15} parent=0 // loop_footer_branch
    %6 = sbr.rel target = $region3
  $region8: #{_forward.15} parent=0 // loop_exit
    _

// kernel: _forward.18
$region0: #{_forward.18}
  #allocation0 [shape = 'u32[]', space=smem, size = 0x4, offset = 0x4, fixed_abs, tag = 'smem constant byte address 0x4 - core index']
  #allocation1 [shape = 'u32[144,128]{1,0:T(1,128)}', space=vmem, size = 0x12000, scoped, tag = 'internal scratch']
  %s0 = inlined_call_operand.vmem [shape: f32[2,64,128], index: 0, kind: input, shape index: {}]
  %s1 = inlined_call_operand.vmem [shape: f32[2,1,128], index: 1, kind: output, shape index: {}]
  %s2 = sld [smem:[#allocation0]]
  $region37: #{_forward.18} parent=0
    _
  %s4 = ssub.s32 1, %s2
  %s5 = scalar_select 0, %s4, %s2
  loop: start=0, step=1, limit=4
  $region2: #{_forward.18} parent=0 // loop_pre_header
    _
  $region3: #{_forward.18} parent=0 // loop_header
    %s7 = sphi 0, %s11
    %p8 = scmp.ge.s32.totalorder %s7, 4
    %s17 = sphi 0, %s19
    %s20 = sphi 0, %s17
    %s21 = sphi 0, %s20
    %s37 = sphi 0, %s21
    %s43 = sphi 0, %s45
    %s46 = sphi 0, %s43
    %s47 = sphi 0, %s46
    %s63 = sphi 0, %s47
  $region4: #{_forward.18} parent=0 // loop_header_branch
    %10 = sbr.rel (%p8) target = $region8
  $region5: #{_forward.18} parent=0 // loop_body
    %s12 = ssub.s32 %s7, 1
    %s13 = ssub.s32 %s7, 2
    %s14 = sadd.s32 %s7, 1
    %s15 = ssub.s32 %s7, %s14
    %p16 = scmp.eq.s32.totalorder %s15, 0
    %s18 = sadd.s32 %s17, 1
    %s19 = scalar_select %p16, %s17, %s18
    %p22 = pneg %p16
    %p23 = scmp.eq.s32.totalorder %s7, 1
    %p24 = por %p22, %p23
    %p25 = scmp.ne.s32.totalorder %s17, %s20
    %p26 = scmp.eq.s32.totalorder %s7, 0
    %p27 = por %p25, %p26
    %p28 = scmp.ne.s32.totalorder %s17, %s20
    %p29 = scmp.eq.s32.totalorder %s12, 1
    %p30 = por %p28, %p29
    %p31 = scmp.ne.s32.totalorder %s20, %s21
    %p32 = scmp.eq.s32.totalorder %s12, 0
    %p33 = por %p31, %p32
    %p34 = scmp.ne.s32.totalorder %s20, %s21
    %p35 = scmp.eq.s32.totalorder %s13, 1
    %p36 = por %p34, %p35
    %p38 = scmp.ne.s32.totalorder %s21, %s37
    %p39 = scmp.eq.s32.totalorder %s13, 0
    %p40 = por %p38, %p39
    %s41 = ssub.s32 %s7, %s14
    %p42 = scmp.eq.s32.totalorder %s41, 0
    %s44 = sadd.s32 %s43, 1
    %s45 = scalar_select %p42, %s43, %s44
    %p48 = pneg %p42
    %p49 = scmp.eq.s32.totalorder %s7, 1
    %p50 = por %p48, %p49
    %p51 = scmp.ne.s32.totalorder %s43, %s46
    %p52 = scmp.eq.s32.totalorder %s7, 0
    %p53 = por %p51, %p52
    %p54 = scmp.ne.s32.totalorder %s43, %s46
    %p55 = scmp.eq.s32.totalorder %s12, 1
    %p56 = por %p54, %p55
    %p57 = scmp.ne.s32.totalorder %s46, %s47
    %p58 = scmp.eq.s32.totalorder %s12, 0
    %p59 = por %p57, %p58
    %p60 = scmp.ne.s32.totalorder %s46, %s47
    %p61 = scmp.eq.s32.totalorder %s13, 1
    %p62 = por %p60, %p61
    %p64 = scmp.ne.s32.totalorder %s47, %s63
    %p65 = scmp.eq.s32.totalorder %s13, 0
    %p66 = por %p64, %p65
    %p67 = scmp.le.s32.totalorder 1, %s7
    %p68 = scmp.lt.s32.totalorder %s7, 3
    %p69 = pnand %p67, %p68
    %p70 = pneg %p69
    // Predicated region
    $region9: #{_forward.18} parent=5 // pred_check
      _
    $region10: #{_forward.18} parent=5 // pred_check_branch
      %72 = sbr.rel (%p69) target = $region12
    $region11: #{_forward.18} parent=5 // pred_region
      %s73 = ssub.s32 %s7, 1
    $region12: #{_forward.18} parent=5 // pred_fallthru
      _
    %p74 = scmp.lt.s32.totalorder %s7, 2
    // Predicated region
    $region13: #{_forward.18} parent=5 // pred_check
      %p75 = pneg %p74
    $region14: #{_forward.18} parent=5 // pred_check_branch
      %77 = sbr.rel (%p75) target = $region16
    $region15: #{_forward.18} parent=5 // pred_region
      // Predicated region
      $region17: #{_forward.18} parent=15 // pred_check
        %p78 = pneg %p27
      $region18: #{_forward.18} parent=15 // pred_check_branch
        %80 = sbr.rel (%p78) target = $region20
      $region19: #{_forward.18} parent=15 // pred_region
        %p81 = scmp.lt.s32.totalorder %s7, 1
        %s82 = scalar_select %p81, %s7, 1
        %s83 = smul.addr %s82, 8
        %s84 = smul.addr %s83, 8
        %s85 = scalar_lea.vmem %s0, %s84
      $region20: #{_forward.18} parent=15 // pred_fallthru
        _
    $region16: #{_forward.18} parent=5 // pred_fallthru
      _
    %p86 = scmp.le.s32.totalorder 1, %s7
    %p87 = scmp.lt.s32.totalorder %s7, 3
    %p88 = pnand %p86, %p87
    %p89 = pneg %p88
    // Predicated region
    $region21: #{_forward.18} parent=5 // pred_check
      _
    $region22: #{_forward.18} parent=5 // pred_check_branch
      %91 = sbr.rel (%p88) target = $region24
    $region23: #{_forward.18} parent=5 // pred_region
      %s92 = ssub.s32 %s7, 1
      %p93 = scmp.lt.s32.totalorder %s12, 1
      %s94 = scalar_select %p93, %s12, 1
      %s95 = smul.addr %s94, 8
      %s96 = smul.addr %s95, 8
      %s97 = scalar_lea.vmem %s0, %s96
      %p98 = pneg %p33
      %p99 = pneg %p30
      %p100 = pneg %p59
      %p101 = pneg %p56
      %p102 = scmp.lt.s32.totalorder %s12, 1
      %s103 = scalar_select %p102, %s12, 1
      %s104 = scalar_lea.vmem %s1, %s103
      %p105 = scmp.lt.s32.totalorder %s12, 1
      %s106 = scalar_select %p105, %s12, 1
      %s107 = smul.addr %s106, 8
      %s108 = smul.addr %s107, 8
      %s109 = scalar_lea.vmem %s0, %s108
      %p110 = scmp.lt.s32.totalorder %s12, 1
      %s111 = scalar_select %p110, %s12, 1
      %s112 = scalar_lea.vmem %s1, %s111
      %v113 = vld [vmem:[%s109] sm:$0xff]
      %v114 = vld [vmem:[%s109 + $0x8] sm:$0xff]
      %v115 = vld [vmem:[%s109 + $0x10] sm:$0xff]
      %v116 = vld [vmem:[%s109 + $0x18] sm:$0xff]
      %v117 = vld [vmem:[%s109 + $0x20] sm:$0xff]
      %v118 = vld [vmem:[%s109 + $0x28] sm:$0xff]
      %v119 = vld [vmem:[%s109 + $0x30] sm:$0xff]
      %v120 = vld [vmem:[%s109 + $0x38] sm:$0xff]
      %v121 = vadd.f32 %v113, %v114
      %v122 = vadd.f32 %v121, %v115
      %v123 = vadd.f32 %v122, %v116
      %v124 = vadd.f32 %v123, %v117
      %v125 = vadd.f32 %v124, %v118
      %v126 = vadd.f32 %v125, %v119
      %v127 = vadd.f32 %v126, %v120
      %v128 = vrot.slane %v127, 4
      %v129 = vadd.f32 %v127, %v128
      %v130 = vrot.slane %v129, 2
      %v131 = vadd.f32 %v129, %v130
      %v132 = vrot.slane %v131, 1
      %v133 = vadd.f32 %v131, %v132
      %v134 = vrcp.pop 64.0
      %v135 = vmul.f32 %v133, %v134
      %136 = vst [vmem:[%s112] sm:$0x1] %v135
      %p137 = scmp.lt.s32.totalorder %s12, 1
      %s138 = scalar_select %p137, %s12, 1
      %s139 = scalar_lea.vmem %s1, %s138
      // Predicated region
      $region25: #{_forward.18} parent=23 // pred_check
        %p140 = pneg %p56
      $region26: #{_forward.18} parent=23 // pred_check_branch
        %142 = sbr.rel (%p140) target = $region28
      $region27: #{_forward.18} parent=23 // pred_region
        _
      $region28: #{_forward.18} parent=23 // pred_fallthru
        _
    $region24: #{_forward.18} parent=5 // pred_fallthru
      _
    %p143 = scmp.le.s32.totalorder 2, %s7
    // Predicated region
    $region29: #{_forward.18} parent=5 // pred_check
      %p144 = pneg %p143
    $region30: #{_forward.18} parent=5 // pred_check_branch
      %146 = sbr.rel (%p144) target = $region32
    $region31: #{_forward.18} parent=5 // pred_region
      %s147 = ssub.s32 %s7, 2
      // Predicated region
      $region33: #{_forward.18} parent=31 // pred_check
        %p148 = pneg %p62
      $region34: #{_forward.18} parent=31 // pred_check_branch
        %150 = sbr.rel (%p148) target = $region36
      $region35: #{_forward.18} parent=31 // pred_region
        %p151 = scmp.lt.s32.totalorder %s13, 1
        %s152 = scalar_select %p151, %s13, 1
        %s153 = scalar_lea.vmem %s1, %s152
      $region36: #{_forward.18} parent=31 // pred_fallthru
        _
    $region32: #{_forward.18} parent=5 // pred_fallthru
      _
  $region6: #{_forward.18} parent=0 // loop_footer
    %s11 = sadd.s32 1, %s7
  $region7: #{_forward.18} parent=0 // loop_footer_branch
    %6 = sbr.rel target = $region3
  $region8: #{_forward.18} parent=0 // loop_exit
    _

// kernel: _forward.16
$region0: #{_forward.16}
  #allocation0 [shape = 'u32[]', space=smem, size = 0x4, offset = 0x4, fixed_abs, tag = 'smem constant byte address 0x4 - core index']
  #allocation1 [shape = 'u32[144,128]{1,0:T(1,128)}', space=vmem, size = 0x12000, scoped, tag = 'internal scratch']
  %s0 = inlined_call_operand.vmem [shape: f32[32,64], index: 0, kind: input, shape index: {}]
  %s1 = inlined_call_operand.vmem [shape: bf16[64,128], index: 1, kind: input, shape index: {}]
  %s2 = inlined_call_operand.vmem [shape: f32[1,128], index: 2, kind: input, shape index: {}]
  %s3 = inlined_call_operand.vmem [shape: f32[32,128], index: 3, kind: output, shape index: {}]
  %s4 = sld [smem:[#allocation0]]
  $region53: #{_forward.16} parent=0
    _
  %s6 = ssub.s32 1, %s4
  %s7 = scalar_select 0, %s6, %s4
  loop: start=0, step=1, limit=4
  $region2: #{_forward.16} parent=0 // loop_pre_header
    _
  $region3: #{_forward.16} parent=0 // loop_header
    %s9 = sphi 0, %s13
    %p10 = scmp.ge.s32.totalorder %s9, 4
    %s16 = sphi 0, %s35
    %s17 = sphi 0, %s31
    %s18 = sphi 0, %s27
    %s19 = sphi 0, %s16
    %s20 = sphi 0, %s17
    %s21 = sphi 0, %s18
    %s22 = sphi 0, %s19
    %s23 = sphi 0, %s20
    %s24 = sphi 0, %s21
    %s40 = sphi 0, %s42
    %s43 = sphi 0, %s40
    %s44 = sphi 0, %s43
    %s60 = sphi 0, %s44
    %s68 = sphi 0, %s70
    %s71 = sphi 0, %s68
    %s72 = sphi 0, %s71
    %s88 = sphi 0, %s72
    %s94 = sphi 0, %s96
    %s97 = sphi 0, %s94
    %s98 = sphi 0, %s97
    %s114 = sphi 0, %s98
    %s122 = sphi 0, %s124
    %s125 = sphi 0, %s122
    %s126 = sphi 0, %s125
    %s142 = sphi 0, %s126
  $region4: #{_forward.16} parent=0 // loop_header_branch
    %12 = sbr.rel (%p10) target = $region8
  $region5: #{_forward.16} parent=0 // loop_body
    %s14 = ssub.s32 %s9, 1
    %s15 = ssub.s32 %s9, 2
    %s25 = sadd.s32 1, %s18
    %p26 = scmp.ge.s32.totalorder %s25, 1
    %s27 = scalar_select %p26, 0, %s25
    %s28 = sadd.s32 1, %s17
    %s29 = scalar_select %p26, %s28, %s17
    %p30 = scmp.ge.s32.totalorder %s29, 1
    %s31 = scalar_select %p30, 0, %s29
    %s32 = sadd.s32 1, %s16
    %s33 = scalar_select %p30, %s32, %s16
    %p34 = scmp.ge.s32.totalorder %s33, 2
    %s35 = scalar_select %p34, 0, %s33
    %s36 = ssub.s32 %s16, %s35
    %s37 = ssub.s32 %s18, %s27
    %s38 = sor.u32 %s36, %s37
    %p39 = scmp.eq.s32.totalorder %s38, 0
    %s41 = sadd.s32 %s40, 1
    %s42 = scalar_select %p39, %s40, %s41
    %p45 = pneg %p39
    %p46 = scmp.eq.s32.totalorder %s9, 1
    %p47 = por %p45, %p46
    %p48 = scmp.ne.s32.totalorder %s40, %s43
    %p49 = scmp.eq.s32.totalorder %s9, 0
    %p50 = por %p48, %p49
    %p51 = scmp.ne.s32.totalorder %s40, %s43
    %p52 = scmp.eq.s32.totalorder %s14, 1
    %p53 = por %p51, %p52
    %p54 = scmp.ne.s32.totalorder %s43, %s44
    %p55 = scmp.eq.s32.totalorder %s14, 0
    %p56 = por %p54, %p55
    %p57 = scmp.ne.s32.totalorder %s43, %s44
    %p58 = scmp.eq.s32.totalorder %s15, 1
    %p59 = por %p57, %p58
    %p61 = scmp.ne.s32.totalorder %s44, %s60
    %p62 = scmp.eq.s32.totalorder %s15, 0
    %p63 = por %p61, %p62
    %s64 = ssub.s32 %s18, %s27
    %s65 = ssub.s32 %s17, %s31
    %s66 = sor.u32 %s64, %s65
    %p67 = scmp.eq.s32.totalorder %s66, 0
    %s69 = sadd.s32 %s68, 1
    %s70 = scalar_select %p67, %s68, %s69
    %p73 = pneg %p67
    %p74 = scmp.eq.s32.totalorder %s9, 1
    %p75 = por %p73, %p74
    %p76 = scmp.ne.s32.totalorder %s68, %s71
    %p77 = scmp.eq.s32.totalorder %s9, 0
    %p78 = por %p76, %p77
    %p79 = scmp.ne.s32.totalorder %s68, %s71
    %p80 = scmp.eq.s32.totalorder %s14, 1
    %p81 = por %p79, %p80
    %p82 = scmp.ne.s32.totalorder %s71, %s72
    %p83 = scmp.eq.s32.totalorder %s14, 0
    %p84 = por %p82, %p83
    %p85 = scmp.ne.s32.totalorder %s71, %s72
    %p86 = scmp.eq.s32.totalorder %s15, 1
    %p87 = por %p85, %p86
    %p89 = scmp.ne.s32.totalorder %s72, %s88
    %p90 = scmp.eq.s32.totalorder %s15, 0
    %p91 = por %p89, %p90
    %s92 = ssub.s32 %s17, %s31
    %p93 = scmp.eq.s32.totalorder %s92, 0
    %s95 = sadd.s32 %s94, 1
    %s96 = scalar_select %p93, %s94, %s95
    %p99 = pneg %p93
    %p100 = scmp.eq.s32.totalorder %s9, 1
    %p101 = por %p99, %p100
    %p102 = scmp.ne.s32.totalorder %s94, %s97
    %p103 = scmp.eq.s32.totalorder %s9, 0
    %p104 = por %p102, %p103
    %p105 = scmp.ne.s32.totalorder %s94, %s97
    %p106 = scmp.eq.s32.totalorder %s14, 1
    %p107 = por %p105, %p106
    %p108 = scmp.ne.s32.totalorder %s97, %s98
    %p109 = scmp.eq.s32.totalorder %s14, 0
    %p110 = por %p108, %p109
    %p111 = scmp.ne.s32.totalorder %s97, %s98
    %p112 = scmp.eq.s32.totalorder %s15, 1
    %p113 = por %p111, %p112
    %p115 = scmp.ne.s32.totalorder %s98, %s114
    %p116 = scmp.eq.s32.totalorder %s15, 0
    %p117 = por %p115, %p116
    %s118 = ssub.s32 %s16, %s35
    %s119 = ssub.s32 %s17, %s31
    %s120 = sor.u32 %s118, %s119
    %p121 = scmp.eq.s32.totalorder %s120, 0
    %s123 = sadd.s32 %s122, 1
    %s124 = scalar_select %p121, %s122, %s123
    %p127 = pneg %p121
    %p128 = scmp.eq.s32.totalorder %s9, 1
    %p129 = por %p127, %p128
    %p130 = scmp.ne.s32.totalorder %s122, %s125
    %p131 = scmp.eq.s32.totalorder %s9, 0
    %p132 = por %p130, %p131
    %p133 = scmp.ne.s32.totalorder %s122, %s125
    %p134 = scmp.eq.s32.totalorder %s14, 1
    %p135 = por %p133, %p134
    %p136 = scmp.ne.s32.totalorder %s125, %s126
    %p137 = scmp.eq.s32.totalorder %s14, 0
    %p138 = por %p136, %p137
    %p139 = scmp.ne.s32.totalorder %s125, %s126
    %p140 = scmp.eq.s32.totalorder %s15, 1
    %p141 = por %p139, %p140
    %p143 = scmp.ne.s32.totalorder %s126, %s142
    %p144 = scmp.eq.s32.totalorder %s15, 0
    %p145 = por %p143, %p144
    %p146 = scmp.le.s32.totalorder 1, %s9
    %p147 = scmp.lt.s32.totalorder %s9, 3
    %p148 = pnand %p146, %p147
    %p149 = pneg %p148
    // Predicated region
    $region9: #{_forward.16} parent=5 // pred_check
      _
    $region10: #{_forward.16} parent=5 // pred_check_branch
      %151 = sbr.rel (%p148) target = $region12
    $region11: #{_forward.16} parent=5 // pred_region
      %s152 = ssub.s32 %s9, 1
      // Predicated region
      $region13: #{_forward.16} parent=11 // pred_check
        %p153 = pneg %p84
      $region14: #{_forward.16} parent=11 // pred_check_branch
        %155 = sbr.rel (%p153) target = $region16
      $region15: #{_forward.16} parent=11 // pred_region
        %s156 = smul.u32 8, %s21
        %p157 = scmp.lt.s32.totalorder %s156, 7
        %s158 = scalar_select %p157, %s156, 7
        %p159 = scmp.lt.s32.totalorder %s20, 0
        %s160 = scalar_select %p159, %s20, 0
        %s161 = sadd.s32 %s160, %s158
        %s162 = smul.addr %s161, 4
        %s163 = scalar_lea.vmem %s1, %s162
        %s164 = smul.u32 8, %s21
      $region16: #{_forward.16} parent=11 // pred_fallthru
        _
      // Predicated region
      $region17: #{_forward.16} parent=11 // pred_check
        %p165 = pneg %p110
      $region18: #{_forward.16} parent=11 // pred_check_branch
        %167 = sbr.rel (%p165) target = $region20
      $region19: #{_forward.16} parent=11 // pred_region
        %p168 = scmp.lt.s32.totalorder %s20, 0
        %s169 = scalar_select %p168, %s20, 0
        %s170 = scalar_lea.vmem %s2, %s169
      $region20: #{_forward.16} parent=11 // pred_fallthru
        _
    $region12: #{_forward.16} parent=5 // pred_fallthru
      _
    %p171 = scmp.lt.s32.totalorder %s9, 2
    // Predicated region
    $region21: #{_forward.16} parent=5 // pred_check
      %p172 = pneg %p171
    $region22: #{_forward.16} parent=5 // pred_check_branch
      %174 = sbr.rel (%p172) target = $region24
    $region23: #{_forward.16} parent=5 // pred_region
      // Predicated region
      $region25: #{_forward.16} parent=23 // pred_check
        %p175 = pneg %p50
      $region26: #{_forward.16} parent=23 // pred_check_branch
        %177 = sbr.rel (%p175) target = $region28
      $region27: #{_forward.16} parent=23 // pred_region
        %s178 = smul.u32 2, %s16
        %p179 = scmp.lt.s32.totalorder %s178, 3
        %s180 = scalar_select %p179, %s178, 3
        %p181 = scmp.lt.s32.totalorder %s18, 0
        %s182 = scalar_select %p181, %s18, 0
        %s183 = sadd.s32 %s182, %s180
        %s184 = smul.addr %s183, 8
        %s185 = scalar_lea.vmem %s0, %s184
        %s186 = smul.u32 2, %s16
      $region28: #{_forward.16} parent=23 // pred_fallthru
        _
    $region24: #{_forward.16} parent=5 // pred_fallthru
      _
    %p187 = scmp.le.s32.totalorder 1, %s9
    %p188 = scmp.lt.s32.totalorder %s9, 3
    %p189 = pnand %p187, %p188
    %p190 = pneg %p189
    // Predicated region
    $region29: #{_forward.16} parent=5 // pred_check
      _
    $region30: #{_forward.16} parent=5 // pred_check_branch
      %192 = sbr.rel (%p189) target = $region32
    $region31: #{_forward.16} parent=5 // pred_region
      %s193 = ssub.s32 %s9, 1
      %s194 = smul.u32 2, %s19
      %p195 = scmp.lt.s32.totalorder %s194, 3
      %s196 = scalar_select %p195, %s194, 3
      %p197 = scmp.lt.s32.totalorder %s21, 0
      %s198 = scalar_select %p197, %s21, 0
      %s199 = sadd.s32 %s198, %s196
      %s200 = smul.addr %s199, 8
      %s201 = scalar_lea.vmem %s0, %s200
      %p202 = pneg %p56
      %p203 = pneg %p53
      %s204 = smul.u32 8, %s21
      %p205 = scmp.lt.s32.totalorder %s204, 7
      %s206 = scalar_select %p205, %s204, 7
      %p207 = scmp.lt.s32.totalorder %s20, 0
      %s208 = scalar_select %p207, %s20, 0
      %s209 = sadd.s32 %s208, %s206
      %s210 = smul.addr %s209, 4
      %s211 = scalar_lea.vmem %s1, %s210
      %p212 = pneg %p84
      %p213 = pneg %p81
      %p214 = scmp.lt.s32.totalorder %s20, 0
      %s215 = scalar_select %p214, %s20, 0
      %s216 = scalar_lea.vmem %s2, %s215
      %p217 = pneg %p110
      %p218 = pneg %p107
      %p219 = pneg %p138
      %p220 = pneg %p135
      %s221 = smul.u32 2, %s19
      %p222 = scmp.lt.s32.totalorder %s221, 3
      %s223 = scalar_select %p222, %s221, 3
      %p224 = scmp.lt.s32.totalorder %s20, 0
      %s225 = scalar_select %p224, %s20, 0
      %s226 = sadd.s32 %s225, %s223
      %s227 = smul.addr %s226, 8
      %s228 = scalar_lea.vmem %s3, %s227
      %s229 = smul.u32 2, %s19
      %p230 = scmp.lt.s32.totalorder %s229, 3
      %s231 = scalar_select %p230, %s229, 3
      %p232 = scmp.lt.s32.totalorder %s21, 0
      %s233 = scalar_select %p232, %s21, 0
      %s234 = sadd.s32 %s233, %s231
      %s235 = smul.addr %s234, 8
      %s236 = scalar_lea.vmem %s0, %s235
      %s237 = smul.u32 2, %s19
      %s238 = smul.u32 8, %s21
      %p239 = scmp.lt.s32.totalorder %s238, 7
      %s240 = scalar_select %p239, %s238, 7
      %p241 = scmp.lt.s32.totalorder %s20, 0
      %s242 = scalar_select %p241, %s20, 0
      %s243 = sadd.s32 %s242, %s240
      %s244 = smul.addr %s243, 4
      %s245 = scalar_lea.vmem %s1, %s244
      %s246 = smul.u32 8, %s21
      %p247 = scmp.lt.s32.totalorder %s20, 0
      %s248 = scalar_select %p247, %s20, 0
      %s249 = scalar_lea.vmem %s2, %s248
      %s250 = smul.u32 2, %s19
      %p251 = scmp.lt.s32.totalorder %s250, 3
      %s252 = scalar_select %p251, %s250, 3
      %p253 = scmp.lt.s32.totalorder %s20, 0
      %s254 = scalar_select %p253, %s20, 0
      %s255 = sadd.s32 %s254, %s252
      %s256 = smul.addr %s255, 8
      %s257 = scalar_lea.vmem %s3, %s256
      %s258 = smul.u32 2, %s19
      %p260 = scmp.eq.s32.totalorder %s21, 0
      // Predicated region
      $region33: #{_forward.16} parent=31 // pred_check
        %p261 = pneg %p260
      $region34: #{_forward.16} parent=31 // pred_check_branch
        %263 = sbr.rel (%p261) target = $region36
      $region35: #{_forward.16} parent=31 // pred_region
        %264 = vst [vmem:[%s257] sm:$0xff] 0.0
        %265 = vst [vmem:[%s257 + $0x8] sm:$0xff] 0.0
      $region36: #{_forward.16} parent=31 // pred_fallthru
        _
      %v266 = vld [vmem:[%s257] sm:$0xff]
      %v267 = vld [vmem:[%s257 + $0x8] sm:$0xff]
      %v268 = vld [vmem:[%s236] sm:$0xff]
      %v269 = vld [vmem:[%s236 + $0x8] sm:$0xff]
      %v270 = vpack.c.bf16 %v269, %v268
      %v271 = vld [vmem:[%s245] sm:$0xf]
      %v272 = vld [vmem:[%s245 + $0x4] sm:$0xf]
      %v273 = vld [vmem:[%s245 + $0x8] sm:$0xf]
      %v274 = vld [vmem:[%s245 + $0xc] sm:$0xf]
      %v275 = vld [vmem:[%s245 + $0x10] sm:$0xf]
      %v276 = vld [vmem:[%s245 + $0x14] sm:$0xf]
      %v277 = vld [vmem:[%s245 + $0x18] sm:$0xf]
      %v278 = vld [vmem:[%s245 + $0x1c] sm:$0xf]
      %v287 = vunpack.c.l.b16 %v271
      %v288 = vunpack.c.l.b16 %v272
      %v289 = vunpack.c.l.b16 %v273
      %v290 = vunpack.c.l.b16 %v274
      %v291 = vunpack.c.l.b16 %v275
      %v292 = vunpack.c.l.b16 %v276
      %v293 = vunpack.c.l.b16 %v277
      %v294 = vunpack.c.l.b16 %v278
      %v295 = vpack.c.b16 %v288, %v287
      %v296 = vpack.c.b16 %v290, %v289
      %v297 = vpack.c.b16 %v292, %v291
      %v298 = vpack.c.b16 %v294, %v293
      %vm303 = vcmask 523264
      %v305 = vsel %vm303, %v270, 0
      %307 = vmatprep.subr.bf16.mxu0 0
      %308 = vmatpush1.bf16.msra.mxu0 0
      %309 = vmatprep.subr.bf16.mxu0 0
      %310 = vmatpush1.bf16.msra.mxu0 0
      %311 = vmatprep.subr.bf16.mxu0 0
      %312 = vmatpush1.bf16.msra.mxu0 0
      %313 = vmatprep.subr.bf16.mxu0 0
      %314 = vmatpush1.bf16.msra.mxu0 0
      %315 = vmatprep.subr.bf16.mxu0 0
      %316 = vmatpush1.bf16.msra.mxu0 %v298
      %317 = vmatprep.subr.bf16.mxu0 0
      %318 = vmatpush1.bf16.msra.mxu0 %v297
      %319 = vmatprep.subr.bf16.mxu0 0
      %320 = vmatpush1.bf16.msra.mxu0 %v296
      %321 = vmatprep.subr.bf16.mxu0 0
      %322 = vmatpush1.bf16.msra.mxu0 %v295
      %323 = vmatprep.subr.bf16.mxu0 0
      %324 = vmatpush2.bf16.msra.mxu0 0
      %325 = vmatprep.subr.bf16.mxu0 0
      %326 = vmatpush2.bf16.msra.mxu0 0
      %327 = vmatprep.subr.bf16.mxu0 0
      %328 = vmatpush2.bf16.msra.mxu0 0
      %329 = vmatprep.subr.bf16.mxu0 0
      %330 = vmatpush2.bf16.msra.mxu0 0
      %331 = vmatprep.subr.bf16.mxu0 0
      %332 = vmatpush2.bf16.msra.mxu0 0
      %333 = vmatprep.subr.bf16.mxu0 0
      %334 = vmatpush2.bf16.msra.mxu0 0
      %335 = vmatprep.subr.bf16.mxu0 0
      %336 = vmatpush2.bf16.msra.mxu0 0
      %337 = vmatprep.subr.bf16.mxu0 0
      %338 = vmatpush2.bf16.msra.mxu0 0
      %339 = vmatprep.mubr.bf16.mxu0 0
      %340 = vmatmul.mubr.bf16.gmra.mxu0 %v305
      %v341 = vpop.f32.mrf.mxu0
      %v342 = vadd.f32 0.0, %v341
      %v343 = vpop.f32.mrf.mxu0
      %v344 = vpop.f32.mrf.mxu0
      %v345 = vadd.f32 0.0, %v344
      %v346 = vpop.f32.mrf.mxu0
      %347 = vdwg.mxu0
      %v348 = vadd.f32 %v266, %v342
      %v349 = vadd.f32 %v267, %v345
      %350 = vst [vmem:[%s257] sm:$0xff] %v348
      %351 = vst [vmem:[%s257 + $0x8] sm:$0xff] %v349
      // Predicated region
      $region37: #{_forward.16} parent=31 // pred_check
        %p352 = pneg %p260
      $region38: #{_forward.16} parent=31 // pred_check_branch
        %354 = sbr.rel (%p352) target = $region40
      $region39: #{_forward.16} parent=31 // pred_region
        %v355 = vld [vmem:[%s257] sm:$0xff]
        %v356 = vld [vmem:[%s257 + $0x8] sm:$0xff]
        %v357 = vld [vmem:[%s249] sm:$0x1]
        %v359 = vlaneseq
        %v360 = vshrl.u32 %v359, 7
        %v361 = vsub.s32 0, %v360
        %v362 = vrot.slane %v357, %v361
        %v364 = vadd.f32 %v355, %v362
        %v365 = vadd.f32 %v356, %v362
        %vm366 = vcmp.gt.f32.partialorder %v364, 0.0
        %vm367 = vcmp.gt.f32.partialorder %v365, 0.0
        %v368 = vmul.f32 %v364, 0.1
        %v369 = vmul.f32 %v365, 0.1
        %v370 = vsel %vm366, %v364, %v368
        %v371 = vsel %vm367, %v365, %v369
        %372 = vst [vmem:[%s257] sm:$0xff] %v370
        %373 = vst [vmem:[%s257 + $0x8] sm:$0xff] %v371
      $region40: #{_forward.16} parent=31 // pred_fallthru
        _
      %s374 = smul.u32 2, %s19
      %p375 = scmp.lt.s32.totalorder %s374, 3
      %s376 = scalar_select %p375, %s374, 3
      %p377 = scmp.lt.s32.totalorder %s20, 0
      %s378 = scalar_select %p377, %s20, 0
      %s379 = sadd.s32 %s378, %s376
      %s380 = smul.addr %s379, 8
      %s381 = scalar_lea.vmem %s3, %s380
      // Predicated region
      $region41: #{_forward.16} parent=31 // pred_check
        %p382 = pneg %p135
      $region42: #{_forward.16} parent=31 // pred_check_branch
        %384 = sbr.rel (%p382) target = $region44
      $region43: #{_forward.16} parent=31 // pred_region
        %s385 = smul.u32 2, %s19
      $region44: #{_forward.16} parent=31 // pred_fallthru
        _
    $region32: #{_forward.16} parent=5 // pred_fallthru
      _
    %p386 = scmp.le.s32.totalorder 2, %s9
    // Predicated region
    $region45: #{_forward.16} parent=5 // pred_check
      %p387 = pneg %p386
    $region46: #{_forward.16} parent=5 // pred_check_branch
      %389 = sbr.rel (%p387) target = $region48
    $region47: #{_forward.16} parent=5 // pred_region
      %s390 = ssub.s32 %s9, 2
      // Predicated region
      $region49: #{_forward.16} parent=47 // pred_check
        %p391 = pneg %p141
      $region50: #{_forward.16} parent=47 // pred_check_branch
        %393 = sbr.rel (%p391) target = $region52
      $region51: #{_forward.16} parent=47 // pred_region
        %s394 = smul.u32 2, %s22
        %p395 = scmp.lt.s32.totalorder %s394, 3
        %s396 = scalar_select %p395, %s394, 3
        %p397 = scmp.lt.s32.totalorder %s23, 0
        %s398 = scalar_select %p397, %s23, 0
        %s399 = sadd.s32 %s398, %s396
        %s400 = smul.addr %s399, 8
        %s401 = scalar_lea.vmem %s3, %s400
      $region52: #{_forward.16} parent=47 // pred_fallthru
        _
    $region48: #{_forward.16} parent=5 // pred_fallthru
      _
  $region6: #{_forward.16} parent=0 // loop_footer
    %s13 = sadd.s32 1, %s9
  $region7: #{_forward.16} parent=0 // loop_footer_branch
    %8 = sbr.rel target = $region3
  $region8: #{_forward.16} parent=0 // loop_exit
    _

// kernel: _forward.19
$region0: #{_forward.19}
  #allocation0 [shape = 'u32[]', space=smem, size = 0x4, offset = 0x4, fixed_abs, tag = 'smem constant byte address 0x4 - core index']
  #allocation1 [shape = 'u32[144,128]{1,0:T(1,128)}', space=vmem, size = 0x12000, scoped, tag = 'internal scratch']
  %s0 = inlined_call_operand.vmem [shape: f32[2,128], index: 0, kind: input, shape index: {}]
  %s1 = inlined_call_operand.vmem [shape: bf16[128,128], index: 1, kind: input, shape index: {}]
  %s2 = inlined_call_operand.vmem [shape: f32[1,128], index: 2, kind: input, shape index: {}]
  %s3 = inlined_call_operand.vmem [shape: f32[2,128], index: 3, kind: output, shape index: {}]
  %s4 = sld [smem:[#allocation0]]
  $region30: #{_forward.19} parent=0
    _
  %s6 = ssub.s32 1, %s4
  %s7 = scalar_select 0, %s6, %s4
  // Predicated region
  $region2: #{_forward.19} parent=0 // pred_check
    _
  $region3: #{_forward.19} parent=0 // pred_check_branch
    %9 = sbr.rel (0) target = $region5
  $region4: #{_forward.19} parent=0 // pred_region
    _
  $region5: #{_forward.19} parent=0 // pred_fallthru
    _
  // Predicated region
  $region6: #{_forward.19} parent=0 // pred_check
    _
  $region7: #{_forward.19} parent=0 // pred_check_branch
    %11 = sbr.rel (0) target = $region9
  $region8: #{_forward.19} parent=0 // pred_region
    _
  $region9: #{_forward.19} parent=0 // pred_fallthru
    _
  // Predicated region
  $region10: #{_forward.19} parent=0 // pred_check
    _
  $region11: #{_forward.19} parent=0 // pred_check_branch
    %13 = sbr.rel (0) target = $region13
  $region12: #{_forward.19} parent=0 // pred_region
    _
  $region13: #{_forward.19} parent=0 // pred_fallthru
    _
  %p15 = scmp.eq.s32.totalorder 0, 0
  // Predicated region
  $region14: #{_forward.19} parent=0 // pred_check
    %p16 = pneg %p15
  $region15: #{_forward.19} parent=0 // pred_check_branch
    %18 = sbr.rel (%p16) target = $region17
  $region16: #{_forward.19} parent=0 // pred_region
    %19 = vst [vmem:[%s3] sm:$0x3] 0.0
  $region17: #{_forward.19} parent=0 // pred_fallthru
    _
  %v20 = vld [vmem:[%s3] sm:$0x3]
  %v21 = vld [vmem:[%s0] sm:$0x3]
  %v22 = vpack.c.bf16 %v21, %v21
  %v23 = vld [vmem:[%s1] sm:$0xf]
  %v24 = vld [vmem:[%s1 + $0x4] sm:$0xf]
  %v25 = vld [vmem:[%s1 + $0x8] sm:$0xf]
  %v26 = vld [vmem:[%s1 + $0xc] sm:$0xf]
  %v27 = vld [vmem:[%s1 + $0x10] sm:$0xf]
  %v28 = vld [vmem:[%s1 + $0x14] sm:$0xf]
  %v29 = vld [vmem:[%s1 + $0x18] sm:$0xf]
  %v30 = vld [vmem:[%s1 + $0x1c] sm:$0xf]
  %v31 = vld [vmem:[%s1 + $0x20] sm:$0xf]
  %v32 = vld [vmem:[%s1 + $0x24] sm:$0xf]
  %v33 = vld [vmem:[%s1 + $0x28] sm:$0xf]
  %v34 = vld [vmem:[%s1 + $0x2c] sm:$0xf]
  %v35 = vld [vmem:[%s1 + $0x30] sm:$0xf]
  %v36 = vld [vmem:[%s1 + $0x34] sm:$0xf]
  %v37 = vld [vmem:[%s1 + $0x38] sm:$0xf]
  %v38 = vld [vmem:[%s1 + $0x3c] sm:$0xf]
  %v55 = vunpack.c.l.b16 %v23
  %v56 = vunpack.c.l.b16 %v24
  %v57 = vunpack.c.l.b16 %v25
  %v58 = vunpack.c.l.b16 %v26
  %v59 = vunpack.c.l.b16 %v27
  %v60 = vunpack.c.l.b16 %v28
  %v61 = vunpack.c.l.b16 %v29
  %v62 = vunpack.c.l.b16 %v30
  %v63 = vunpack.c.l.b16 %v31
  %v64 = vunpack.c.l.b16 %v32
  %v65 = vunpack.c.l.b16 %v33
  %v66 = vunpack.c.l.b16 %v34
  %v67 = vunpack.c.l.b16 %v35
  %v68 = vunpack.c.l.b16 %v36
  %v69 = vunpack.c.l.b16 %v37
  %v70 = vunpack.c.l.b16 %v38
  %v71 = vpack.c.b16 %v56, %v55
  %v72 = vpack.c.b16 %v58, %v57
  %v73 = vpack.c.b16 %v60, %v59
  %v74 = vpack.c.b16 %v62, %v61
  %v75 = vpack.c.b16 %v64, %v63
  %v76 = vpack.c.b16 %v66, %v65
  %v77 = vpack.c.b16 %v68, %v67
  %v78 = vpack.c.b16 %v70, %v69
  %87 = vmatprep.subr.bf16.mxu0 0
  %88 = vmatpush1.bf16.msra.mxu0 %v78
  %89 = vmatprep.subr.bf16.mxu0 0
  %90 = vmatpush1.bf16.msra.mxu0 %v77
  %91 = vmatprep.subr.bf16.mxu0 0
  %92 = vmatpush1.bf16.msra.mxu0 %v76
  %93 = vmatprep.subr.bf16.mxu0 0
  %94 = vmatpush1.bf16.msra.mxu0 %v75
  %95 = vmatprep.subr.bf16.mxu0 0
  %96 = vmatpush1.bf16.msra.mxu0 %v74
  %97 = vmatprep.subr.bf16.mxu0 0
  %98 = vmatpush1.bf16.msra.mxu0 %v73
  %99 = vmatprep.subr.bf16.mxu0 0
  %100 = vmatpush1.bf16.msra.mxu0 %v72
  %101 = vmatprep.subr.bf16.mxu0 0
  %102 = vmatpush1.bf16.msra.mxu0 %v71
  %103 = vmatprep.subr.bf16.mxu0 0
  %104 = vmatpush2.bf16.msra.mxu0 0
  %105 = vmatprep.subr.bf16.mxu0 0
  %106 = vmatpush2.bf16.msra.mxu0 0
  %107 = vmatprep.subr.bf16.mxu0 0
  %108 = vmatpush2.bf16.msra.mxu0 0
  %109 = vmatprep.subr.bf16.mxu0 0
  %110 = vmatpush2.bf16.msra.mxu0 0
  %111 = vmatprep.subr.bf16.mxu0 0
  %112 = vmatpush2.bf16.msra.mxu0 0
  %113 = vmatprep.subr.bf16.mxu0 0
  %114 = vmatpush2.bf16.msra.mxu0 0
  %115 = vmatprep.subr.bf16.mxu0 0
  %116 = vmatpush2.bf16.msra.mxu0 0
  %117 = vmatprep.subr.bf16.mxu0 0
  %118 = vmatpush2.bf16.msra.mxu0 0
  %119 = vmatprep.mubr.bf16.mxu0 0
  %120 = vmatmul.mubr.bf16.gmra.mxu0 %v22
  %v121 = vpop.f32.mrf.mxu0
  %v122 = vadd.f32 0.0, %v121
  %v123 = vpop.f32.mrf.mxu0
  %v124 = vpop.f32.mrf.mxu0
  %v125 = vpop.f32.mrf.mxu0
  %126 = vdwg.mxu0
  %v127 = vadd.f32 %v20, %v122
  %128 = vst [vmem:[%s3] sm:$0x3] %v127
  // Predicated region
  $region18: #{_forward.19} parent=0 // pred_check
    %p129 = pneg %p15
  $region19: #{_forward.19} parent=0 // pred_check_branch
    %131 = sbr.rel (%p129) target = $region21
  $region20: #{_forward.19} parent=0 // pred_region
    %v132 = vld [vmem:[%s3] sm:$0x3]
    %v133 = vld [vmem:[%s2] sm:$0x1]
    %v135 = vlaneseq
    %v136 = vshrl.u32 %v135, 7
    %v137 = vsub.s32 0, %v136
    %v138 = vrot.slane %v133, %v137
    %v140 = vadd.f32 %v132, %v138
    %vm141 = vcmp.gt.f32.partialorder %v140, 0.0
    %v142 = vmul.f32 %v140, 0.1
    %v143 = vsel %vm141, %v140, %v142
    %144 = vst [vmem:[%s3] sm:$0x3] %v143
  $region21: #{_forward.19} parent=0 // pred_fallthru
    _
  // Predicated region
  $region22: #{_forward.19} parent=0 // pred_check
    _
  $region23: #{_forward.19} parent=0 // pred_check_branch
    %146 = sbr.rel (0) target = $region25
  $region24: #{_forward.19} parent=0 // pred_region
    _
  $region25: #{_forward.19} parent=0 // pred_fallthru
    _
  // Predicated region
  $region26: #{_forward.19} parent=0 // pred_check
    _
  $region27: #{_forward.19} parent=0 // pred_check_branch
    %148 = sbr.rel (0) target = $region29
  $region28: #{_forward.19} parent=0 // pred_region
    _
  $region29: #{_forward.19} parent=0 // pred_fallthru
    _

</llo_original>
